<compile_context>
chip_gen: v6e
topology: v6e:2x2x1
jax: 0.10.0
libtpu: 0.0.40
codegen_flags: <defaults>
</compile_context>

<pallas_src>
import functools

import jax
import jax.numpy as jnp
from jax.experimental import pallas as pl
from jax.experimental.pallas import tpu as pltpu

_NEG_SLOPE = 0.2
_TAPS = [(ky, kx) for ky in (-1, 0, 1) for kx in (-1, 0, 1)]
_BIAS_ROWS = 8                 # ones block (bias folded into weight column 0)
_PATCH_DTYPE = jnp.bfloat16


def _rup8(n):
    return ((n + 7) // 8) * 8


# ----------------------------------------------------------------------------
# Fused dense-block kernel: one grid step = one batch element, all groups.
# ----------------------------------------------------------------------------
def _dense_block_kernel(x_ref, m_ref, w1, w2, w3, w4, w5, wf, o_ref,
                        patch_ref, fpatch_ref,
                        *, H, W, groups, cout, cp0, cpg, cpo):
    HW = H * W
    GHW = groups * HW

    masks_g = m_ref[...]                     # (9, G*HW) f32, group-tiled
    masks_1 = masks_g[:, :HW]                # (9, HW) per-image mask (periodic)

    def fill(dst_ref, row0, act, masks, width, cp):
        # act: (cp, width) f32.  Writes the 9 shifted+masked copies of `act`
        # into dst_ref rows [row0, row0+9*cp) — 8-sublane-aligned bf16 stores.
        for t, (ky, kx) in enumerate(_TAPS):
            off = ky * W + kx
            if off == 0:
                sh = act                                        # center tap
            else:
                sh = pltpu.roll(act, shift=(width - off) % width, axis=1)
                sh = sh * masks[t:t + 1, :]                     # implicit 0-pad
            dst_ref[row0 + t * cp: row0 + (t + 1) * cp, :] = sh.astype(dst_ref.dtype)

    # Ones block: column 0 of every packed weight holds that conv's bias.
    patch_ref[0:_BIAS_ROWS, :] = jnp.ones((_BIAS_ROWS, GHW), patch_ref.dtype)
    fpatch_ref[0:_BIAS_ROWS, :] = jnp.ones((_BIAS_ROWS, HW), fpatch_ref.dtype)

    # Layer-0 block: xi (channel-padded to cp0 with zeros in the wrapper).
    fill(patch_ref, _BIAS_ROWS, x_ref[0], masks_g, GHW, cp0)

    # conv1..conv4: incremental patch build — each conv consumes the existing
    # prefix and appends only its own 9*cpg block.
    row = _BIAS_ROWS + 9 * cp0
    for w_r in (w1, w2, w3, w4):
        y = jnp.dot(w_r[...], patch_ref[0:row, :],
                    preferred_element_type=jnp.float32)         # (cpg, G*HW)
        y = jnp.maximum(y, _NEG_SLOPE * y)                      # LeakyReLU(0.2)
        fill(patch_ref, row, y, masks_g, GHW, cpg)
        row += 9 * cpg

    # conv5 (per-group feature map; padded output rows are exact zeros).
    y5 = jnp.dot(w5[...], patch_ref[0:row, :],
                 preferred_element_type=jnp.float32)            # (cpo, G*HW)
    y5 = jnp.maximum(y5, _NEG_SLOPE * y5)

    # torch.cat(res, dim=1): repack each group's x5 (a lane-aligned HW-wide
    # slice) into the conv_final patch, one group block at a time.
    for g in range(groups):
        seg = y5[:, g * HW:(g + 1) * HW]                        # (cpo, HW)
        fill(fpatch_ref, _BIAS_ROWS + g * 9 * cpo, seg, masks_1, HW, cpo)

    # conv_final (no activation in the torch forward).
    yf = jnp.dot(wf[...], fpatch_ref[...],
                 preferred_element_type=jnp.float32)            # (cpo, HW)
    o_ref[0] = yf[0:cout, :].astype(o_ref.dtype)


# ----------------------------------------------------------------------------
# Wrapper: layout plumbing + pallas_call
# ----------------------------------------------------------------------------
def _pack_weight(w_hwio, b, block_ranges, block_cpads, cout_pad):
    """(3,3,Cin,Cout),(Cout,) -> bf16 (cout_pad, 8 + 9*sum(cpads)).

    Column order matches the patch rows: [bias col 0 | 7 zero cols] then per
    input block, per tap, per (8-padded) channel.  Padding cols/rows are zero.
    """
    kh, kw, _, cout = w_hwio.shape
    K = _BIAS_ROWS + kh * kw * sum(block_cpads)
    Wp = jnp.zeros((cout_pad, K), jnp.float32)
    Wp = Wp.at[:cout, 0].set(b)
    col = _BIAS_ROWS
    for (lo, hi), cp in zip(block_ranges, block_cpads):
        nb = hi - lo
        wblk = jnp.transpose(
            w_hwio[:, :, lo:hi, :].reshape(kh * kw, nb, cout), (2, 0, 1))
        wpad = jnp.zeros((cout, kh * kw, cp), jnp.float32).at[:, :, :nb].set(wblk)
        Wp = Wp.at[:cout, col:col + kh * kw * cp].set(wpad.reshape(cout, kh * kw * cp))
        col += kh * kw * cp
    return Wp.astype(_PATCH_DTYPE)


def _make_masks(H, W, groups):
    """(9, G*H*W) f32 tap-validity masks (implicit zero padding), group-tiled."""
    pos = jnp.arange(H * W)
    xc, yc = pos % W, pos // W
    rows = []
    for ky, kx in _TAPS:
        valid = jnp.ones((H * W,), jnp.bool_)
        if kx == -1:
            valid = valid & (xc >= 1)
        if kx == 1:
            valid = valid & (xc <= W - 2)
        if ky == -1:
            valid = valid & (yc >= 1)
        if ky == 1:
            valid = valid & (yc <= H - 2)
        rows.append(valid)
    m = jnp.stack(rows).astype(jnp.float32)          # (9, HW)
    return jnp.tile(m, (1, groups))                  # (9, G*HW)


def dense_block_v2_forward(x, params):
    """x: (groups, N, C_in, H, W) (one NCHW tensor per group) -> (N, C_out, H, W)."""
    G, N, C_in, H, W = x.shape
    HW, GHW = H * W, G * H * W
    gc = params["conv1"][0].shape[-1]
    cout = params["conv5"][0].shape[-1]
    cp0, cpg, cpo = _rup8(C_in), _rup8(gc), _rup8(cout)

    patch_rows = _BIAS_ROWS + 9 * cp0 + 4 * 9 * cpg
    fpatch_rows = _BIAS_ROWS + G * 9 * cpo
    scratch_bytes = 2 * (patch_rows * GHW + fpatch_rows * HW)
    if scratch_bytes > 48 * 1024 * 1024:
        # TODO(synk): tile H*W across a grid axis (with 1-row halo) for large
        # spatial sizes; the bf16 patch scales linearly with H*W and would
        # exceed v7x's 64 MiB VMEM at production resolutions.
        raise ValueError("patch scratch too large for VMEM; add spatial tiling")

    # (G,N,C,H,W) -> (N,C,G*H*W): groups folded onto lanes, channel-padded.
    x_r = jnp.transpose(x, (1, 2, 0, 3, 4)).reshape(N, C_in, GHW)
    x_r = jnp.pad(x_r, ((0, 0), (0, cp0 - C_in), (0, 0))).astype(jnp.float32)

    masks = _make_masks(H, W, G)

    # Pack weights (+ folded bf16 bias) to match the patch row layout.
    layer_ranges = [(0, C_in)] + [(C_in + j * gc, C_in + (j + 1) * gc)
                                  for j in range(4)]
    layer_cpads = [cp0] + [cpg] * 4
    packed = []
    for l, name in enumerate(("conv1", "conv2", "conv3", "conv4", "conv5"), start=1):
        w, b = params[name]
        out_pad = cpo if name == "conv5" else cpg
        packed.append(_pack_weight(w, b, layer_ranges[:l], layer_cpads[:l], out_pad))
    wfin, bfin = params["conv_final"]
    packed.append(_pack_weight(
        wfin, bfin, [(g * cout, (g + 1) * cout) for g in range(G)], [cpo] * G, cpo))

    in_specs = [
        pl.BlockSpec((1, cp0, GHW), lambda n: (n, 0, 0)),     # xi (per batch elem)
        pl.BlockSpec((9, GHW), lambda n: (0, 0)),             # masks (VMEM-resident)
    ]
    for wp in packed:                                         # weights (VMEM-resident)
        in_specs.append(pl.BlockSpec(wp.shape, lambda n: (0, 0)))

    kernel = functools.partial(_dense_block_kernel, H=H, W=W, groups=G,
                               cout=cout, cp0=cp0, cpg=cpg, cpo=cpo)

    # TODO(synk): on single-TC chips (v5e/v6e) with tiny batch, fold a small
    # batch factor onto the lane axis too and shrink the grid accordingly.
    out = pl.pallas_call(
        kernel,
        out_shape=jax.ShapeDtypeStruct((N, cout, HW), jnp.float32),
        grid_spec=pltpu.PrefetchScalarGridSpec(
            num_scalar_prefetch=0,
            grid=(N,),
            in_specs=in_specs,
            out_specs=pl.BlockSpec((1, cout, HW), lambda n: (n, 0, 0)),
            scratch_shapes=[
                pltpu.VMEM((patch_rows, GHW), _PATCH_DTYPE),   # shared im2col patch
                pltpu.VMEM((fpatch_rows, HW), _PATCH_DTYPE),   # conv_final patch
            ],
        ),
        compiler_params=pltpu.CompilerParams(
            dimension_semantics=("parallel",)),
    )(x_r, masks, *packed)

    return out.reshape(N, cout, H, W)                          # NCHW


# ----------------------------------------------------------------------------
# Deterministic synthetic parameter init (xavier-like * 0.1; not a checkpoint)
# ----------------------------------------------------------------------------
def make_params(key, channel_in, channel_out, groups, gc):
    def conv_init(k, cin, cout, scale=0.1):
        kw, kb = jax.random.split(k)
        fan_in, fan_out = cin * 9, cout * 9
        std = (2.0 / (fan_in + fan_out)) ** 0.5
        w = scale * std * jax.random.normal(kw, (3, 3, cin, cout), jnp.float32)
        b = 0.01 * jax.random.normal(kb, (cout,), jnp.float32)
        return w, b

    keys = jax.random.split(key, 6)
    return {
        "conv1": conv_init(keys[0], channel_in, gc),
        "conv2": conv_init(keys[1], channel_in + gc, gc),
        "conv3": conv_init(keys[2], channel_in + 2 * gc, gc),
        "conv4": conv_init(keys[3], channel_in + 3 * gc, gc),
        "conv5": conv_init(keys[4], channel_in + 4 * gc, channel_out),
        "conv_final": conv_init(keys[5], channel_out * groups, channel_out),
    }


# ----------------------------------------------------------------------------
# Reference matching the kernel numerics (bf16 operands, f32 accumulation)
# ----------------------------------------------------------------------------
def _ref_conv(x_nhwc, w, b, apply_lrelu):
    y = jax.lax.conv_general_dilated(
        x_nhwc, w.astype(jnp.bfloat16), (1, 1), "SAME",
        dimension_numbers=("NHWC", "HWIO", "NHWC"),
        preferred_element_type=jnp.float32)
    y = y + b.astype(jnp.bfloat16).astype(jnp.float32)
    return jnp.maximum(y, _NEG_SLOPE * y) if apply_lrelu else y


def _ref_forward(x, params):
    bf = lambda a: a.astype(jnp.bfloat16)
    res = []
    for g in range(x.shape[0]):
        xi = bf(jnp.transpose(x[g], (0, 2, 3, 1)))
        x1 = bf(_ref_conv(xi, *params["conv1"], True))
        x2 = bf(_ref_conv(jnp.concatenate([xi, x1], -1), *params["conv2"], True))
        x3 = bf(_ref_conv(jnp.concatenate([xi, x1, x2], -1), *params["conv3"], True))
        x4 = bf(_ref_conv(jnp.concatenate([xi, x1, x2, x3], -1), *params["conv4"], True))
        x5 = bf(_ref_conv(jnp.concatenate([xi, x1, x2, x3, x4], -1), *params["conv5"], True))
        res.append(x5)
    res = jnp.concatenate(res, -1)
    out = _ref_conv(res, *params["conv_final"], False)
    return jnp.transpose(out, (0, 3, 1, 2))


if __name__ == "__main__":
    channel_in, channel_out, groups, gc = 4, 4, 2, 8
    N, H, W = 2, 16, 16

    key = jax.random.PRNGKey(0)
    kx, kp = jax.random.split(key)
    # x mirrors `for xi in x`: a stack of `groups` NCHW tensors.
    x = jax.random.normal(kx, (groups, N, channel_in, H, W), jnp.float32)
    params = make_params(kp, channel_in, channel_out, groups, gc)

    out = jax.jit(dense_block_v2_forward)(x, params)
    out = jax.block_until_ready(out)

    ref = _ref_forward(x, params)
    assert out.shape == (N, channel_out, H, W)
    err = float(jnp.max(jnp.abs(out - ref)))
    assert err < 2e-3, f"mismatch vs bf16-matched reference: max_abs_err={err}"

    print("KERNEL_OK")
</pallas_src>

<mosaic_0001>
module attributes {stable_mosaic.version = 11 : i64} {
  func.func @_dense_block_kernel(%arg0: i32, %arg1: memref<1x8x512xf32, #tpu.memory_space<vmem>>, %arg2: memref<9x512xf32, #tpu.memory_space<vmem>>, %arg3: memref<8x80xbf16, #tpu.memory_space<vmem>>, %arg4: memref<8x152xbf16, #tpu.memory_space<vmem>>, %arg5: memref<8x224xbf16, #tpu.memory_space<vmem>>, %arg6: memref<8x296xbf16, #tpu.memory_space<vmem>>, %arg7: memref<8x368xbf16, #tpu.memory_space<vmem>>, %arg8: memref<8x152xbf16, #tpu.memory_space<vmem>>, %arg9: memref<1x4x256xf32, #tpu.memory_space<vmem>>, %arg10: memref<368x512xbf16, #tpu.memory_space<vmem>>, %arg11: memref<152x256xbf16, #tpu.memory_space<vmem>>) attributes {dimension_semantics = [#tpu.dimension_semantics<parallel>], iteration_bounds = array<i64: 2>, scalar_prefetch = 0 : i64, scratch_operands = 2 : i64, tpu.core_type = #tpu.core_type<tc>, window_params = [{transform_indices = @transform_0, window_bounds = array<i64: 1, 8, 512>}, {pipeline_mode = #tpu.pipeline_mode<synchronous>, transform_indices = @transform_1, window_bounds = array<i64: 9, 512>}, {pipeline_mode = #tpu.pipeline_mode<synchronous>, transform_indices = @transform_2, window_bounds = array<i64: 8, 80>}, {pipeline_mode = #tpu.pipeline_mode<synchronous>, transform_indices = @transform_3, window_bounds = array<i64: 8, 152>}, {pipeline_mode = #tpu.pipeline_mode<synchronous>, transform_indices = @transform_4, window_bounds = array<i64: 8, 224>}, {pipeline_mode = #tpu.pipeline_mode<synchronous>, transform_indices = @transform_5, window_bounds = array<i64: 8, 296>}, {pipeline_mode = #tpu.pipeline_mode<synchronous>, transform_indices = @transform_6, window_bounds = array<i64: 8, 368>}, {pipeline_mode = #tpu.pipeline_mode<synchronous>, transform_indices = @transform_7, window_bounds = array<i64: 8, 152>}, {transform_indices = @transform_8, window_bounds = array<i64: 1, 4, 256>}]} {
    %c0 = arith.constant 0 : index
    %c0_0 = arith.constant 0 : index
    %0 = vector.load %arg2[%c0, %c0_0] : memref<9x512xf32, #tpu.memory_space<vmem>>, vector<9x512xf32>
    %1 = vector.extract_strided_slice %0 {offsets = [0, 0], sizes = [9, 256], strides = [1, 1]} : vector<9x512xf32> to vector<9x256xf32>
    %cst = arith.constant 1.000000e+00 : bf16
    %2 = vector.broadcast %cst : bf16 to vector<8x512xbf16>
    %c0_1 = arith.constant 0 : index
    %c0_2 = arith.constant 0 : index
    %3 = vector.load %arg10[%c0_1, %c0_2] : memref<368x512xbf16, #tpu.memory_space<vmem>>, vector<8x512xbf16>
    tpu.vector_store %arg10[%c0_1, %c0_2], %2 {strides = array<i32>} : memref<368x512xbf16, #tpu.memory_space<vmem>>, vector<8x512xbf16>,
    %cst_3 = arith.constant 1.000000e+00 : bf16
    %4 = vector.broadcast %cst_3 : bf16 to vector<8x256xbf16>
    %c0_4 = arith.constant 0 : index
    %c0_5 = arith.constant 0 : index
    %5 = vector.load %arg11[%c0_4, %c0_5] : memref<152x256xbf16, #tpu.memory_space<vmem>>, vector<8x256xbf16>
    tpu.vector_store %arg11[%c0_4, %c0_5], %4 {strides = array<i32>} : memref<152x256xbf16, #tpu.memory_space<vmem>>, vector<8x256xbf16>,
    %c0_6 = arith.constant 0 : index
    %c0_7 = arith.constant 0 : index
    %c0_8 = arith.constant 0 : index
    %6 = vector.load %arg1[%c0_6, %c0_7, %c0_8] : memref<1x8x512xf32, #tpu.memory_space<vmem>>, vector<1x8x512xf32>
    %7 = vector.shape_cast %6 : vector<1x8x512xf32> to vector<8x512xf32>
    %c17_i32 = arith.constant 17 : i32
    %8 = tpu.dynamic_rotate %7 by %c17_i32 dim 1 : vector<8x512xf32>, i32 -> vector<8x512xf32>
    %9 = vector.extract_strided_slice %0 {offsets = [0, 0], sizes = [1, 512], strides = [1, 1]} : vector<9x512xf32> to vector<1x512xf32>
    %10 = vector.broadcast %9 : vector<1x512xf32> to vector<8x512xf32>
    %11 = arith.mulf %8, %10 : vector<8x512xf32>
    %12 = arith.truncf %11 : vector<8x512xf32> to vector<8x512xbf16>
    %c8 = arith.constant 8 : index
    %c0_9 = arith.constant 0 : index
    %13 = vector.load %arg10[%c8, %c0_9] : memref<368x512xbf16, #tpu.memory_space<vmem>>, vector<8x512xbf16>
    tpu.vector_store %arg10[%c8, %c0_9], %12 {strides = array<i32>} : memref<368x512xbf16, #tpu.memory_space<vmem>>, vector<8x512xbf16>,
    %c16_i32 = arith.constant 16 : i32
    %14 = tpu.dynamic_rotate %7 by %c16_i32 dim 1 : vector<8x512xf32>, i32 -> vector<8x512xf32>
    %15 = vector.extract_strided_slice %0 {offsets = [1, 0], sizes = [1, 512], strides = [1, 1]} : vector<9x512xf32> to vector<1x512xf32>
    %16 = vector.broadcast %15 : vector<1x512xf32> to vector<8x512xf32>
    %17 = arith.mulf %14, %16 : vector<8x512xf32>
    %18 = arith.truncf %17 : vector<8x512xf32> to vector<8x512xbf16>
    %c16 = arith.constant 16 : index
    %c0_10 = arith.constant 0 : index
    %19 = vector.load %arg10[%c16, %c0_10] : memref<368x512xbf16, #tpu.memory_space<vmem>>, vector<8x512xbf16>
    tpu.vector_store %arg10[%c16, %c0_10], %18 {strides = array<i32>} : memref<368x512xbf16, #tpu.memory_space<vmem>>, vector<8x512xbf16>,
    %c15_i32 = arith.constant 15 : i32
    %20 = tpu.dynamic_rotate %7 by %c15_i32 dim 1 : vector<8x512xf32>, i32 -> vector<8x512xf32>
    %21 = vector.extract_strided_slice %0 {offsets = [2, 0], sizes = [1, 512], strides = [1, 1]} : vector<9x512xf32> to vector<1x512xf32>
    %22 = vector.broadcast %21 : vector<1x512xf32> to vector<8x512xf32>
    %23 = arith.mulf %20, %22 : vector<8x512xf32>
    %24 = arith.truncf %23 : vector<8x512xf32> to vector<8x512xbf16>
    %c24 = arith.constant 24 : index
    %c0_11 = arith.constant 0 : index
    %25 = vector.load %arg10[%c24, %c0_11] : memref<368x512xbf16, #tpu.memory_space<vmem>>, vector<8x512xbf16>
    tpu.vector_store %arg10[%c24, %c0_11], %24 {strides = array<i32>} : memref<368x512xbf16, #tpu.memory_space<vmem>>, vector<8x512xbf16>,
    %c1_i32 = arith.constant 1 : i32
    %26 = tpu.dynamic_rotate %7 by %c1_i32 dim 1 : vector<8x512xf32>, i32 -> vector<8x512xf32>
    %27 = vector.extract_strided_slice %0 {offsets = [3, 0], sizes = [1, 512], strides = [1, 1]} : vector<9x512xf32> to vector<1x512xf32>
    %28 = vector.broadcast %27 : vector<1x512xf32> to vector<8x512xf32>
    %29 = arith.mulf %26, %28 : vector<8x512xf32>
    %30 = arith.truncf %29 : vector<8x512xf32> to vector<8x512xbf16>
    %c32 = arith.constant 32 : index
    %c0_12 = arith.constant 0 : index
    %31 = vector.load %arg10[%c32, %c0_12] : memref<368x512xbf16, #tpu.memory_space<vmem>>, vector<8x512xbf16>
    tpu.vector_store %arg10[%c32, %c0_12], %30 {strides = array<i32>} : memref<368x512xbf16, #tpu.memory_space<vmem>>, vector<8x512xbf16>,
    %32 = arith.truncf %7 : vector<8x512xf32> to vector<8x512xbf16>
    %c40 = arith.constant 40 : index
    %c0_13 = arith.constant 0 : index
    %33 = vector.load %arg10[%c40, %c0_13] : memref<368x512xbf16, #tpu.memory_space<vmem>>, vector<8x512xbf16>
    tpu.vector_store %arg10[%c40, %c0_13], %32 {strides = array<i32>} : memref<368x512xbf16, #tpu.memory_space<vmem>>, vector<8x512xbf16>,
    %c511_i32 = arith.constant 511 : i32
    %34 = tpu.dynamic_rotate %7 by %c511_i32 dim 1 : vector<8x512xf32>, i32 -> vector<8x512xf32>
    %35 = vector.extract_strided_slice %0 {offsets = [5, 0], sizes = [1, 512], strides = [1, 1]} : vector<9x512xf32> to vector<1x512xf32>
    %36 = vector.broadcast %35 : vector<1x512xf32> to vector<8x512xf32>
    %37 = arith.mulf %34, %36 : vector<8x512xf32>
    %38 = arith.truncf %37 : vector<8x512xf32> to vector<8x512xbf16>
    %c48 = arith.constant 48 : index
    %c0_14 = arith.constant 0 : index
    %39 = vector.load %arg10[%c48, %c0_14] : memref<368x512xbf16, #tpu.memory_space<vmem>>, vector<8x512xbf16>
    tpu.vector_store %arg10[%c48, %c0_14], %38 {strides = array<i32>} : memref<368x512xbf16, #tpu.memory_space<vmem>>, vector<8x512xbf16>,
    %c497_i32 = arith.constant 497 : i32
    %40 = tpu.dynamic_rotate %7 by %c497_i32 dim 1 : vector<8x512xf32>, i32 -> vector<8x512xf32>
    %41 = vector.extract_strided_slice %0 {offsets = [6, 0], sizes = [1, 512], strides = [1, 1]} : vector<9x512xf32> to vector<1x512xf32>
    %42 = vector.broadcast %41 : vector<1x512xf32> to vector<8x512xf32>
    %43 = arith.mulf %40, %42 : vector<8x512xf32>
    %44 = arith.truncf %43 : vector<8x512xf32> to vector<8x512xbf16>
    %c56 = arith.constant 56 : index
    %c0_15 = arith.constant 0 : index
    %45 = vector.load %arg10[%c56, %c0_15] : memref<368x512xbf16, #tpu.memory_space<vmem>>, vector<8x512xbf16>
    tpu.vector_store %arg10[%c56, %c0_15], %44 {strides = array<i32>} : memref<368x512xbf16, #tpu.memory_space<vmem>>, vector<8x512xbf16>,
    %c496_i32 = arith.constant 496 : i32
    %46 = tpu.dynamic_rotate %7 by %c496_i32 dim 1 : vector<8x512xf32>, i32 -> vector<8x512xf32>
    %47 = vector.extract_strided_slice %0 {offsets = [7, 0], sizes = [1, 512], strides = [1, 1]} : vector<9x512xf32> to vector<1x512xf32>
    %48 = vector.broadcast %47 : vector<1x512xf32> to vector<8x512xf32>
    %49 = arith.mulf %46, %48 : vector<8x512xf32>
    %50 = arith.truncf %49 : vector<8x512xf32> to vector<8x512xbf16>
    %c64 = arith.constant 64 : index
    %c0_16 = arith.constant 0 : index
    %51 = vector.load %arg10[%c64, %c0_16] : memref<368x512xbf16, #tpu.memory_space<vmem>>, vector<8x512xbf16>
    tpu.vector_store %arg10[%c64, %c0_16], %50 {strides = array<i32>} : memref<368x512xbf16, #tpu.memory_space<vmem>>, vector<8x512xbf16>,
    %c495_i32 = arith.constant 495 : i32
    %52 = tpu.dynamic_rotate %7 by %c495_i32 dim 1 : vector<8x512xf32>, i32 -> vector<8x512xf32>
    %53 = vector.extract_strided_slice %0 {offsets = [8, 0], sizes = [1, 512], strides = [1, 1]} : vector<9x512xf32> to vector<1x512xf32>
    %54 = vector.broadcast %53 : vector<1x512xf32> to vector<8x512xf32>
    %55 = arith.mulf %52, %54 : vector<8x512xf32>
    %56 = arith.truncf %55 : vector<8x512xf32> to vector<8x512xbf16>
    %c72 = arith.constant 72 : index
    %c0_17 = arith.constant 0 : index
    %57 = vector.load %arg10[%c72, %c0_17] : memref<368x512xbf16, #tpu.memory_space<vmem>>, vector<8x512xbf16>
    tpu.vector_store %arg10[%c72, %c0_17], %56 {strides = array<i32>} : memref<368x512xbf16, #tpu.memory_space<vmem>>, vector<8x512xbf16>,
    %c0_18 = arith.constant 0 : index
    %c0_19 = arith.constant 0 : index
    %58 = vector.load %arg3[%c0_18, %c0_19] : memref<8x80xbf16, #tpu.memory_space<vmem>>, vector<8x80xbf16>
    %c0_20 = arith.constant 0 : index
    %c0_21 = arith.constant 0 : index
    %59 = vector.load %arg10[%c0_20, %c0_21] : memref<368x512xbf16, #tpu.memory_space<vmem>>, vector<80x512xbf16>
    %cst_22 = arith.constant dense<0.000000e+00> : vector<8x512xf32>
    %60 = tpu.matmul %58, %59, %cst_22 {dimension_numbers = #tpu.dot_dimension_numbers<[1], [0], [0], [1], [0, 0, 1, 1], [], []>} : vector<8x80xbf16>, vector<80x512xbf16>, vector<8x512xf32> -> vector<8x512xf32>
    %cst_23 = arith.constant 2.000000e-01 : f32
    %61 = vector.broadcast %cst_23 : f32 to vector<8x512xf32>
    %62 = arith.mulf %61, %60 : vector<8x512xf32>
    %63 = arith.maximumf %60, %62 : vector<8x512xf32>
    %c17_i32_24 = arith.constant 17 : i32
    %64 = tpu.dynamic_rotate %63 by %c17_i32_24 dim 1 : vector<8x512xf32>, i32 -> vector<8x512xf32>
    %65 = vector.extract_strided_slice %0 {offsets = [0, 0], sizes = [1, 512], strides = [1, 1]} : vector<9x512xf32> to vector<1x512xf32>
    %66 = vector.broadcast %65 : vector<1x512xf32> to vector<8x512xf32>
    %67 = arith.mulf %64, %66 : vector<8x512xf32>
    %68 = arith.truncf %67 : vector<8x512xf32> to vector<8x512xbf16>
    %c80 = arith.constant 80 : index
    %c0_25 = arith.constant 0 : index
    %69 = vector.load %arg10[%c80, %c0_25] : memref<368x512xbf16, #tpu.memory_space<vmem>>, vector<8x512xbf16>
    tpu.vector_store %arg10[%c80, %c0_25], %68 {strides = array<i32>} : memref<368x512xbf16, #tpu.memory_space<vmem>>, vector<8x512xbf16>,
    %c16_i32_26 = arith.constant 16 : i32
    %70 = tpu.dynamic_rotate %63 by %c16_i32_26 dim 1 : vector<8x512xf32>, i32 -> vector<8x512xf32>
    %71 = vector.extract_strided_slice %0 {offsets = [1, 0], sizes = [1, 512], strides = [1, 1]} : vector<9x512xf32> to vector<1x512xf32>
    %72 = vector.broadcast %71 : vector<1x512xf32> to vector<8x512xf32>
    %73 = arith.mulf %70, %72 : vector<8x512xf32>
    %74 = arith.truncf %73 : vector<8x512xf32> to vector<8x512xbf16>
    %c88 = arith.constant 88 : index
    %c0_27 = arith.constant 0 : index
    %75 = vector.load %arg10[%c88, %c0_27] : memref<368x512xbf16, #tpu.memory_space<vmem>>, vector<8x512xbf16>
    tpu.vector_store %arg10[%c88, %c0_27], %74 {strides = array<i32>} : memref<368x512xbf16, #tpu.memory_space<vmem>>, vector<8x512xbf16>,
    %c15_i32_28 = arith.constant 15 : i32
    %76 = tpu.dynamic_rotate %63 by %c15_i32_28 dim 1 : vector<8x512xf32>, i32 -> vector<8x512xf32>
    %77 = vector.extract_strided_slice %0 {offsets = [2, 0], sizes = [1, 512], strides = [1, 1]} : vector<9x512xf32> to vector<1x512xf32>
    %78 = vector.broadcast %77 : vector<1x512xf32> to vector<8x512xf32>
    %79 = arith.mulf %76, %78 : vector<8x512xf32>
    %80 = arith.truncf %79 : vector<8x512xf32> to vector<8x512xbf16>
    %c96 = arith.constant 96 : index
    %c0_29 = arith.constant 0 : index
    %81 = vector.load %arg10[%c96, %c0_29] : memref<368x512xbf16, #tpu.memory_space<vmem>>, vector<8x512xbf16>
    tpu.vector_store %arg10[%c96, %c0_29], %80 {strides = array<i32>} : memref<368x512xbf16, #tpu.memory_space<vmem>>, vector<8x512xbf16>,
    %c1_i32_30 = arith.constant 1 : i32
    %82 = tpu.dynamic_rotate %63 by %c1_i32_30 dim 1 : vector<8x512xf32>, i32 -> vector<8x512xf32>
    %83 = vector.extract_strided_slice %0 {offsets = [3, 0], sizes = [1, 512], strides = [1, 1]} : vector<9x512xf32> to vector<1x512xf32>
    %84 = vector.broadcast %83 : vector<1x512xf32> to vector<8x512xf32>
    %85 = arith.mulf %82, %84 : vector<8x512xf32>
    %86 = arith.truncf %85 : vector<8x512xf32> to vector<8x512xbf16>
    %c104 = arith.constant 104 : index
    %c0_31 = arith.constant 0 : index
    %87 = vector.load %arg10[%c104, %c0_31] : memref<368x512xbf16, #tpu.memory_space<vmem>>, vector<8x512xbf16>
    tpu.vector_store %arg10[%c104, %c0_31], %86 {strides = array<i32>} : memref<368x512xbf16, #tpu.memory_space<vmem>>, vector<8x512xbf16>,
    %88 = arith.truncf %63 : vector<8x512xf32> to vector<8x512xbf16>
    %c112 = arith.constant 112 : index
    %c0_32 = arith.constant 0 : index
    %89 = vector.load %arg10[%c112, %c0_32] : memref<368x512xbf16, #tpu.memory_space<vmem>>, vector<8x512xbf16>
    tpu.vector_store %arg10[%c112, %c0_32], %88 {strides = array<i32>} : memref<368x512xbf16, #tpu.memory_space<vmem>>, vector<8x512xbf16>,
    %c511_i32_33 = arith.constant 511 : i32
    %90 = tpu.dynamic_rotate %63 by %c511_i32_33 dim 1 : vector<8x512xf32>, i32 -> vector<8x512xf32>
    %91 = vector.extract_strided_slice %0 {offsets = [5, 0], sizes = [1, 512], strides = [1, 1]} : vector<9x512xf32> to vector<1x512xf32>
    %92 = vector.broadcast %91 : vector<1x512xf32> to vector<8x512xf32>
    %93 = arith.mulf %90, %92 : vector<8x512xf32>
    %94 = arith.truncf %93 : vector<8x512xf32> to vector<8x512xbf16>
    %c120 = arith.constant 120 : index
    %c0_34 = arith.constant 0 : index
    %95 = vector.load %arg10[%c120, %c0_34] : memref<368x512xbf16, #tpu.memory_space<vmem>>, vector<8x512xbf16>
    tpu.vector_store %arg10[%c120, %c0_34], %94 {strides = array<i32>} : memref<368x512xbf16, #tpu.memory_space<vmem>>, vector<8x512xbf16>,
    %c497_i32_35 = arith.constant 497 : i32
    %96 = tpu.dynamic_rotate %63 by %c497_i32_35 dim 1 : vector<8x512xf32>, i32 -> vector<8x512xf32>
    %97 = vector.extract_strided_slice %0 {offsets = [6, 0], sizes = [1, 512], strides = [1, 1]} : vector<9x512xf32> to vector<1x512xf32>
    %98 = vector.broadcast %97 : vector<1x512xf32> to vector<8x512xf32>
    %99 = arith.mulf %96, %98 : vector<8x512xf32>
    %100 = arith.truncf %99 : vector<8x512xf32> to vector<8x512xbf16>
    %c128 = arith.constant 128 : index
    %c0_36 = arith.constant 0 : index
    %101 = vector.load %arg10[%c128, %c0_36] : memref<368x512xbf16, #tpu.memory_space<vmem>>, vector<8x512xbf16>
    tpu.vector_store %arg10[%c128, %c0_36], %100 {strides = array<i32>} : memref<368x512xbf16, #tpu.memory_space<vmem>>, vector<8x512xbf16>,
    %c496_i32_37 = arith.constant 496 : i32
    %102 = tpu.dynamic_rotate %63 by %c496_i32_37 dim 1 : vector<8x512xf32>, i32 -> vector<8x512xf32>
    %103 = vector.extract_strided_slice %0 {offsets = [7, 0], sizes = [1, 512], strides = [1, 1]} : vector<9x512xf32> to vector<1x512xf32>
    %104 = vector.broadcast %103 : vector<1x512xf32> to vector<8x512xf32>
    %105 = arith.mulf %102, %104 : vector<8x512xf32>
    %106 = arith.truncf %105 : vector<8x512xf32> to vector<8x512xbf16>
    %c136 = arith.constant 136 : index
    %c0_38 = arith.constant 0 : index
    %107 = vector.load %arg10[%c136, %c0_38] : memref<368x512xbf16, #tpu.memory_space<vmem>>, vector<8x512xbf16>
    tpu.vector_store %arg10[%c136, %c0_38], %106 {strides = array<i32>} : memref<368x512xbf16, #tpu.memory_space<vmem>>, vector<8x512xbf16>,
    %c495_i32_39 = arith.constant 495 : i32
    %108 = tpu.dynamic_rotate %63 by %c495_i32_39 dim 1 : vector<8x512xf32>, i32 -> vector<8x512xf32>
    %109 = vector.extract_strided_slice %0 {offsets = [8, 0], sizes = [1, 512], strides = [1, 1]} : vector<9x512xf32> to vector<1x512xf32>
    %110 = vector.broadcast %109 : vector<1x512xf32> to vector<8x512xf32>
    %111 = arith.mulf %108, %110 : vector<8x512xf32>
    %112 = arith.truncf %111 : vector<8x512xf32> to vector<8x512xbf16>
    %c144 = arith.constant 144 : index
    %c0_40 = arith.constant 0 : index
    %113 = vector.load %arg10[%c144, %c0_40] : memref<368x512xbf16, #tpu.memory_space<vmem>>, vector<8x512xbf16>
    tpu.vector_store %arg10[%c144, %c0_40], %112 {strides = array<i32>} : memref<368x512xbf16, #tpu.memory_space<vmem>>, vector<8x512xbf16>,
    %c0_41 = arith.constant 0 : index
    %c0_42 = arith.constant 0 : index
    %114 = vector.load %arg4[%c0_41, %c0_42] : memref<8x152xbf16, #tpu.memory_space<vmem>>, vector<8x152xbf16>
    %c0_43 = arith.constant 0 : index
    %c0_44 = arith.constant 0 : index
    %115 = vector.load %arg10[%c0_43, %c0_44] : memref<368x512xbf16, #tpu.memory_space<vmem>>, vector<152x512xbf16>
    %cst_45 = arith.constant dense<0.000000e+00> : vector<8x512xf32>
    %116 = tpu.matmul %114, %115, %cst_45 {dimension_numbers = #tpu.dot_dimension_numbers<[1], [0], [0], [1], [0, 0, 1, 1], [], []>} : vector<8x152xbf16>, vector<152x512xbf16>, vector<8x512xf32> -> vector<8x512xf32>
    %cst_46 = arith.constant 2.000000e-01 : f32
    %117 = vector.broadcast %cst_46 : f32 to vector<8x512xf32>
    %118 = arith.mulf %117, %116 : vector<8x512xf32>
    %119 = arith.maximumf %116, %118 : vector<8x512xf32>
    %c17_i32_47 = arith.constant 17 : i32
    %120 = tpu.dynamic_rotate %119 by %c17_i32_47 dim 1 : vector<8x512xf32>, i32 -> vector<8x512xf32>
    %121 = vector.extract_strided_slice %0 {offsets = [0, 0], sizes = [1, 512], strides = [1, 1]} : vector<9x512xf32> to vector<1x512xf32>
    %122 = vector.broadcast %121 : vector<1x512xf32> to vector<8x512xf32>
    %123 = arith.mulf %120, %122 : vector<8x512xf32>
    %124 = arith.truncf %123 : vector<8x512xf32> to vector<8x512xbf16>
    %c152 = arith.constant 152 : index
    %c0_48 = arith.constant 0 : index
    %125 = vector.load %arg10[%c152, %c0_48] : memref<368x512xbf16, #tpu.memory_space<vmem>>, vector<8x512xbf16>
    tpu.vector_store %arg10[%c152, %c0_48], %124 {strides = array<i32>} : memref<368x512xbf16, #tpu.memory_space<vmem>>, vector<8x512xbf16>,
    %c16_i32_49 = arith.constant 16 : i32
    %126 = tpu.dynamic_rotate %119 by %c16_i32_49 dim 1 : vector<8x512xf32>, i32 -> vector<8x512xf32>
    %127 = vector.extract_strided_slice %0 {offsets = [1, 0], sizes = [1, 512], strides = [1, 1]} : vector<9x512xf32> to vector<1x512xf32>
    %128 = vector.broadcast %127 : vector<1x512xf32> to vector<8x512xf32>
    %129 = arith.mulf %126, %128 : vector<8x512xf32>
    %130 = arith.truncf %129 : vector<8x512xf32> to vector<8x512xbf16>
    %c160 = arith.constant 160 : index
    %c0_50 = arith.constant 0 : index
    %131 = vector.load %arg10[%c160, %c0_50] : memref<368x512xbf16, #tpu.memory_space<vmem>>, vector<8x512xbf16>
    tpu.vector_store %arg10[%c160, %c0_50], %130 {strides = array<i32>} : memref<368x512xbf16, #tpu.memory_space<vmem>>, vector<8x512xbf16>,
    %c15_i32_51 = arith.constant 15 : i32
    %132 = tpu.dynamic_rotate %119 by %c15_i32_51 dim 1 : vector<8x512xf32>, i32 -> vector<8x512xf32>
    %133 = vector.extract_strided_slice %0 {offsets = [2, 0], sizes = [1, 512], strides = [1, 1]} : vector<9x512xf32> to vector<1x512xf32>
    %134 = vector.broadcast %133 : vector<1x512xf32> to vector<8x512xf32>
    %135 = arith.mulf %132, %134 : vector<8x512xf32>
    %136 = arith.truncf %135 : vector<8x512xf32> to vector<8x512xbf16>
    %c168 = arith.constant 168 : index
    %c0_52 = arith.constant 0 : index
    %137 = vector.load %arg10[%c168, %c0_52] : memref<368x512xbf16, #tpu.memory_space<vmem>>, vector<8x512xbf16>
    tpu.vector_store %arg10[%c168, %c0_52], %136 {strides = array<i32>} : memref<368x512xbf16, #tpu.memory_space<vmem>>, vector<8x512xbf16>,
    %c1_i32_53 = arith.constant 1 : i32
    %138 = tpu.dynamic_rotate %119 by %c1_i32_53 dim 1 : vector<8x512xf32>, i32 -> vector<8x512xf32>
    %139 = vector.extract_strided_slice %0 {offsets = [3, 0], sizes = [1, 512], strides = [1, 1]} : vector<9x512xf32> to vector<1x512xf32>
    %140 = vector.broadcast %139 : vector<1x512xf32> to vector<8x512xf32>
    %141 = arith.mulf %138, %140 : vector<8x512xf32>
    %142 = arith.truncf %141 : vector<8x512xf32> to vector<8x512xbf16>
    %c176 = arith.constant 176 : index
    %c0_54 = arith.constant 0 : index
    %143 = vector.load %arg10[%c176, %c0_54] : memref<368x512xbf16, #tpu.memory_space<vmem>>, vector<8x512xbf16>
    tpu.vector_store %arg10[%c176, %c0_54], %142 {strides = array<i32>} : memref<368x512xbf16, #tpu.memory_space<vmem>>, vector<8x512xbf16>,
    %144 = arith.truncf %119 : vector<8x512xf32> to vector<8x512xbf16>
    %c184 = arith.constant 184 : index
    %c0_55 = arith.constant 0 : index
    %145 = vector.load %arg10[%c184, %c0_55] : memref<368x512xbf16, #tpu.memory_space<vmem>>, vector<8x512xbf16>
    tpu.vector_store %arg10[%c184, %c0_55], %144 {strides = array<i32>} : memref<368x512xbf16, #tpu.memory_space<vmem>>, vector<8x512xbf16>,
    %c511_i32_56 = arith.constant 511 : i32
    %146 = tpu.dynamic_rotate %119 by %c511_i32_56 dim 1 : vector<8x512xf32>, i32 -> vector<8x512xf32>
    %147 = vector.extract_strided_slice %0 {offsets = [5, 0], sizes = [1, 512], strides = [1, 1]} : vector<9x512xf32> to vector<1x512xf32>
    %148 = vector.broadcast %147 : vector<1x512xf32> to vector<8x512xf32>
    %149 = arith.mulf %146, %148 : vector<8x512xf32>
    %150 = arith.truncf %149 : vector<8x512xf32> to vector<8x512xbf16>
    %c192 = arith.constant 192 : index
    %c0_57 = arith.constant 0 : index
    %151 = vector.load %arg10[%c192, %c0_57] : memref<368x512xbf16, #tpu.memory_space<vmem>>, vector<8x512xbf16>
    tpu.vector_store %arg10[%c192, %c0_57], %150 {strides = array<i32>} : memref<368x512xbf16, #tpu.memory_space<vmem>>, vector<8x512xbf16>,
    %c497_i32_58 = arith.constant 497 : i32
    %152 = tpu.dynamic_rotate %119 by %c497_i32_58 dim 1 : vector<8x512xf32>, i32 -> vector<8x512xf32>
    %153 = vector.extract_strided_slice %0 {offsets = [6, 0], sizes = [1, 512], strides = [1, 1]} : vector<9x512xf32> to vector<1x512xf32>
    %154 = vector.broadcast %153 : vector<1x512xf32> to vector<8x512xf32>
    %155 = arith.mulf %152, %154 : vector<8x512xf32>
    %156 = arith.truncf %155 : vector<8x512xf32> to vector<8x512xbf16>
    %c200 = arith.constant 200 : index
    %c0_59 = arith.constant 0 : index
    %157 = vector.load %arg10[%c200, %c0_59] : memref<368x512xbf16, #tpu.memory_space<vmem>>, vector<8x512xbf16>
    tpu.vector_store %arg10[%c200, %c0_59], %156 {strides = array<i32>} : memref<368x512xbf16, #tpu.memory_space<vmem>>, vector<8x512xbf16>,
    %c496_i32_60 = arith.constant 496 : i32
    %158 = tpu.dynamic_rotate %119 by %c496_i32_60 dim 1 : vector<8x512xf32>, i32 -> vector<8x512xf32>
    %159 = vector.extract_strided_slice %0 {offsets = [7, 0], sizes = [1, 512], strides = [1, 1]} : vector<9x512xf32> to vector<1x512xf32>
    %160 = vector.broadcast %159 : vector<1x512xf32> to vector<8x512xf32>
    %161 = arith.mulf %158, %160 : vector<8x512xf32>
    %162 = arith.truncf %161 : vector<8x512xf32> to vector<8x512xbf16>
    %c208 = arith.constant 208 : index
    %c0_61 = arith.constant 0 : index
    %163 = vector.load %arg10[%c208, %c0_61] : memref<368x512xbf16, #tpu.memory_space<vmem>>, vector<8x512xbf16>
    tpu.vector_store %arg10[%c208, %c0_61], %162 {strides = array<i32>} : memref<368x512xbf16, #tpu.memory_space<vmem>>, vector<8x512xbf16>,
    %c495_i32_62 = arith.constant 495 : i32
    %164 = tpu.dynamic_rotate %119 by %c495_i32_62 dim 1 : vector<8x512xf32>, i32 -> vector<8x512xf32>
    %165 = vector.extract_strided_slice %0 {offsets = [8, 0], sizes = [1, 512], strides = [1, 1]} : vector<9x512xf32> to vector<1x512xf32>
    %166 = vector.broadcast %165 : vector<1x512xf32> to vector<8x512xf32>
    %167 = arith.mulf %164, %166 : vector<8x512xf32>
    %168 = arith.truncf %167 : vector<8x512xf32> to vector<8x512xbf16>
    %c216 = arith.constant 216 : index
    %c0_63 = arith.constant 0 : index
    %169 = vector.load %arg10[%c216, %c0_63] : memref<368x512xbf16, #tpu.memory_space<vmem>>, vector<8x512xbf16>
    tpu.vector_store %arg10[%c216, %c0_63], %168 {strides = array<i32>} : memref<368x512xbf16, #tpu.memory_space<vmem>>, vector<8x512xbf16>,
    %c0_64 = arith.constant 0 : index
    %c0_65 = arith.constant 0 : index
    %170 = vector.load %arg5[%c0_64, %c0_65] : memref<8x224xbf16, #tpu.memory_space<vmem>>, vector<8x224xbf16>
    %c0_66 = arith.constant 0 : index
    %c0_67 = arith.constant 0 : index
    %171 = vector.load %arg10[%c0_66, %c0_67] : memref<368x512xbf16, #tpu.memory_space<vmem>>, vector<224x512xbf16>
    %cst_68 = arith.constant dense<0.000000e+00> : vector<8x512xf32>
    %172 = tpu.matmul %170, %171, %cst_68 {dimension_numbers = #tpu.dot_dimension_numbers<[1], [0], [0], [1], [0, 0, 1, 1], [], []>} : vector<8x224xbf16>, vector<224x512xbf16>, vector<8x512xf32> -> vector<8x512xf32>
    %cst_69 = arith.constant 2.000000e-01 : f32
    %173 = vector.broadcast %cst_69 : f32 to vector<8x512xf32>
    %174 = arith.mulf %173, %172 : vector<8x512xf32>
    %175 = arith.maximumf %172, %174 : vector<8x512xf32>
    %c17_i32_70 = arith.constant 17 : i32
    %176 = tpu.dynamic_rotate %175 by %c17_i32_70 dim 1 : vector<8x512xf32>, i32 -> vector<8x512xf32>
    %177 = vector.extract_strided_slice %0 {offsets = [0, 0], sizes = [1, 512], strides = [1, 1]} : vector<9x512xf32> to vector<1x512xf32>
    %178 = vector.broadcast %177 : vector<1x512xf32> to vector<8x512xf32>
    %179 = arith.mulf %176, %178 : vector<8x512xf32>
    %180 = arith.truncf %179 : vector<8x512xf32> to vector<8x512xbf16>
    %c224 = arith.constant 224 : index
    %c0_71 = arith.constant 0 : index
    %181 = vector.load %arg10[%c224, %c0_71] : memref<368x512xbf16, #tpu.memory_space<vmem>>, vector<8x512xbf16>
    tpu.vector_store %arg10[%c224, %c0_71], %180 {strides = array<i32>} : memref<368x512xbf16, #tpu.memory_space<vmem>>, vector<8x512xbf16>,
    %c16_i32_72 = arith.constant 16 : i32
    %182 = tpu.dynamic_rotate %175 by %c16_i32_72 dim 1 : vector<8x512xf32>, i32 -> vector<8x512xf32>
    %183 = vector.extract_strided_slice %0 {offsets = [1, 0], sizes = [1, 512], strides = [1, 1]} : vector<9x512xf32> to vector<1x512xf32>
    %184 = vector.broadcast %183 : vector<1x512xf32> to vector<8x512xf32>
    %185 = arith.mulf %182, %184 : vector<8x512xf32>
    %186 = arith.truncf %185 : vector<8x512xf32> to vector<8x512xbf16>
    %c232 = arith.constant 232 : index
    %c0_73 = arith.constant 0 : index
    %187 = vector.load %arg10[%c232, %c0_73] : memref<368x512xbf16, #tpu.memory_space<vmem>>, vector<8x512xbf16>
    tpu.vector_store %arg10[%c232, %c0_73], %186 {strides = array<i32>} : memref<368x512xbf16, #tpu.memory_space<vmem>>, vector<8x512xbf16>,
    %c15_i32_74 = arith.constant 15 : i32
    %188 = tpu.dynamic_rotate %175 by %c15_i32_74 dim 1 : vector<8x512xf32>, i32 -> vector<8x512xf32>
    %189 = vector.extract_strided_slice %0 {offsets = [2, 0], sizes = [1, 512], strides = [1, 1]} : vector<9x512xf32> to vector<1x512xf32>
    %190 = vector.broadcast %189 : vector<1x512xf32> to vector<8x512xf32>
    %191 = arith.mulf %188, %190 : vector<8x512xf32>
    %192 = arith.truncf %191 : vector<8x512xf32> to vector<8x512xbf16>
    %c240 = arith.constant 240 : index
    %c0_75 = arith.constant 0 : index
    %193 = vector.load %arg10[%c240, %c0_75] : memref<368x512xbf16, #tpu.memory_space<vmem>>, vector<8x512xbf16>
    tpu.vector_store %arg10[%c240, %c0_75], %192 {strides = array<i32>} : memref<368x512xbf16, #tpu.memory_space<vmem>>, vector<8x512xbf16>,
    %c1_i32_76 = arith.constant 1 : i32
    %194 = tpu.dynamic_rotate %175 by %c1_i32_76 dim 1 : vector<8x512xf32>, i32 -> vector<8x512xf32>
    %195 = vector.extract_strided_slice %0 {offsets = [3, 0], sizes = [1, 512], strides = [1, 1]} : vector<9x512xf32> to vector<1x512xf32>
    %196 = vector.broadcast %195 : vector<1x512xf32> to vector<8x512xf32>
    %197 = arith.mulf %194, %196 : vector<8x512xf32>
    %198 = arith.truncf %197 : vector<8x512xf32> to vector<8x512xbf16>
    %c248 = arith.constant 248 : index
    %c0_77 = arith.constant 0 : index
    %199 = vector.load %arg10[%c248, %c0_77] : memref<368x512xbf16, #tpu.memory_space<vmem>>, vector<8x512xbf16>
    tpu.vector_store %arg10[%c248, %c0_77], %198 {strides = array<i32>} : memref<368x512xbf16, #tpu.memory_space<vmem>>, vector<8x512xbf16>,
    %200 = arith.truncf %175 : vector<8x512xf32> to vector<8x512xbf16>
    %c256 = arith.constant 256 : index
    %c0_78 = arith.constant 0 : index
    %201 = vector.load %arg10[%c256, %c0_78] : memref<368x512xbf16, #tpu.memory_space<vmem>>, vector<8x512xbf16>
    tpu.vector_store %arg10[%c256, %c0_78], %200 {strides = array<i32>} : memref<368x512xbf16, #tpu.memory_space<vmem>>, vector<8x512xbf16>,
    %c511_i32_79 = arith.constant 511 : i32
    %202 = tpu.dynamic_rotate %175 by %c511_i32_79 dim 1 : vector<8x512xf32>, i32 -> vector<8x512xf32>
    %203 = vector.extract_strided_slice %0 {offsets = [5, 0], sizes = [1, 512], strides = [1, 1]} : vector<9x512xf32> to vector<1x512xf32>
    %204 = vector.broadcast %203 : vector<1x512xf32> to vector<8x512xf32>
    %205 = arith.mulf %202, %204 : vector<8x512xf32>
    %206 = arith.truncf %205 : vector<8x512xf32> to vector<8x512xbf16>
    %c264 = arith.constant 264 : index
    %c0_80 = arith.constant 0 : index
    %207 = vector.load %arg10[%c264, %c0_80] : memref<368x512xbf16, #tpu.memory_space<vmem>>, vector<8x512xbf16>
    tpu.vector_store %arg10[%c264, %c0_80], %206 {strides = array<i32>} : memref<368x512xbf16, #tpu.memory_space<vmem>>, vector<8x512xbf16>,
    %c497_i32_81 = arith.constant 497 : i32
    %208 = tpu.dynamic_rotate %175 by %c497_i32_81 dim 1 : vector<8x512xf32>, i32 -> vector<8x512xf32>
    %209 = vector.extract_strided_slice %0 {offsets = [6, 0], sizes = [1, 512], strides = [1, 1]} : vector<9x512xf32> to vector<1x512xf32>
    %210 = vector.broadcast %209 : vector<1x512xf32> to vector<8x512xf32>
    %211 = arith.mulf %208, %210 : vector<8x512xf32>
    %212 = arith.truncf %211 : vector<8x512xf32> to vector<8x512xbf16>
    %c272 = arith.constant 272 : index
    %c0_82 = arith.constant 0 : index
    %213 = vector.load %arg10[%c272, %c0_82] : memref<368x512xbf16, #tpu.memory_space<vmem>>, vector<8x512xbf16>
    tpu.vector_store %arg10[%c272, %c0_82], %212 {strides = array<i32>} : memref<368x512xbf16, #tpu.memory_space<vmem>>, vector<8x512xbf16>,
    %c496_i32_83 = arith.constant 496 : i32
    %214 = tpu.dynamic_rotate %175 by %c496_i32_83 dim 1 : vector<8x512xf32>, i32 -> vector<8x512xf32>
    %215 = vector.extract_strided_slice %0 {offsets = [7, 0], sizes = [1, 512], strides = [1, 1]} : vector<9x512xf32> to vector<1x512xf32>
    %216 = vector.broadcast %215 : vector<1x512xf32> to vector<8x512xf32>
    %217 = arith.mulf %214, %216 : vector<8x512xf32>
    %218 = arith.truncf %217 : vector<8x512xf32> to vector<8x512xbf16>
    %c280 = arith.constant 280 : index
    %c0_84 = arith.constant 0 : index
    %219 = vector.load %arg10[%c280, %c0_84] : memref<368x512xbf16, #tpu.memory_space<vmem>>, vector<8x512xbf16>
    tpu.vector_store %arg10[%c280, %c0_84], %218 {strides = array<i32>} : memref<368x512xbf16, #tpu.memory_space<vmem>>, vector<8x512xbf16>,
    %c495_i32_85 = arith.constant 495 : i32
    %220 = tpu.dynamic_rotate %175 by %c495_i32_85 dim 1 : vector<8x512xf32>, i32 -> vector<8x512xf32>
    %221 = vector.extract_strided_slice %0 {offsets = [8, 0], sizes = [1, 512], strides = [1, 1]} : vector<9x512xf32> to vector<1x512xf32>
    %222 = vector.broadcast %221 : vector<1x512xf32> to vector<8x512xf32>
    %223 = arith.mulf %220, %222 : vector<8x512xf32>
    %224 = arith.truncf %223 : vector<8x512xf32> to vector<8x512xbf16>
    %c288 = arith.constant 288 : index
    %c0_86 = arith.constant 0 : index
    %225 = vector.load %arg10[%c288, %c0_86] : memref<368x512xbf16, #tpu.memory_space<vmem>>, vector<8x512xbf16>
    tpu.vector_store %arg10[%c288, %c0_86], %224 {strides = array<i32>} : memref<368x512xbf16, #tpu.memory_space<vmem>>, vector<8x512xbf16>,
    %c0_87 = arith.constant 0 : index
    %c0_88 = arith.constant 0 : index
    %226 = vector.load %arg6[%c0_87, %c0_88] : memref<8x296xbf16, #tpu.memory_space<vmem>>, vector<8x296xbf16>
    %c0_89 = arith.constant 0 : index
    %c0_90 = arith.constant 0 : index
    %227 = vector.load %arg10[%c0_89, %c0_90] : memref<368x512xbf16, #tpu.memory_space<vmem>>, vector<296x512xbf16>
    %cst_91 = arith.constant dense<0.000000e+00> : vector<8x512xf32>
    %228 = tpu.matmul %226, %227, %cst_91 {dimension_numbers = #tpu.dot_dimension_numbers<[1], [0], [0], [1], [0, 0, 1, 1], [], []>} : vector<8x296xbf16>, vector<296x512xbf16>, vector<8x512xf32> -> vector<8x512xf32>
    %cst_92 = arith.constant 2.000000e-01 : f32
    %229 = vector.broadcast %cst_92 : f32 to vector<8x512xf32>
    %230 = arith.mulf %229, %228 : vector<8x512xf32>
    %231 = arith.maximumf %228, %230 : vector<8x512xf32>
    %c17_i32_93 = arith.constant 17 : i32
    %232 = tpu.dynamic_rotate %231 by %c17_i32_93 dim 1 : vector<8x512xf32>, i32 -> vector<8x512xf32>
    %233 = vector.extract_strided_slice %0 {offsets = [0, 0], sizes = [1, 512], strides = [1, 1]} : vector<9x512xf32> to vector<1x512xf32>
    %234 = vector.broadcast %233 : vector<1x512xf32> to vector<8x512xf32>
    %235 = arith.mulf %232, %234 : vector<8x512xf32>
    %236 = arith.truncf %235 : vector<8x512xf32> to vector<8x512xbf16>
    %c296 = arith.constant 296 : index
    %c0_94 = arith.constant 0 : index
    %237 = vector.load %arg10[%c296, %c0_94] : memref<368x512xbf16, #tpu.memory_space<vmem>>, vector<8x512xbf16>
    tpu.vector_store %arg10[%c296, %c0_94], %236 {strides = array<i32>} : memref<368x512xbf16, #tpu.memory_space<vmem>>, vector<8x512xbf16>,
    %c16_i32_95 = arith.constant 16 : i32
    %238 = tpu.dynamic_rotate %231 by %c16_i32_95 dim 1 : vector<8x512xf32>, i32 -> vector<8x512xf32>
    %239 = vector.extract_strided_slice %0 {offsets = [1, 0], sizes = [1, 512], strides = [1, 1]} : vector<9x512xf32> to vector<1x512xf32>
    %240 = vector.broadcast %239 : vector<1x512xf32> to vector<8x512xf32>
    %241 = arith.mulf %238, %240 : vector<8x512xf32>
    %242 = arith.truncf %241 : vector<8x512xf32> to vector<8x512xbf16>
    %c304 = arith.constant 304 : index
    %c0_96 = arith.constant 0 : index
    %243 = vector.load %arg10[%c304, %c0_96] : memref<368x512xbf16, #tpu.memory_space<vmem>>, vector<8x512xbf16>
    tpu.vector_store %arg10[%c304, %c0_96], %242 {strides = array<i32>} : memref<368x512xbf16, #tpu.memory_space<vmem>>, vector<8x512xbf16>,
    %c15_i32_97 = arith.constant 15 : i32
    %244 = tpu.dynamic_rotate %231 by %c15_i32_97 dim 1 : vector<8x512xf32>, i32 -> vector<8x512xf32>
    %245 = vector.extract_strided_slice %0 {offsets = [2, 0], sizes = [1, 512], strides = [1, 1]} : vector<9x512xf32> to vector<1x512xf32>
    %246 = vector.broadcast %245 : vector<1x512xf32> to vector<8x512xf32>
    %247 = arith.mulf %244, %246 : vector<8x512xf32>
    %248 = arith.truncf %247 : vector<8x512xf32> to vector<8x512xbf16>
    %c312 = arith.constant 312 : index
    %c0_98 = arith.constant 0 : index
    %249 = vector.load %arg10[%c312, %c0_98] : memref<368x512xbf16, #tpu.memory_space<vmem>>, vector<8x512xbf16>
    tpu.vector_store %arg10[%c312, %c0_98], %248 {strides = array<i32>} : memref<368x512xbf16, #tpu.memory_space<vmem>>, vector<8x512xbf16>,
    %c1_i32_99 = arith.constant 1 : i32
    %250 = tpu.dynamic_rotate %231 by %c1_i32_99 dim 1 : vector<8x512xf32>, i32 -> vector<8x512xf32>
    %251 = vector.extract_strided_slice %0 {offsets = [3, 0], sizes = [1, 512], strides = [1, 1]} : vector<9x512xf32> to vector<1x512xf32>
    %252 = vector.broadcast %251 : vector<1x512xf32> to vector<8x512xf32>
    %253 = arith.mulf %250, %252 : vector<8x512xf32>
    %254 = arith.truncf %253 : vector<8x512xf32> to vector<8x512xbf16>
    %c320 = arith.constant 320 : index
    %c0_100 = arith.constant 0 : index
    %255 = vector.load %arg10[%c320, %c0_100] : memref<368x512xbf16, #tpu.memory_space<vmem>>, vector<8x512xbf16>
    tpu.vector_store %arg10[%c320, %c0_100], %254 {strides = array<i32>} : memref<368x512xbf16, #tpu.memory_space<vmem>>, vector<8x512xbf16>,
    %256 = arith.truncf %231 : vector<8x512xf32> to vector<8x512xbf16>
    %c328 = arith.constant 328 : index
    %c0_101 = arith.constant 0 : index
    %257 = vector.load %arg10[%c328, %c0_101] : memref<368x512xbf16, #tpu.memory_space<vmem>>, vector<8x512xbf16>
    tpu.vector_store %arg10[%c328, %c0_101], %256 {strides = array<i32>} : memref<368x512xbf16, #tpu.memory_space<vmem>>, vector<8x512xbf16>,
    %c511_i32_102 = arith.constant 511 : i32
    %258 = tpu.dynamic_rotate %231 by %c511_i32_102 dim 1 : vector<8x512xf32>, i32 -> vector<8x512xf32>
    %259 = vector.extract_strided_slice %0 {offsets = [5, 0], sizes = [1, 512], strides = [1, 1]} : vector<9x512xf32> to vector<1x512xf32>
    %260 = vector.broadcast %259 : vector<1x512xf32> to vector<8x512xf32>
    %261 = arith.mulf %258, %260 : vector<8x512xf32>
    %262 = arith.truncf %261 : vector<8x512xf32> to vector<8x512xbf16>
    %c336 = arith.constant 336 : index
    %c0_103 = arith.constant 0 : index
    %263 = vector.load %arg10[%c336, %c0_103] : memref<368x512xbf16, #tpu.memory_space<vmem>>, vector<8x512xbf16>
    tpu.vector_store %arg10[%c336, %c0_103], %262 {strides = array<i32>} : memref<368x512xbf16, #tpu.memory_space<vmem>>, vector<8x512xbf16>,
    %c497_i32_104 = arith.constant 497 : i32
    %264 = tpu.dynamic_rotate %231 by %c497_i32_104 dim 1 : vector<8x512xf32>, i32 -> vector<8x512xf32>
    %265 = vector.extract_strided_slice %0 {offsets = [6, 0], sizes = [1, 512], strides = [1, 1]} : vector<9x512xf32> to vector<1x512xf32>
    %266 = vector.broadcast %265 : vector<1x512xf32> to vector<8x512xf32>
    %267 = arith.mulf %264, %266 : vector<8x512xf32>
    %268 = arith.truncf %267 : vector<8x512xf32> to vector<8x512xbf16>
    %c344 = arith.constant 344 : index
    %c0_105 = arith.constant 0 : index
    %269 = vector.load %arg10[%c344, %c0_105] : memref<368x512xbf16, #tpu.memory_space<vmem>>, vector<8x512xbf16>
    tpu.vector_store %arg10[%c344, %c0_105], %268 {strides = array<i32>} : memref<368x512xbf16, #tpu.memory_space<vmem>>, vector<8x512xbf16>,
    %c496_i32_106 = arith.constant 496 : i32
    %270 = tpu.dynamic_rotate %231 by %c496_i32_106 dim 1 : vector<8x512xf32>, i32 -> vector<8x512xf32>
    %271 = vector.extract_strided_slice %0 {offsets = [7, 0], sizes = [1, 512], strides = [1, 1]} : vector<9x512xf32> to vector<1x512xf32>
    %272 = vector.broadcast %271 : vector<1x512xf32> to vector<8x512xf32>
    %273 = arith.mulf %270, %272 : vector<8x512xf32>
    %274 = arith.truncf %273 : vector<8x512xf32> to vector<8x512xbf16>
    %c352 = arith.constant 352 : index
    %c0_107 = arith.constant 0 : index
    %275 = vector.load %arg10[%c352, %c0_107] : memref<368x512xbf16, #tpu.memory_space<vmem>>, vector<8x512xbf16>
    tpu.vector_store %arg10[%c352, %c0_107], %274 {strides = array<i32>} : memref<368x512xbf16, #tpu.memory_space<vmem>>, vector<8x512xbf16>,
    %c495_i32_108 = arith.constant 495 : i32
    %276 = tpu.dynamic_rotate %231 by %c495_i32_108 dim 1 : vector<8x512xf32>, i32 -> vector<8x512xf32>
    %277 = vector.extract_strided_slice %0 {offsets = [8, 0], sizes = [1, 512], strides = [1, 1]} : vector<9x512xf32> to vector<1x512xf32>
    %278 = vector.broadcast %277 : vector<1x512xf32> to vector<8x512xf32>
    %279 = arith.mulf %276, %278 : vector<8x512xf32>
    %280 = arith.truncf %279 : vector<8x512xf32> to vector<8x512xbf16>
    %c360 = arith.constant 360 : index
    %c0_109 = arith.constant 0 : index
    %281 = vector.load %arg10[%c360, %c0_109] : memref<368x512xbf16, #tpu.memory_space<vmem>>, vector<8x512xbf16>
    tpu.vector_store %arg10[%c360, %c0_109], %280 {strides = array<i32>} : memref<368x512xbf16, #tpu.memory_space<vmem>>, vector<8x512xbf16>,
    %c0_110 = arith.constant 0 : index
    %c0_111 = arith.constant 0 : index
    %282 = vector.load %arg7[%c0_110, %c0_111] : memref<8x368xbf16, #tpu.memory_space<vmem>>, vector<8x368xbf16>
    %c0_112 = arith.constant 0 : index
    %c0_113 = arith.constant 0 : index
    %283 = vector.load %arg10[%c0_112, %c0_113] : memref<368x512xbf16, #tpu.memory_space<vmem>>, vector<368x512xbf16>
    %cst_114 = arith.constant dense<0.000000e+00> : vector<8x512xf32>
    %284 = tpu.matmul %282, %283, %cst_114 {dimension_numbers = #tpu.dot_dimension_numbers<[1], [0], [0], [1], [0, 0, 1, 1], [], []>} : vector<8x368xbf16>, vector<368x512xbf16>, vector<8x512xf32> -> vector<8x512xf32>
    %cst_115 = arith.constant 2.000000e-01 : f32
    %285 = vector.broadcast %cst_115 : f32 to vector<8x512xf32>
    %286 = arith.mulf %285, %284 : vector<8x512xf32>
    %287 = arith.maximumf %284, %286 : vector<8x512xf32>
    %288 = vector.extract_strided_slice %287 {offsets = [0, 0], sizes = [8, 256], strides = [1, 1]} : vector<8x512xf32> to vector<8x256xf32>
    %c17_i32_116 = arith.constant 17 : i32
    %289 = tpu.dynamic_rotate %288 by %c17_i32_116 dim 1 : vector<8x256xf32>, i32 -> vector<8x256xf32>
    %290 = vector.extract_strided_slice %1 {offsets = [0, 0], sizes = [1, 256], strides = [1, 1]} : vector<9x256xf32> to vector<1x256xf32>
    %291 = vector.broadcast %290 : vector<1x256xf32> to vector<8x256xf32>
    %292 = arith.mulf %289, %291 : vector<8x256xf32>
    %293 = arith.truncf %292 : vector<8x256xf32> to vector<8x256xbf16>
    %c8_117 = arith.constant 8 : index
    %c0_118 = arith.constant 0 : index
    %294 = vector.load %arg11[%c8_117, %c0_118] : memref<152x256xbf16, #tpu.memory_space<vmem>>, vector<8x256xbf16>
    tpu.vector_store %arg11[%c8_117, %c0_118], %293 {strides = array<i32>} : memref<152x256xbf16, #tpu.memory_space<vmem>>, vector<8x256xbf16>,
    %c16_i32_119 = arith.constant 16 : i32
    %295 = tpu.dynamic_rotate %288 by %c16_i32_119 dim 1 : vector<8x256xf32>, i32 -> vector<8x256xf32>
    %296 = vector.extract_strided_slice %1 {offsets = [1, 0], sizes = [1, 256], strides = [1, 1]} : vector<9x256xf32> to vector<1x256xf32>
    %297 = vector.broadcast %296 : vector<1x256xf32> to vector<8x256xf32>
    %298 = arith.mulf %295, %297 : vector<8x256xf32>
    %299 = arith.truncf %298 : vector<8x256xf32> to vector<8x256xbf16>
    %c16_120 = arith.constant 16 : index
    %c0_121 = arith.constant 0 : index
    %300 = vector.load %arg11[%c16_120, %c0_121] : memref<152x256xbf16, #tpu.memory_space<vmem>>, vector<8x256xbf16>
    tpu.vector_store %arg11[%c16_120, %c0_121], %299 {strides = array<i32>} : memref<152x256xbf16, #tpu.memory_space<vmem>>, vector<8x256xbf16>,
    %c15_i32_122 = arith.constant 15 : i32
    %301 = tpu.dynamic_rotate %288 by %c15_i32_122 dim 1 : vector<8x256xf32>, i32 -> vector<8x256xf32>
    %302 = vector.extract_strided_slice %1 {offsets = [2, 0], sizes = [1, 256], strides = [1, 1]} : vector<9x256xf32> to vector<1x256xf32>
    %303 = vector.broadcast %302 : vector<1x256xf32> to vector<8x256xf32>
    %304 = arith.mulf %301, %303 : vector<8x256xf32>
    %305 = arith.truncf %304 : vector<8x256xf32> to vector<8x256xbf16>
    %c24_123 = arith.constant 24 : index
    %c0_124 = arith.constant 0 : index
    %306 = vector.load %arg11[%c24_123, %c0_124] : memref<152x256xbf16, #tpu.memory_space<vmem>>, vector<8x256xbf16>
    tpu.vector_store %arg11[%c24_123, %c0_124], %305 {strides = array<i32>} : memref<152x256xbf16, #tpu.memory_space<vmem>>, vector<8x256xbf16>,
    %c1_i32_125 = arith.constant 1 : i32
    %307 = tpu.dynamic_rotate %288 by %c1_i32_125 dim 1 : vector<8x256xf32>, i32 -> vector<8x256xf32>
    %308 = vector.extract_strided_slice %1 {offsets = [3, 0], sizes = [1, 256], strides = [1, 1]} : vector<9x256xf32> to vector<1x256xf32>
    %309 = vector.broadcast %308 : vector<1x256xf32> to vector<8x256xf32>
    %310 = arith.mulf %307, %309 : vector<8x256xf32>
    %311 = arith.truncf %310 : vector<8x256xf32> to vector<8x256xbf16>
    %c32_126 = arith.constant 32 : index
    %c0_127 = arith.constant 0 : index
    %312 = vector.load %arg11[%c32_126, %c0_127] : memref<152x256xbf16, #tpu.memory_space<vmem>>, vector<8x256xbf16>
    tpu.vector_store %arg11[%c32_126, %c0_127], %311 {strides = array<i32>} : memref<152x256xbf16, #tpu.memory_space<vmem>>, vector<8x256xbf16>,
    %313 = arith.truncf %288 : vector<8x256xf32> to vector<8x256xbf16>
    %c40_128 = arith.constant 40 : index
    %c0_129 = arith.constant 0 : index
    %314 = vector.load %arg11[%c40_128, %c0_129] : memref<152x256xbf16, #tpu.memory_space<vmem>>, vector<8x256xbf16>
    tpu.vector_store %arg11[%c40_128, %c0_129], %313 {strides = array<i32>} : memref<152x256xbf16, #tpu.memory_space<vmem>>, vector<8x256xbf16>,
    %c255_i32 = arith.constant 255 : i32
    %315 = tpu.dynamic_rotate %288 by %c255_i32 dim 1 : vector<8x256xf32>, i32 -> vector<8x256xf32>
    %316 = vector.extract_strided_slice %1 {offsets = [5, 0], sizes = [1, 256], strides = [1, 1]} : vector<9x256xf32> to vector<1x256xf32>
    %317 = vector.broadcast %316 : vector<1x256xf32> to vector<8x256xf32>
    %318 = arith.mulf %315, %317 : vector<8x256xf32>
    %319 = arith.truncf %318 : vector<8x256xf32> to vector<8x256xbf16>
    %c48_130 = arith.constant 48 : index
    %c0_131 = arith.constant 0 : index
    %320 = vector.load %arg11[%c48_130, %c0_131] : memref<152x256xbf16, #tpu.memory_space<vmem>>, vector<8x256xbf16>
    tpu.vector_store %arg11[%c48_130, %c0_131], %319 {strides = array<i32>} : memref<152x256xbf16, #tpu.memory_space<vmem>>, vector<8x256xbf16>,
    %c241_i32 = arith.constant 241 : i32
    %321 = tpu.dynamic_rotate %288 by %c241_i32 dim 1 : vector<8x256xf32>, i32 -> vector<8x256xf32>
    %322 = vector.extract_strided_slice %1 {offsets = [6, 0], sizes = [1, 256], strides = [1, 1]} : vector<9x256xf32> to vector<1x256xf32>
    %323 = vector.broadcast %322 : vector<1x256xf32> to vector<8x256xf32>
    %324 = arith.mulf %321, %323 : vector<8x256xf32>
    %325 = arith.truncf %324 : vector<8x256xf32> to vector<8x256xbf16>
    %c56_132 = arith.constant 56 : index
    %c0_133 = arith.constant 0 : index
    %326 = vector.load %arg11[%c56_132, %c0_133] : memref<152x256xbf16, #tpu.memory_space<vmem>>, vector<8x256xbf16>
    tpu.vector_store %arg11[%c56_132, %c0_133], %325 {strides = array<i32>} : memref<152x256xbf16, #tpu.memory_space<vmem>>, vector<8x256xbf16>,
    %c240_i32 = arith.constant 240 : i32
    %327 = tpu.dynamic_rotate %288 by %c240_i32 dim 1 : vector<8x256xf32>, i32 -> vector<8x256xf32>
    %328 = vector.extract_strided_slice %1 {offsets = [7, 0], sizes = [1, 256], strides = [1, 1]} : vector<9x256xf32> to vector<1x256xf32>
    %329 = vector.broadcast %328 : vector<1x256xf32> to vector<8x256xf32>
    %330 = arith.mulf %327, %329 : vector<8x256xf32>
    %331 = arith.truncf %330 : vector<8x256xf32> to vector<8x256xbf16>
    %c64_134 = arith.constant 64 : index
    %c0_135 = arith.constant 0 : index
    %332 = vector.load %arg11[%c64_134, %c0_135] : memref<152x256xbf16, #tpu.memory_space<vmem>>, vector<8x256xbf16>
    tpu.vector_store %arg11[%c64_134, %c0_135], %331 {strides = array<i32>} : memref<152x256xbf16, #tpu.memory_space<vmem>>, vector<8x256xbf16>,
    %c239_i32 = arith.constant 239 : i32
    %333 = tpu.dynamic_rotate %288 by %c239_i32 dim 1 : vector<8x256xf32>, i32 -> vector<8x256xf32>
    %334 = vector.extract_strided_slice %1 {offsets = [8, 0], sizes = [1, 256], strides = [1, 1]} : vector<9x256xf32> to vector<1x256xf32>
    %335 = vector.broadcast %334 : vector<1x256xf32> to vector<8x256xf32>
    %336 = arith.mulf %333, %335 : vector<8x256xf32>
    %337 = arith.truncf %336 : vector<8x256xf32> to vector<8x256xbf16>
    %c72_136 = arith.constant 72 : index
    %c0_137 = arith.constant 0 : index
    %338 = vector.load %arg11[%c72_136, %c0_137] : memref<152x256xbf16, #tpu.memory_space<vmem>>, vector<8x256xbf16>
    tpu.vector_store %arg11[%c72_136, %c0_137], %337 {strides = array<i32>} : memref<152x256xbf16, #tpu.memory_space<vmem>>, vector<8x256xbf16>,
    %339 = vector.extract_strided_slice %287 {offsets = [0, 256], sizes = [8, 256], strides = [1, 1]} : vector<8x512xf32> to vector<8x256xf32>
    %c17_i32_138 = arith.constant 17 : i32
    %340 = tpu.dynamic_rotate %339 by %c17_i32_138 dim 1 : vector<8x256xf32>, i32 -> vector<8x256xf32>
    %341 = vector.extract_strided_slice %1 {offsets = [0, 0], sizes = [1, 256], strides = [1, 1]} : vector<9x256xf32> to vector<1x256xf32>
    %342 = vector.broadcast %341 : vector<1x256xf32> to vector<8x256xf32>
    %343 = arith.mulf %340, %342 : vector<8x256xf32>
    %344 = arith.truncf %343 : vector<8x256xf32> to vector<8x256xbf16>
    %c80_139 = arith.constant 80 : index
    %c0_140 = arith.constant 0 : index
    %345 = vector.load %arg11[%c80_139, %c0_140] : memref<152x256xbf16, #tpu.memory_space<vmem>>, vector<8x256xbf16>
    tpu.vector_store %arg11[%c80_139, %c0_140], %344 {strides = array<i32>} : memref<152x256xbf16, #tpu.memory_space<vmem>>, vector<8x256xbf16>,
    %c16_i32_141 = arith.constant 16 : i32
    %346 = tpu.dynamic_rotate %339 by %c16_i32_141 dim 1 : vector<8x256xf32>, i32 -> vector<8x256xf32>
    %347 = vector.extract_strided_slice %1 {offsets = [1, 0], sizes = [1, 256], strides = [1, 1]} : vector<9x256xf32> to vector<1x256xf32>
    %348 = vector.broadcast %347 : vector<1x256xf32> to vector<8x256xf32>
    %349 = arith.mulf %346, %348 : vector<8x256xf32>
    %350 = arith.truncf %349 : vector<8x256xf32> to vector<8x256xbf16>
    %c88_142 = arith.constant 88 : index
    %c0_143 = arith.constant 0 : index
    %351 = vector.load %arg11[%c88_142, %c0_143] : memref<152x256xbf16, #tpu.memory_space<vmem>>, vector<8x256xbf16>
    tpu.vector_store %arg11[%c88_142, %c0_143], %350 {strides = array<i32>} : memref<152x256xbf16, #tpu.memory_space<vmem>>, vector<8x256xbf16>,
    %c15_i32_144 = arith.constant 15 : i32
    %352 = tpu.dynamic_rotate %339 by %c15_i32_144 dim 1 : vector<8x256xf32>, i32 -> vector<8x256xf32>
    %353 = vector.extract_strided_slice %1 {offsets = [2, 0], sizes = [1, 256], strides = [1, 1]} : vector<9x256xf32> to vector<1x256xf32>
    %354 = vector.broadcast %353 : vector<1x256xf32> to vector<8x256xf32>
    %355 = arith.mulf %352, %354 : vector<8x256xf32>
    %356 = arith.truncf %355 : vector<8x256xf32> to vector<8x256xbf16>
    %c96_145 = arith.constant 96 : index
    %c0_146 = arith.constant 0 : index
    %357 = vector.load %arg11[%c96_145, %c0_146] : memref<152x256xbf16, #tpu.memory_space<vmem>>, vector<8x256xbf16>
    tpu.vector_store %arg11[%c96_145, %c0_146], %356 {strides = array<i32>} : memref<152x256xbf16, #tpu.memory_space<vmem>>, vector<8x256xbf16>,
    %c1_i32_147 = arith.constant 1 : i32
    %358 = tpu.dynamic_rotate %339 by %c1_i32_147 dim 1 : vector<8x256xf32>, i32 -> vector<8x256xf32>
    %359 = vector.extract_strided_slice %1 {offsets = [3, 0], sizes = [1, 256], strides = [1, 1]} : vector<9x256xf32> to vector<1x256xf32>
    %360 = vector.broadcast %359 : vector<1x256xf32> to vector<8x256xf32>
    %361 = arith.mulf %358, %360 : vector<8x256xf32>
    %362 = arith.truncf %361 : vector<8x256xf32> to vector<8x256xbf16>
    %c104_148 = arith.constant 104 : index
    %c0_149 = arith.constant 0 : index
    %363 = vector.load %arg11[%c104_148, %c0_149] : memref<152x256xbf16, #tpu.memory_space<vmem>>, vector<8x256xbf16>
    tpu.vector_store %arg11[%c104_148, %c0_149], %362 {strides = array<i32>} : memref<152x256xbf16, #tpu.memory_space<vmem>>, vector<8x256xbf16>,
    %364 = arith.truncf %339 : vector<8x256xf32> to vector<8x256xbf16>
    %c112_150 = arith.constant 112 : index
    %c0_151 = arith.constant 0 : index
    %365 = vector.load %arg11[%c112_150, %c0_151] : memref<152x256xbf16, #tpu.memory_space<vmem>>, vector<8x256xbf16>
    tpu.vector_store %arg11[%c112_150, %c0_151], %364 {strides = array<i32>} : memref<152x256xbf16, #tpu.memory_space<vmem>>, vector<8x256xbf16>,
    %c255_i32_152 = arith.constant 255 : i32
    %366 = tpu.dynamic_rotate %339 by %c255_i32_152 dim 1 : vector<8x256xf32>, i32 -> vector<8x256xf32>
    %367 = vector.extract_strided_slice %1 {offsets = [5, 0], sizes = [1, 256], strides = [1, 1]} : vector<9x256xf32> to vector<1x256xf32>
    %368 = vector.broadcast %367 : vector<1x256xf32> to vector<8x256xf32>
    %369 = arith.mulf %366, %368 : vector<8x256xf32>
    %370 = arith.truncf %369 : vector<8x256xf32> to vector<8x256xbf16>
    %c120_153 = arith.constant 120 : index
    %c0_154 = arith.constant 0 : index
    %371 = vector.load %arg11[%c120_153, %c0_154] : memref<152x256xbf16, #tpu.memory_space<vmem>>, vector<8x256xbf16>
    tpu.vector_store %arg11[%c120_153, %c0_154], %370 {strides = array<i32>} : memref<152x256xbf16, #tpu.memory_space<vmem>>, vector<8x256xbf16>,
    %c241_i32_155 = arith.constant 241 : i32
    %372 = tpu.dynamic_rotate %339 by %c241_i32_155 dim 1 : vector<8x256xf32>, i32 -> vector<8x256xf32>
    %373 = vector.extract_strided_slice %1 {offsets = [6, 0], sizes = [1, 256], strides = [1, 1]} : vector<9x256xf32> to vector<1x256xf32>
    %374 = vector.broadcast %373 : vector<1x256xf32> to vector<8x256xf32>
    %375 = arith.mulf %372, %374 : vector<8x256xf32>
    %376 = arith.truncf %375 : vector<8x256xf32> to vector<8x256xbf16>
    %c128_156 = arith.constant 128 : index
    %c0_157 = arith.constant 0 : index
    %377 = vector.load %arg11[%c128_156, %c0_157] : memref<152x256xbf16, #tpu.memory_space<vmem>>, vector<8x256xbf16>
    tpu.vector_store %arg11[%c128_156, %c0_157], %376 {strides = array<i32>} : memref<152x256xbf16, #tpu.memory_space<vmem>>, vector<8x256xbf16>,
    %c240_i32_158 = arith.constant 240 : i32
    %378 = tpu.dynamic_rotate %339 by %c240_i32_158 dim 1 : vector<8x256xf32>, i32 -> vector<8x256xf32>
    %379 = vector.extract_strided_slice %1 {offsets = [7, 0], sizes = [1, 256], strides = [1, 1]} : vector<9x256xf32> to vector<1x256xf32>
    %380 = vector.broadcast %379 : vector<1x256xf32> to vector<8x256xf32>
    %381 = arith.mulf %378, %380 : vector<8x256xf32>
    %382 = arith.truncf %381 : vector<8x256xf32> to vector<8x256xbf16>
    %c136_159 = arith.constant 136 : index
    %c0_160 = arith.constant 0 : index
    %383 = vector.load %arg11[%c136_159, %c0_160] : memref<152x256xbf16, #tpu.memory_space<vmem>>, vector<8x256xbf16>
    tpu.vector_store %arg11[%c136_159, %c0_160], %382 {strides = array<i32>} : memref<152x256xbf16, #tpu.memory_space<vmem>>, vector<8x256xbf16>,
    %c239_i32_161 = arith.constant 239 : i32
    %384 = tpu.dynamic_rotate %339 by %c239_i32_161 dim 1 : vector<8x256xf32>, i32 -> vector<8x256xf32>
    %385 = vector.extract_strided_slice %1 {offsets = [8, 0], sizes = [1, 256], strides = [1, 1]} : vector<9x256xf32> to vector<1x256xf32>
    %386 = vector.broadcast %385 : vector<1x256xf32> to vector<8x256xf32>
    %387 = arith.mulf %384, %386 : vector<8x256xf32>
    %388 = arith.truncf %387 : vector<8x256xf32> to vector<8x256xbf16>
    %c144_162 = arith.constant 144 : index
    %c0_163 = arith.constant 0 : index
    %389 = vector.load %arg11[%c144_162, %c0_163] : memref<152x256xbf16, #tpu.memory_space<vmem>>, vector<8x256xbf16>
    tpu.vector_store %arg11[%c144_162, %c0_163], %388 {strides = array<i32>} : memref<152x256xbf16, #tpu.memory_space<vmem>>, vector<8x256xbf16>,
    %c0_164 = arith.constant 0 : index
    %c0_165 = arith.constant 0 : index
    %390 = vector.load %arg8[%c0_164, %c0_165] : memref<8x152xbf16, #tpu.memory_space<vmem>>, vector<8x152xbf16>
    %c0_166 = arith.constant 0 : index
    %c0_167 = arith.constant 0 : index
    %391 = vector.load %arg11[%c0_166, %c0_167] : memref<152x256xbf16, #tpu.memory_space<vmem>>, vector<152x256xbf16>
    %cst_168 = arith.constant dense<0.000000e+00> : vector<8x256xf32>
    %392 = tpu.matmul %390, %391, %cst_168 {dimension_numbers = #tpu.dot_dimension_numbers<[1], [0], [0], [1], [0, 0, 1, 1], [], []>} : vector<8x152xbf16>, vector<152x256xbf16>, vector<8x256xf32> -> vector<8x256xf32>
    %393 = vector.extract_strided_slice %392 {offsets = [0, 0], sizes = [4, 256], strides = [1, 1]} : vector<8x256xf32> to vector<4x256xf32>
    %c0_169 = arith.constant 0 : index
    %c0_170 = arith.constant 0 : index
    %c0_171 = arith.constant 0 : index
    %394 = vector.load %arg9[%c0_169, %c0_170, %c0_171] : memref<1x4x256xf32, #tpu.memory_space<vmem>>, vector<1x4x256xf32>
    %395 = vector.shape_cast %394 : vector<1x4x256xf32> to vector<4x256xf32>
    %396 = vector.shape_cast %393 : vector<4x256xf32> to vector<1x4x256xf32>
    tpu.vector_store %arg9[%c0_169, %c0_170, %c0_171], %396 {strides = array<i32>} : memref<1x4x256xf32, #tpu.memory_space<vmem>>, vector<1x4x256xf32>,
    return
  }
  func.func @transform_0(%arg0: i32) -> (i32, i32, i32) {
    %c0_i32 = arith.constant 0 : i32
    %c0_i32_0 = arith.constant 0 : i32
    %c0_i32_1 = arith.constant 0 : i32
    return %arg0, %c0_i32, %c0_i32_0 : i32, i32, i32
  }
  func.func @transform_1(%arg0: i32) -> (i32, i32) {
    %c0_i32 = arith.constant 0 : i32
    %c0_i32_0 = arith.constant 0 : i32
    %c0_i32_1 = arith.constant 0 : i32
    return %c0_i32, %c0_i32_0 : i32, i32
  }
  func.func @transform_2(%arg0: i32) -> (i32, i32) {
    %c0_i32 = arith.constant 0 : i32
    %c0_i32_0 = arith.constant 0 : i32
    %c0_i32_1 = arith.constant 0 : i32
    return %c0_i32, %c0_i32_0 : i32, i32
  }
  func.func @transform_3(%arg0: i32) -> (i32, i32) {
    %c0_i32 = arith.constant 0 : i32
    %c0_i32_0 = arith.constant 0 : i32
    %c0_i32_1 = arith.constant 0 : i32
    return %c0_i32, %c0_i32_0 : i32, i32
  }
  func.func @transform_4(%arg0: i32) -> (i32, i32) {
    %c0_i32 = arith.constant 0 : i32
    %c0_i32_0 = arith.constant 0 : i32
    %c0_i32_1 = arith.constant 0 : i32
    return %c0_i32, %c0_i32_0 : i32, i32
  }
  func.func @transform_5(%arg0: i32) -> (i32, i32) {
    %c0_i32 = arith.constant 0 : i32
    %c0_i32_0 = arith.constant 0 : i32
    %c0_i32_1 = arith.constant 0 : i32
    return %c0_i32, %c0_i32_0 : i32, i32
  }
  func.func @transform_6(%arg0: i32) -> (i32, i32) {
    %c0_i32 = arith.constant 0 : i32
    %c0_i32_0 = arith.constant 0 : i32
    %c0_i32_1 = arith.constant 0 : i32
    return %c0_i32, %c0_i32_0 : i32, i32
  }
  func.func @transform_7(%arg0: i32) -> (i32, i32) {
    %c0_i32 = arith.constant 0 : i32
    %c0_i32_0 = arith.constant 0 : i32
    %c0_i32_1 = arith.constant 0 : i32
    return %c0_i32, %c0_i32_0 : i32, i32
  }
  func.func @transform_8(%arg0: i32) -> (i32, i32, i32) {
    %c0_i32 = arith.constant 0 : i32
    %c0_i32_0 = arith.constant 0 : i32
    %c0_i32_1 = arith.constant 0 : i32
    return %arg0, %c0_i32, %c0_i32_0 : i32, i32, i32
  }
}

</mosaic_0001>

<llo_original>
// kernel: dense_block_v2_forward.1
$region0: #{dense_block_v2_forward.1}
  #allocation0 [shape = 'u32[]', space=smem, size = 0x4, offset = 0x4, fixed_abs, tag = 'smem constant byte address 0x4 - core index']
  #allocation1 [shape = 'u32[144,128]{1,0:T(1,128)}', space=vmem, size = 0x12000, scoped, tag = 'internal scratch']
  #allocation2 [shape = 'bf16[368,512]{1,0:T(8,128)(2,1)}', space=vmem, size = 0x5c000, scoped, tag = 'scratch operand']
  #allocation3 [shape = 'bf16[152,256]{1,0:T(8,128)(2,1)}', space=vmem, size = 0x13000, scoped, tag = 'scratch operand']
  %s0 = inlined_call_operand.vmem [shape: f32[2,8,512], index: 0, kind: input, shape index: {}]
  %s1 = inlined_call_operand.vmem [shape: f32[9,512], index: 1, kind: input, shape index: {}]
  %s2 = inlined_call_operand.vmem [shape: bf16[8,80], index: 2, kind: input, shape index: {}]
  %s3 = inlined_call_operand.vmem [shape: bf16[8,152], index: 3, kind: input, shape index: {}]
  %s4 = inlined_call_operand.vmem [shape: bf16[8,224], index: 4, kind: input, shape index: {}]
  %s5 = inlined_call_operand.vmem [shape: bf16[8,296], index: 5, kind: input, shape index: {}]
  %s6 = inlined_call_operand.vmem [shape: bf16[8,368], index: 6, kind: input, shape index: {}]
  %s7 = inlined_call_operand.vmem [shape: bf16[8,152], index: 7, kind: input, shape index: {}]
  %s8 = inlined_call_operand.vmem [shape: f32[2,4,256], index: 8, kind: output, shape index: {}]
  %s9 = sld [smem:[#allocation0]]
  $region65: #{dense_block_v2_forward.1} parent=0
    _
  %s11 = ssub.s32 1, %s9
  %s12 = scalar_select 0, %s11, %s9
  loop: start=0, step=1, limit=4
  $region2: #{dense_block_v2_forward.1} parent=0 // loop_pre_header
    _
  $region3: #{dense_block_v2_forward.1} parent=0 // loop_header
    %s14 = sphi 0, %s18
    %p15 = scmp.ge.s32.totalorder %s14, 4
    %s24 = sphi 0, %s26
    %s27 = sphi 0, %s24
    %s28 = sphi 0, %s27
    %s44 = sphi 0, %s28
    %s48 = sphi 0, %s48
    %s50 = sphi 0, %s48
    %s51 = sphi 0, %s50
    %s65 = sphi 0, %s51
    %s69 = sphi 0, %s69
    %s71 = sphi 0, %s69
    %s72 = sphi 0, %s71
    %s86 = sphi 0, %s72
    %s90 = sphi 0, %s90
    %s92 = sphi 0, %s90
    %s93 = sphi 0, %s92
    %s107 = sphi 0, %s93
    %s111 = sphi 0, %s111
    %s113 = sphi 0, %s111
    %s114 = sphi 0, %s113
    %s128 = sphi 0, %s114
    %s132 = sphi 0, %s132
    %s134 = sphi 0, %s132
    %s135 = sphi 0, %s134
    %s149 = sphi 0, %s135
    %s153 = sphi 0, %s153
    %s155 = sphi 0, %s153
    %s156 = sphi 0, %s155
    %s170 = sphi 0, %s156
    %s174 = sphi 0, %s174
    %s176 = sphi 0, %s174
    %s177 = sphi 0, %s176
    %s191 = sphi 0, %s177
    %s197 = sphi 0, %s199
    %s200 = sphi 0, %s197
    %s201 = sphi 0, %s200
    %s217 = sphi 0, %s201
  $region4: #{dense_block_v2_forward.1} parent=0 // loop_header_branch
    %17 = sbr.rel (%p15) target = $region8
  $region5: #{dense_block_v2_forward.1} parent=0 // loop_body
    %s19 = ssub.s32 %s14, 1
    %s20 = ssub.s32 %s14, 2
    %s21 = sadd.s32 %s14, 1
    %s22 = ssub.s32 %s14, %s21
    %p23 = scmp.eq.s32.totalorder %s22, 0
    %s25 = sadd.s32 %s24, 1
    %s26 = scalar_select %p23, %s24, %s25
    %p29 = pneg %p23
    %p30 = scmp.eq.s32.totalorder %s14, 1
    %p31 = por %p29, %p30
    %p32 = scmp.ne.s32.totalorder %s24, %s27
    %p33 = scmp.eq.s32.totalorder %s14, 0
    %p34 = por %p32, %p33
    %p35 = scmp.ne.s32.totalorder %s24, %s27
    %p36 = scmp.eq.s32.totalorder %s19, 1
    %p37 = por %p35, %p36
    %p38 = scmp.ne.s32.totalorder %s27, %s28
    %p39 = scmp.eq.s32.totalorder %s19, 0
    %p40 = por %p38, %p39
    %p41 = scmp.ne.s32.totalorder %s27, %s28
    %p42 = scmp.eq.s32.totalorder %s20, 1
    %p43 = por %p41, %p42
    %p45 = scmp.ne.s32.totalorder %s28, %s44
    %p46 = scmp.eq.s32.totalorder %s20, 0
    %p47 = por %p45, %p46
    %s49 = sadd.s32 %s48, 1
    %p52 = scmp.eq.s32.totalorder %s14, 1
    %p53 = scmp.ne.s32.totalorder %s48, %s50
    %p54 = scmp.eq.s32.totalorder %s14, 0
    %p55 = por %p53, %p54
    %p56 = scmp.ne.s32.totalorder %s48, %s50
    %p57 = scmp.eq.s32.totalorder %s19, 1
    %p58 = por %p56, %p57
    %p59 = scmp.ne.s32.totalorder %s50, %s51
    %p60 = scmp.eq.s32.totalorder %s19, 0
    %p61 = por %p59, %p60
    %p62 = scmp.ne.s32.totalorder %s50, %s51
    %p63 = scmp.eq.s32.totalorder %s20, 1
    %p64 = por %p62, %p63
    %p66 = scmp.ne.s32.totalorder %s51, %s65
    %p67 = scmp.eq.s32.totalorder %s20, 0
    %p68 = por %p66, %p67
    %s70 = sadd.s32 %s69, 1
    %p73 = scmp.eq.s32.totalorder %s14, 1
    %p74 = scmp.ne.s32.totalorder %s69, %s71
    %p75 = scmp.eq.s32.totalorder %s14, 0
    %p76 = por %p74, %p75
    %p77 = scmp.ne.s32.totalorder %s69, %s71
    %p78 = scmp.eq.s32.totalorder %s19, 1
    %p79 = por %p77, %p78
    %p80 = scmp.ne.s32.totalorder %s71, %s72
    %p81 = scmp.eq.s32.totalorder %s19, 0
    %p82 = por %p80, %p81
    %p83 = scmp.ne.s32.totalorder %s71, %s72
    %p84 = scmp.eq.s32.totalorder %s20, 1
    %p85 = por %p83, %p84
    %p87 = scmp.ne.s32.totalorder %s72, %s86
    %p88 = scmp.eq.s32.totalorder %s20, 0
    %p89 = por %p87, %p88
    %s91 = sadd.s32 %s90, 1
    %p94 = scmp.eq.s32.totalorder %s14, 1
    %p95 = scmp.ne.s32.totalorder %s90, %s92
    %p96 = scmp.eq.s32.totalorder %s14, 0
    %p97 = por %p95, %p96
    %p98 = scmp.ne.s32.totalorder %s90, %s92
    %p99 = scmp.eq.s32.totalorder %s19, 1
    %p100 = por %p98, %p99
    %p101 = scmp.ne.s32.totalorder %s92, %s93
    %p102 = scmp.eq.s32.totalorder %s19, 0
    %p103 = por %p101, %p102
    %p104 = scmp.ne.s32.totalorder %s92, %s93
    %p105 = scmp.eq.s32.totalorder %s20, 1
    %p106 = por %p104, %p105
    %p108 = scmp.ne.s32.totalorder %s93, %s107
    %p109 = scmp.eq.s32.totalorder %s20, 0
    %p110 = por %p108, %p109
    %s112 = sadd.s32 %s111, 1
    %p115 = scmp.eq.s32.totalorder %s14, 1
    %p116 = scmp.ne.s32.totalorder %s111, %s113
    %p117 = scmp.eq.s32.totalorder %s14, 0
    %p118 = por %p116, %p117
    %p119 = scmp.ne.s32.totalorder %s111, %s113
    %p120 = scmp.eq.s32.totalorder %s19, 1
    %p121 = por %p119, %p120
    %p122 = scmp.ne.s32.totalorder %s113, %s114
    %p123 = scmp.eq.s32.totalorder %s19, 0
    %p124 = por %p122, %p123
    %p125 = scmp.ne.s32.totalorder %s113, %s114
    %p126 = scmp.eq.s32.totalorder %s20, 1
    %p127 = por %p125, %p126
    %p129 = scmp.ne.s32.totalorder %s114, %s128
    %p130 = scmp.eq.s32.totalorder %s20, 0
    %p131 = por %p129, %p130
    %s133 = sadd.s32 %s132, 1
    %p136 = scmp.eq.s32.totalorder %s14, 1
    %p137 = scmp.ne.s32.totalorder %s132, %s134
    %p138 = scmp.eq.s32.totalorder %s14, 0
    %p139 = por %p137, %p138
    %p140 = scmp.ne.s32.totalorder %s132, %s134
    %p141 = scmp.eq.s32.totalorder %s19, 1
    %p142 = por %p140, %p141
    %p143 = scmp.ne.s32.totalorder %s134, %s135
    %p144 = scmp.eq.s32.totalorder %s19, 0
    %p145 = por %p143, %p144
    %p146 = scmp.ne.s32.totalorder %s134, %s135
    %p147 = scmp.eq.s32.totalorder %s20, 1
    %p148 = por %p146, %p147
    %p150 = scmp.ne.s32.totalorder %s135, %s149
    %p151 = scmp.eq.s32.totalorder %s20, 0
    %p152 = por %p150, %p151
    %s154 = sadd.s32 %s153, 1
    %p157 = scmp.eq.s32.totalorder %s14, 1
    %p158 = scmp.ne.s32.totalorder %s153, %s155
    %p159 = scmp.eq.s32.totalorder %s14, 0
    %p160 = por %p158, %p159
    %p161 = scmp.ne.s32.totalorder %s153, %s155
    %p162 = scmp.eq.s32.totalorder %s19, 1
    %p163 = por %p161, %p162
    %p164 = scmp.ne.s32.totalorder %s155, %s156
    %p165 = scmp.eq.s32.totalorder %s19, 0
    %p166 = por %p164, %p165
    %p167 = scmp.ne.s32.totalorder %s155, %s156
    %p168 = scmp.eq.s32.totalorder %s20, 1
    %p169 = por %p167, %p168
    %p171 = scmp.ne.s32.totalorder %s156, %s170
    %p172 = scmp.eq.s32.totalorder %s20, 0
    %p173 = por %p171, %p172
    %s175 = sadd.s32 %s174, 1
    %p178 = scmp.eq.s32.totalorder %s14, 1
    %p179 = scmp.ne.s32.totalorder %s174, %s176
    %p180 = scmp.eq.s32.totalorder %s14, 0
    %p181 = por %p179, %p180
    %p182 = scmp.ne.s32.totalorder %s174, %s176
    %p183 = scmp.eq.s32.totalorder %s19, 1
    %p184 = por %p182, %p183
    %p185 = scmp.ne.s32.totalorder %s176, %s177
    %p186 = scmp.eq.s32.totalorder %s19, 0
    %p187 = por %p185, %p186
    %p188 = scmp.ne.s32.totalorder %s176, %s177
    %p189 = scmp.eq.s32.totalorder %s20, 1
    %p190 = por %p188, %p189
    %p192 = scmp.ne.s32.totalorder %s177, %s191
    %p193 = scmp.eq.s32.totalorder %s20, 0
    %p194 = por %p192, %p193
    %s195 = ssub.s32 %s14, %s21
    %p196 = scmp.eq.s32.totalorder %s195, 0
    %s198 = sadd.s32 %s197, 1
    %s199 = scalar_select %p196, %s197, %s198
    %p202 = pneg %p196
    %p203 = scmp.eq.s32.totalorder %s14, 1
    %p204 = por %p202, %p203
    %p205 = scmp.ne.s32.totalorder %s197, %s200
    %p206 = scmp.eq.s32.totalorder %s14, 0
    %p207 = por %p205, %p206
    %p208 = scmp.ne.s32.totalorder %s197, %s200
    %p209 = scmp.eq.s32.totalorder %s19, 1
    %p210 = por %p208, %p209
    %p211 = scmp.ne.s32.totalorder %s200, %s201
    %p212 = scmp.eq.s32.totalorder %s19, 0
    %p213 = por %p211, %p212
    %p214 = scmp.ne.s32.totalorder %s200, %s201
    %p215 = scmp.eq.s32.totalorder %s20, 1
    %p216 = por %p214, %p215
    %p218 = scmp.ne.s32.totalorder %s201, %s217
    %p219 = scmp.eq.s32.totalorder %s20, 0
    %p220 = por %p218, %p219
    %p221 = scmp.le.s32.totalorder 1, %s14
    %p222 = scmp.lt.s32.totalorder %s14, 3
    %p223 = pnand %p221, %p222
    %p224 = pneg %p223
    // Predicated region
    $region9: #{dense_block_v2_forward.1} parent=5 // pred_check
      _
    $region10: #{dense_block_v2_forward.1} parent=5 // pred_check_branch
      %226 = sbr.rel (%p223) target = $region12
    $region11: #{dense_block_v2_forward.1} parent=5 // pred_region
      %s227 = ssub.s32 %s14, 1
      // Predicated region
      $region13: #{dense_block_v2_forward.1} parent=11 // pred_check
        %p228 = pneg %p61
      $region14: #{dense_block_v2_forward.1} parent=11 // pred_check_branch
        %230 = sbr.rel (%p228) target = $region16
      $region15: #{dense_block_v2_forward.1} parent=11 // pred_region
        _
      $region16: #{dense_block_v2_forward.1} parent=11 // pred_fallthru
        _
      // Predicated region
      $region17: #{dense_block_v2_forward.1} parent=11 // pred_check
        %p231 = pneg %p82
      $region18: #{dense_block_v2_forward.1} parent=11 // pred_check_branch
        %233 = sbr.rel (%p231) target = $region20
      $region19: #{dense_block_v2_forward.1} parent=11 // pred_region
        _
      $region20: #{dense_block_v2_forward.1} parent=11 // pred_fallthru
        _
      // Predicated region
      $region21: #{dense_block_v2_forward.1} parent=11 // pred_check
        %p234 = pneg %p103
      $region22: #{dense_block_v2_forward.1} parent=11 // pred_check_branch
        %236 = sbr.rel (%p234) target = $region24
      $region23: #{dense_block_v2_forward.1} parent=11 // pred_region
        _
      $region24: #{dense_block_v2_forward.1} parent=11 // pred_fallthru
        _
      // Predicated region
      $region25: #{dense_block_v2_forward.1} parent=11 // pred_check
        %p237 = pneg %p124
      $region26: #{dense_block_v2_forward.1} parent=11 // pred_check_branch
        %239 = sbr.rel (%p237) target = $region28
      $region27: #{dense_block_v2_forward.1} parent=11 // pred_region
        _
      $region28: #{dense_block_v2_forward.1} parent=11 // pred_fallthru
        _
      // Predicated region
      $region29: #{dense_block_v2_forward.1} parent=11 // pred_check
        %p240 = pneg %p145
      $region30: #{dense_block_v2_forward.1} parent=11 // pred_check_branch
        %242 = sbr.rel (%p240) target = $region32
      $region31: #{dense_block_v2_forward.1} parent=11 // pred_region
        _
      $region32: #{dense_block_v2_forward.1} parent=11 // pred_fallthru
        _
      // Predicated region
      $region33: #{dense_block_v2_forward.1} parent=11 // pred_check
        %p243 = pneg %p166
      $region34: #{dense_block_v2_forward.1} parent=11 // pred_check_branch
        %245 = sbr.rel (%p243) target = $region36
      $region35: #{dense_block_v2_forward.1} parent=11 // pred_region
        _
      $region36: #{dense_block_v2_forward.1} parent=11 // pred_fallthru
        _
      // Predicated region
      $region37: #{dense_block_v2_forward.1} parent=11 // pred_check
        %p246 = pneg %p187
      $region38: #{dense_block_v2_forward.1} parent=11 // pred_check_branch
        %248 = sbr.rel (%p246) target = $region40
      $region39: #{dense_block_v2_forward.1} parent=11 // pred_region
        _
      $region40: #{dense_block_v2_forward.1} parent=11 // pred_fallthru
        _
    $region12: #{dense_block_v2_forward.1} parent=5 // pred_fallthru
      _
    %p249 = scmp.lt.s32.totalorder %s14, 2
    // Predicated region
    $region41: #{dense_block_v2_forward.1} parent=5 // pred_check
      %p250 = pneg %p249
    $region42: #{dense_block_v2_forward.1} parent=5 // pred_check_branch
      %252 = sbr.rel (%p250) target = $region44
    $region43: #{dense_block_v2_forward.1} parent=5 // pred_region
      // Predicated region
      $region45: #{dense_block_v2_forward.1} parent=43 // pred_check
        %p253 = pneg %p34
      $region46: #{dense_block_v2_forward.1} parent=43 // pred_check_branch
        %255 = sbr.rel (%p253) target = $region48
      $region47: #{dense_block_v2_forward.1} parent=43 // pred_region
        %p256 = scmp.lt.s32.totalorder %s14, 1
        %s257 = scalar_select %p256, %s14, 1
        %s258 = smul.addr %s257, 4
        %s259 = smul.addr %s258, 8
        %s260 = scalar_lea.vmem %s0, %s259
      $region48: #{dense_block_v2_forward.1} parent=43 // pred_fallthru
        _
    $region44: #{dense_block_v2_forward.1} parent=5 // pred_fallthru
      _
    %p261 = scmp.le.s32.totalorder 1, %s14
    %p262 = scmp.lt.s32.totalorder %s14, 3
    %p263 = pnand %p261, %p262
    %p264 = pneg %p263
    // Predicated region
    $region49: #{dense_block_v2_forward.1} parent=5 // pred_check
      _
    $region50: #{dense_block_v2_forward.1} parent=5 // pred_check_branch
      %266 = sbr.rel (%p263) target = $region52
    $region51: #{dense_block_v2_forward.1} parent=5 // pred_region
      %s267 = ssub.s32 %s14, 1
      %p268 = scmp.lt.s32.totalorder %s19, 1
      %s269 = scalar_select %p268, %s19, 1
      %s270 = smul.addr %s269, 4
      %s271 = smul.addr %s270, 8
      %s272 = scalar_lea.vmem %s0, %s271
      %p273 = pneg %p40
      %p274 = pneg %p37
      %p275 = pneg %p61
      %p276 = pneg %p58
      %p277 = pneg %p82
      %p278 = pneg %p79
      %p279 = pneg %p103
      %p280 = pneg %p100
      %p281 = pneg %p124
      %p282 = pneg %p121
      %p283 = pneg %p145
      %p284 = pneg %p142
      %p285 = pneg %p166
      %p286 = pneg %p163
      %p287 = pneg %p187
      %p288 = pneg %p184
      %p289 = pneg %p213
      %p290 = pneg %p210
      %p291 = scmp.lt.s32.totalorder %s19, 1
      %s292 = scalar_select %p291, %s19, 1
      %s293 = smul.addr %s292, 2
      %s294 = smul.addr %s293, 4
      %s295 = scalar_lea.vmem %s8, %s294
      %p296 = scmp.lt.s32.totalorder %s19, 1
      %s297 = scalar_select %p296, %s19, 1
      %s298 = smul.addr %s297, 4
      %s299 = smul.addr %s298, 8
      %s300 = scalar_lea.vmem %s0, %s299
      %p301 = scmp.lt.s32.totalorder %s19, 1
      %s302 = scalar_select %p301, %s19, 1
      %s303 = smul.addr %s302, 2
      %s304 = smul.addr %s303, 4
      %s305 = scalar_lea.vmem %s8, %s304
      %v308 = vld [vmem:[%s1] sm:$0xff]
      %v309 = vld [vmem:[%s1 + $0x8] sm:$0xff]
      %v310 = vld [vmem:[%s1 + $0x10] sm:$0xff]
      %v311 = vld [vmem:[%s1 + $0x18] sm:$0xff]
      %v312 = vld [vmem:[%s1 + $0x20] sm:$0x1]
      %v313 = vld [vmem:[%s1 + $0x28] sm:$0x1]
      %v314 = vld [vmem:[%s1 + $0x30] sm:$0x1]
      %v315 = vld [vmem:[%s1 + $0x38] sm:$0x1]
      %316 = vst [vmem:[#allocation2] sm:$0xff] 1065369472
      %317 = vst [vmem:[#allocation2 + $0x8] sm:$0xff] 1065369472
      %318 = vst [vmem:[#allocation3] sm:$0xff] 1065369472
      %v319 = vld [vmem:[%s300] sm:$0xff]
      %v320 = vld [vmem:[%s300 + $0x8] sm:$0xff]
      %v321 = vld [vmem:[%s300 + $0x10] sm:$0xff]
      %v322 = vld [vmem:[%s300 + $0x18] sm:$0xff]
      %323 = vrot.lane.b32.xlu0 %v319, 17
      %v324 = vpop.permute.xlu0 %323
      %325 = vrot.lane.b32.xlu0 %v320, 17
      %v326 = vpop.permute.xlu0 %325
      %327 = vrot.lane.b32.xlu0 %v321, 17
      %v328 = vpop.permute.xlu0 %327
      %329 = vrot.lane.b32.xlu0 %v322, 17
      %v330 = vpop.permute.xlu0 %329
      %v331 = vlaneseq
      %v332 = vand.u32 %v331, 127
      %vm333 = vcmp.lt.s32.totalorder %v332, 17
      %v334 = vsel %vm333, %v328, %v330
      %v335 = vsel %vm333, %v326, %v328
      %v336 = vsel %vm333, %v324, %v326
      %v337 = vsel %vm333, %v330, %v324
      %v338 = vlaneseq
      %v339 = vshrl.u32 %v338, 7
      %v340 = vsub.s32 0, %v339
      %v341 = vrot.slane %v308, %v340
      %v342 = vlaneseq
      %v343 = vshrl.u32 %v342, 7
      %v344 = vsub.s32 0, %v343
      %v345 = vrot.slane %v309, %v344
      %v346 = vlaneseq
      %v347 = vshrl.u32 %v346, 7
      %v348 = vsub.s32 0, %v347
      %v349 = vrot.slane %v310, %v348
      %v350 = vlaneseq
      %v351 = vshrl.u32 %v350, 7
      %v352 = vsub.s32 0, %v351
      %v353 = vrot.slane %v311, %v352
      %v354 = vmul.f32 %v337, %v341
      %v355 = vmul.f32 %v336, %v345
      %v356 = vmul.f32 %v335, %v349
      %v357 = vmul.f32 %v334, %v353
      %v358 = vpack.c.bf16 %v354, %v354
      %v359 = vpack.c.bf16 %v355, %v355
      %v360 = vpack.c.bf16 %v356, %v356
      %v361 = vpack.c.bf16 %v357, %v357
      %v366 = vunpack.c.l.b16 %v358
      %v367 = vunpack.c.l.b16 %v359
      %v368 = vunpack.c.l.b16 %v360
      %v369 = vunpack.c.l.b16 %v361
      %v370 = vpack.c.b16 %v367, %v366
      %v371 = vpack.c.b16 %v369, %v368
      %374 = vst [vmem:[#allocation2 + $0x10] sm:$0xff] %v370
      %375 = vst [vmem:[#allocation2 + $0x18] sm:$0xff] %v371
      %376 = vrot.lane.b32.xlu0 %v319, 16
      %v377 = vpop.permute.xlu0 %376
      %378 = vrot.lane.b32.xlu0 %v320, 16
      %v379 = vpop.permute.xlu0 %378
      %380 = vrot.lane.b32.xlu0 %v321, 16
      %v381 = vpop.permute.xlu0 %380
      %382 = vrot.lane.b32.xlu0 %v322, 16
      %v383 = vpop.permute.xlu0 %382
      %vm384 = vcmp.lt.s32.totalorder %v332, 16
      %v385 = vsel %vm384, %v381, %v383
      %v386 = vsel %vm384, %v379, %v381
      %v387 = vsel %vm384, %v377, %v379
      %v388 = vsel %vm384, %v383, %v377
      %v389 = vlaneseq
      %v390 = vshrl.u32 %v389, 7
      %v391 = vsub.s32 1, %v390
      %v392 = vrot.slane %v308, %v391
      %v393 = vlaneseq
      %v394 = vshrl.u32 %v393, 7
      %v395 = vsub.s32 1, %v394
      %v396 = vrot.slane %v309, %v395
      %v397 = vlaneseq
      %v398 = vshrl.u32 %v397, 7
      %v399 = vsub.s32 1, %v398
      %v400 = vrot.slane %v310, %v399
      %v401 = vlaneseq
      %v402 = vshrl.u32 %v401, 7
      %v403 = vsub.s32 1, %v402
      %v404 = vrot.slane %v311, %v403
      %v405 = vmul.f32 %v388, %v392
      %v406 = vmul.f32 %v387, %v396
      %v407 = vmul.f32 %v386, %v400
      %v408 = vmul.f32 %v385, %v404
      %v409 = vpack.c.bf16 %v405, %v405
      %v410 = vpack.c.bf16 %v406, %v406
      %v411 = vpack.c.bf16 %v407, %v407
      %v412 = vpack.c.bf16 %v408, %v408
      %v417 = vunpack.c.l.b16 %v409
      %v418 = vunpack.c.l.b16 %v410
      %v419 = vunpack.c.l.b16 %v411
      %v420 = vunpack.c.l.b16 %v412
      %v421 = vpack.c.b16 %v418, %v417
      %v422 = vpack.c.b16 %v420, %v419
      %425 = vst [vmem:[#allocation2 + $0x20] sm:$0xff] %v421
      %426 = vst [vmem:[#allocation2 + $0x28] sm:$0xff] %v422
      %427 = vrot.lane.b32.xlu0 %v319, 15
      %v428 = vpop.permute.xlu0 %427
      %429 = vrot.lane.b32.xlu0 %v320, 15
      %v430 = vpop.permute.xlu0 %429
      %431 = vrot.lane.b32.xlu0 %v321, 15
      %v432 = vpop.permute.xlu0 %431
      %433 = vrot.lane.b32.xlu0 %v322, 15
      %v434 = vpop.permute.xlu0 %433
      %vm435 = vcmp.lt.s32.totalorder %v332, 15
      %v436 = vsel %vm435, %v432, %v434
      %v437 = vsel %vm435, %v430, %v432
      %v438 = vsel %vm435, %v428, %v430
      %v439 = vsel %vm435, %v434, %v428
      %v440 = vlaneseq
      %v441 = vshrl.u32 %v440, 7
      %v442 = vsub.s32 2, %v441
      %v443 = vrot.slane %v308, %v442
      %v444 = vlaneseq
      %v445 = vshrl.u32 %v444, 7
      %v446 = vsub.s32 2, %v445
      %v447 = vrot.slane %v309, %v446
      %v448 = vlaneseq
      %v449 = vshrl.u32 %v448, 7
      %v450 = vsub.s32 2, %v449
      %v451 = vrot.slane %v310, %v450
      %v452 = vlaneseq
      %v453 = vshrl.u32 %v452, 7
      %v454 = vsub.s32 2, %v453
      %v455 = vrot.slane %v311, %v454
      %v456 = vmul.f32 %v439, %v443
      %v457 = vmul.f32 %v438, %v447
      %v458 = vmul.f32 %v437, %v451
      %v459 = vmul.f32 %v436, %v455
      %v460 = vpack.c.bf16 %v456, %v456
      %v461 = vpack.c.bf16 %v457, %v457
      %v462 = vpack.c.bf16 %v458, %v458
      %v463 = vpack.c.bf16 %v459, %v459
      %v468 = vunpack.c.l.b16 %v460
      %v469 = vunpack.c.l.b16 %v461
      %v470 = vunpack.c.l.b16 %v462
      %v471 = vunpack.c.l.b16 %v463
      %v472 = vpack.c.b16 %v469, %v468
      %v473 = vpack.c.b16 %v471, %v470
      %476 = vst [vmem:[#allocation2 + $0x30] sm:$0xff] %v472
      %477 = vst [vmem:[#allocation2 + $0x38] sm:$0xff] %v473
      %478 = vrot.lane.b32.xlu0 %v319, 1
      %v479 = vpop.permute.xlu0 %478
      %480 = vrot.lane.b32.xlu0 %v320, 1
      %v481 = vpop.permute.xlu0 %480
      %482 = vrot.lane.b32.xlu0 %v321, 1
      %v483 = vpop.permute.xlu0 %482
      %484 = vrot.lane.b32.xlu0 %v322, 1
      %v485 = vpop.permute.xlu0 %484
      %vm486 = vcmp.lt.s32.totalorder %v332, 1
      %v487 = vsel %vm486, %v483, %v485
      %v488 = vsel %vm486, %v481, %v483
      %v489 = vsel %vm486, %v479, %v481
      %v490 = vsel %vm486, %v485, %v479
      %v491 = vlaneseq
      %v492 = vshrl.u32 %v491, 7
      %v493 = vsub.s32 3, %v492
      %v494 = vrot.slane %v308, %v493
      %v495 = vlaneseq
      %v496 = vshrl.u32 %v495, 7
      %v497 = vsub.s32 3, %v496
      %v498 = vrot.slane %v309, %v497
      %v499 = vlaneseq
      %v500 = vshrl.u32 %v499, 7
      %v501 = vsub.s32 3, %v500
      %v502 = vrot.slane %v310, %v501
      %v503 = vlaneseq
      %v504 = vshrl.u32 %v503, 7
      %v505 = vsub.s32 3, %v504
      %v506 = vrot.slane %v311, %v505
      %v507 = vmul.f32 %v490, %v494
      %v508 = vmul.f32 %v489, %v498
      %v509 = vmul.f32 %v488, %v502
      %v510 = vmul.f32 %v487, %v506
      %v511 = vpack.c.bf16 %v507, %v507
      %v512 = vpack.c.bf16 %v508, %v508
      %v513 = vpack.c.bf16 %v509, %v509
      %v514 = vpack.c.bf16 %v510, %v510
      %v519 = vunpack.c.l.b16 %v511
      %v520 = vunpack.c.l.b16 %v512
      %v521 = vunpack.c.l.b16 %v513
      %v522 = vunpack.c.l.b16 %v514
      %v523 = vpack.c.b16 %v520, %v519
      %v524 = vpack.c.b16 %v522, %v521
      %527 = vst [vmem:[#allocation2 + $0x40] sm:$0xff] %v523
      %528 = vst [vmem:[#allocation2 + $0x48] sm:$0xff] %v524
      %v529 = vpack.c.bf16 %v319, %v319
      %v530 = vpack.c.bf16 %v320, %v320
      %v531 = vpack.c.bf16 %v321, %v321
      %v532 = vpack.c.bf16 %v322, %v322
      %v537 = vunpack.c.l.b16 %v529
      %v538 = vunpack.c.l.b16 %v530
      %v539 = vunpack.c.l.b16 %v531
      %v540 = vunpack.c.l.b16 %v532
      %v541 = vpack.c.b16 %v538, %v537
      %v542 = vpack.c.b16 %v540, %v539
      %545 = vst [vmem:[#allocation2 + $0x50] sm:$0xff] %v541
      %546 = vst [vmem:[#allocation2 + $0x58] sm:$0xff] %v542
      %547 = vrot.lane.b32.xlu0 %v319, 127
      %v548 = vpop.permute.xlu0 %547
      %549 = vrot.lane.b32.xlu0 %v320, 127
      %v550 = vpop.permute.xlu0 %549
      %551 = vrot.lane.b32.xlu0 %v321, 127
      %v552 = vpop.permute.xlu0 %551
      %553 = vrot.lane.b32.xlu0 %v322, 127
      %v554 = vpop.permute.xlu0 %553
      %vm555 = vcmp.lt.s32.totalorder %v332, 127
      %v556 = vsel %vm555, %v552, %v554
      %v557 = vsel %vm555, %v550, %v552
      %v558 = vsel %vm555, %v548, %v550
      %v559 = vsel %vm555, %v554, %v548
      %v560 = vlaneseq
      %v561 = vshrl.u32 %v560, 7
      %v562 = vsub.s32 5, %v561
      %v563 = vrot.slane %v308, %v562
      %v564 = vlaneseq
      %v565 = vshrl.u32 %v564, 7
      %v566 = vsub.s32 5, %v565
      %v567 = vrot.slane %v309, %v566
      %v568 = vlaneseq
      %v569 = vshrl.u32 %v568, 7
      %v570 = vsub.s32 5, %v569
      %v571 = vrot.slane %v310, %v570
      %v572 = vlaneseq
      %v573 = vshrl.u32 %v572, 7
      %v574 = vsub.s32 5, %v573
      %v575 = vrot.slane %v311, %v574
      %v576 = vmul.f32 %v558, %v563
      %v577 = vmul.f32 %v557, %v567
      %v578 = vmul.f32 %v556, %v571
      %v579 = vmul.f32 %v559, %v575
      %v580 = vpack.c.bf16 %v576, %v576
      %v581 = vpack.c.bf16 %v577, %v577
      %v582 = vpack.c.bf16 %v578, %v578
      %v583 = vpack.c.bf16 %v579, %v579
      %v588 = vunpack.c.l.b16 %v580
      %v589 = vunpack.c.l.b16 %v581
      %v590 = vunpack.c.l.b16 %v582
      %v591 = vunpack.c.l.b16 %v583
      %v592 = vpack.c.b16 %v589, %v588
      %v593 = vpack.c.b16 %v591, %v590
      %596 = vst [vmem:[#allocation2 + $0x60] sm:$0xff] %v592
      %597 = vst [vmem:[#allocation2 + $0x68] sm:$0xff] %v593
      %598 = vrot.lane.b32.xlu0 %v319, 113
      %v599 = vpop.permute.xlu0 %598
      %600 = vrot.lane.b32.xlu0 %v320, 113
      %v601 = vpop.permute.xlu0 %600
      %602 = vrot.lane.b32.xlu0 %v321, 113
      %v603 = vpop.permute.xlu0 %602
      %604 = vrot.lane.b32.xlu0 %v322, 113
      %v605 = vpop.permute.xlu0 %604
      %vm606 = vcmp.lt.s32.totalorder %v332, 113
      %v607 = vsel %vm606, %v603, %v605
      %v608 = vsel %vm606, %v601, %v603
      %v609 = vsel %vm606, %v599, %v601
      %v610 = vsel %vm606, %v605, %v599
      %v611 = vlaneseq
      %v612 = vshrl.u32 %v611, 7
      %v613 = vsub.s32 6, %v612
      %v614 = vrot.slane %v308, %v613
      %v615 = vlaneseq
      %v616 = vshrl.u32 %v615, 7
      %v617 = vsub.s32 6, %v616
      %v618 = vrot.slane %v309, %v617
      %v619 = vlaneseq
      %v620 = vshrl.u32 %v619, 7
      %v621 = vsub.s32 6, %v620
      %v622 = vrot.slane %v310, %v621
      %v623 = vlaneseq
      %v624 = vshrl.u32 %v623, 7
      %v625 = vsub.s32 6, %v624
      %v626 = vrot.slane %v311, %v625
      %v627 = vmul.f32 %v609, %v614
      %v628 = vmul.f32 %v608, %v618
      %v629 = vmul.f32 %v607, %v622
      %v630 = vmul.f32 %v610, %v626
      %v631 = vpack.c.bf16 %v627, %v627
      %v632 = vpack.c.bf16 %v628, %v628
      %v633 = vpack.c.bf16 %v629, %v629
      %v634 = vpack.c.bf16 %v630, %v630
      %v639 = vunpack.c.l.b16 %v631
      %v640 = vunpack.c.l.b16 %v632
      %v641 = vunpack.c.l.b16 %v633
      %v642 = vunpack.c.l.b16 %v634
      %v643 = vpack.c.b16 %v640, %v639
      %v644 = vpack.c.b16 %v642, %v641
      %647 = vst [vmem:[#allocation2 + $0x70] sm:$0xff] %v643
      %648 = vst [vmem:[#allocation2 + $0x78] sm:$0xff] %v644
      %649 = vrot.lane.b32.xlu0 %v319, 112
      %v650 = vpop.permute.xlu0 %649
      %651 = vrot.lane.b32.xlu0 %v320, 112
      %v652 = vpop.permute.xlu0 %651
      %653 = vrot.lane.b32.xlu0 %v321, 112
      %v654 = vpop.permute.xlu0 %653
      %655 = vrot.lane.b32.xlu0 %v322, 112
      %v656 = vpop.permute.xlu0 %655
      %vm657 = vcmp.lt.s32.totalorder %v332, 112
      %v658 = vsel %vm657, %v654, %v656
      %v659 = vsel %vm657, %v652, %v654
      %v660 = vsel %vm657, %v650, %v652
      %v661 = vsel %vm657, %v656, %v650
      %v662 = vlaneseq
      %v663 = vshrl.u32 %v662, 7
      %v664 = vsub.s32 7, %v663
      %v665 = vrot.slane %v308, %v664
      %v666 = vlaneseq
      %v667 = vshrl.u32 %v666, 7
      %v668 = vsub.s32 7, %v667
      %v669 = vrot.slane %v309, %v668
      %v670 = vlaneseq
      %v671 = vshrl.u32 %v670, 7
      %v672 = vsub.s32 7, %v671
      %v673 = vrot.slane %v310, %v672
      %v674 = vlaneseq
      %v675 = vshrl.u32 %v674, 7
      %v676 = vsub.s32 7, %v675
      %v677 = vrot.slane %v311, %v676
      %v678 = vmul.f32 %v660, %v665
      %v679 = vmul.f32 %v659, %v669
      %v680 = vmul.f32 %v658, %v673
      %v681 = vmul.f32 %v661, %v677
      %v682 = vpack.c.bf16 %v678, %v678
      %v683 = vpack.c.bf16 %v679, %v679
      %v684 = vpack.c.bf16 %v680, %v680
      %v685 = vpack.c.bf16 %v681, %v681
      %v690 = vunpack.c.l.b16 %v682
      %v691 = vunpack.c.l.b16 %v683
      %v692 = vunpack.c.l.b16 %v684
      %v693 = vunpack.c.l.b16 %v685
      %v694 = vpack.c.b16 %v691, %v690
      %v695 = vpack.c.b16 %v693, %v692
      %698 = vst [vmem:[#allocation2 + $0x80] sm:$0xff] %v694
      %699 = vst [vmem:[#allocation2 + $0x88] sm:$0xff] %v695
      %700 = vrot.lane.b32.xlu0 %v319, 111
      %v701 = vpop.permute.xlu0 %700
      %702 = vrot.lane.b32.xlu0 %v320, 111
      %v703 = vpop.permute.xlu0 %702
      %704 = vrot.lane.b32.xlu0 %v321, 111
      %v705 = vpop.permute.xlu0 %704
      %706 = vrot.lane.b32.xlu0 %v322, 111
      %v707 = vpop.permute.xlu0 %706
      %vm708 = vcmp.lt.s32.totalorder %v332, 111
      %v709 = vsel %vm708, %v705, %v707
      %v710 = vsel %vm708, %v703, %v705
      %v711 = vsel %vm708, %v701, %v703
      %v712 = vsel %vm708, %v707, %v701
      %v713 = vlaneseq
      %v714 = vshrl.u32 %v713, 7
      %v715 = vsub.s32 0, %v714
      %v716 = vrot.slane %v312, %v715
      %v717 = vlaneseq
      %v718 = vshrl.u32 %v717, 7
      %v719 = vsub.s32 0, %v718
      %v720 = vrot.slane %v313, %v719
      %v721 = vlaneseq
      %v722 = vshrl.u32 %v721, 7
      %v723 = vsub.s32 0, %v722
      %v724 = vrot.slane %v314, %v723
      %v725 = vlaneseq
      %v726 = vshrl.u32 %v725, 7
      %v727 = vsub.s32 0, %v726
      %v728 = vrot.slane %v315, %v727
      %v729 = vmul.f32 %v711, %v716
      %v730 = vmul.f32 %v710, %v720
      %v731 = vmul.f32 %v709, %v724
      %v732 = vmul.f32 %v712, %v728
      %v733 = vpack.c.bf16 %v729, %v729
      %v734 = vpack.c.bf16 %v730, %v730
      %v735 = vpack.c.bf16 %v731, %v731
      %v736 = vpack.c.bf16 %v732, %v732
      %v741 = vunpack.c.l.b16 %v733
      %v742 = vunpack.c.l.b16 %v734
      %v743 = vunpack.c.l.b16 %v735
      %v744 = vunpack.c.l.b16 %v736
      %v745 = vpack.c.b16 %v742, %v741
      %v746 = vpack.c.b16 %v744, %v743
      %749 = vst [vmem:[#allocation2 + $0x90] sm:$0xff] %v745
      %750 = vst [vmem:[#allocation2 + $0x98] sm:$0xff] %v746
      %v751 = vld [vmem:[%s2] sm:$0xf]
      %v752 = vld [vmem:[#allocation2] sm:$0xff]
      %v753 = vld [vmem:[#allocation2 + $0x8] sm:$0xff]
      %v754 = vld [vmem:[#allocation2 + $0x10] sm:$0xff]
      %v755 = vld [vmem:[#allocation2 + $0x18] sm:$0xff]
      %v756 = vld [vmem:[#allocation2 + $0x20] sm:$0xff]
      %v757 = vld [vmem:[#allocation2 + $0x28] sm:$0xff]
      %v758 = vld [vmem:[#allocation2 + $0x30] sm:$0xff]
      %v759 = vld [vmem:[#allocation2 + $0x38] sm:$0xff]
      %v760 = vld [vmem:[#allocation2 + $0x40] sm:$0xff]
      %v761 = vld [vmem:[#allocation2 + $0x48] sm:$0xff]
      %v762 = vld [vmem:[#allocation2 + $0x50] sm:$0xff]
      %v763 = vld [vmem:[#allocation2 + $0x58] sm:$0xff]
      %v764 = vld [vmem:[#allocation2 + $0x60] sm:$0xff]
      %v765 = vld [vmem:[#allocation2 + $0x68] sm:$0xff]
      %v766 = vld [vmem:[#allocation2 + $0x70] sm:$0xff]
      %v767 = vld [vmem:[#allocation2 + $0x78] sm:$0xff]
      %v768 = vld [vmem:[#allocation2 + $0x80] sm:$0xff]
      %v769 = vld [vmem:[#allocation2 + $0x88] sm:$0xff]
      %v770 = vld [vmem:[#allocation2 + $0x90] sm:$0xff]
      %v771 = vld [vmem:[#allocation2 + $0x98] sm:$0xff]
      %v792 = vunpack.c.l.b16 %v752
      %v793 = vunpack.c.h.b16 %v752
      %v794 = vunpack.c.l.b16 %v753
      %v795 = vunpack.c.h.b16 %v753
      %v796 = vunpack.c.l.b16 %v754
      %v797 = vunpack.c.h.b16 %v754
      %v798 = vunpack.c.l.b16 %v755
      %v799 = vunpack.c.h.b16 %v755
      %v800 = vunpack.c.l.b16 %v756
      %v801 = vunpack.c.h.b16 %v756
      %v802 = vunpack.c.l.b16 %v757
      %v803 = vunpack.c.h.b16 %v757
      %v804 = vunpack.c.l.b16 %v758
      %v805 = vunpack.c.h.b16 %v758
      %v806 = vunpack.c.l.b16 %v759
      %v807 = vunpack.c.h.b16 %v759
      %v808 = vunpack.c.l.b16 %v760
      %v809 = vunpack.c.h.b16 %v760
      %v810 = vunpack.c.l.b16 %v761
      %v811 = vunpack.c.h.b16 %v761
      %v812 = vunpack.c.l.b16 %v762
      %v813 = vunpack.c.h.b16 %v762
      %v814 = vunpack.c.l.b16 %v763
      %v815 = vunpack.c.h.b16 %v763
      %v816 = vunpack.c.l.b16 %v764
      %v817 = vunpack.c.h.b16 %v764
      %v818 = vunpack.c.l.b16 %v765
      %v819 = vunpack.c.h.b16 %v765
      %v820 = vunpack.c.l.b16 %v766
      %v821 = vunpack.c.h.b16 %v766
      %v822 = vunpack.c.l.b16 %v767
      %v823 = vunpack.c.h.b16 %v767
      %v824 = vunpack.c.l.b16 %v768
      %v825 = vunpack.c.h.b16 %v768
      %v826 = vunpack.c.l.b16 %v769
      %v827 = vunpack.c.h.b16 %v769
      %v828 = vunpack.c.l.b16 %v770
      %v829 = vunpack.c.h.b16 %v770
      %v830 = vunpack.c.l.b16 %v771
      %v831 = vunpack.c.h.b16 %v771
      %v832 = vpack.c.b16 %v796, %v792
      %v833 = vpack.c.b16 %v797, %v793
      %v834 = vpack.c.b16 %v798, %v794
      %v835 = vpack.c.b16 %v799, %v795
      %v836 = vpack.c.b16 %v804, %v800
      %v837 = vpack.c.b16 %v805, %v801
      %v838 = vpack.c.b16 %v806, %v802
      %v839 = vpack.c.b16 %v807, %v803
      %v840 = vpack.c.b16 %v812, %v808
      %v841 = vpack.c.b16 %v813, %v809
      %v842 = vpack.c.b16 %v814, %v810
      %v843 = vpack.c.b16 %v815, %v811
      %v844 = vpack.c.b16 %v820, %v816
      %v845 = vpack.c.b16 %v821, %v817
      %v846 = vpack.c.b16 %v822, %v818
      %v847 = vpack.c.b16 %v823, %v819
      %v848 = vpack.c.b16 %v828, %v824
      %v849 = vpack.c.b16 %v829, %v825
      %v850 = vpack.c.b16 %v830, %v826
      %v851 = vpack.c.b16 %v831, %v827
      %vm872 = vcmask 654336
      %v874 = vsel %vm872, %v751, 0
      %876 = vmatprep.subr.bf16.mxu0 0
      %877 = vmatpush1.bf16.msra.mxu0 0
      %878 = vmatprep.subr.bf16.mxu0 0
      %879 = vmatpush1.bf16.msra.mxu0 0
      %880 = vmatprep.subr.bf16.mxu0 0
      %881 = vmatpush1.bf16.msra.mxu0 0
      %882 = vmatprep.subr.bf16.mxu0 %v849
      %883 = vmatpush1.bf16.msra.mxu0 %v848
      %884 = vmatprep.subr.bf16.mxu0 %v845
      %885 = vmatpush1.bf16.msra.mxu0 %v844
      %886 = vmatprep.subr.bf16.mxu0 %v841
      %887 = vmatpush1.bf16.msra.mxu0 %v840
      %888 = vmatprep.subr.bf16.mxu0 %v837
      %889 = vmatpush1.bf16.msra.mxu0 %v836
      %890 = vmatprep.subr.bf16.mxu0 %v833
      %891 = vmatpush1.bf16.msra.mxu0 %v832
      %892 = vmatprep.subr.bf16.mxu0 0
      %893 = vmatpush2.bf16.msra.mxu0 0
      %894 = vmatprep.subr.bf16.mxu0 0
      %895 = vmatpush2.bf16.msra.mxu0 0
      %896 = vmatprep.subr.bf16.mxu0 0
      %897 = vmatpush2.bf16.msra.mxu0 0
      %898 = vmatprep.subr.bf16.mxu0 0
      %899 = vmatpush2.bf16.msra.mxu0 0
      %900 = vmatprep.subr.bf16.mxu0 0
      %901 = vmatpush2.bf16.msra.mxu0 0
      %902 = vmatprep.subr.bf16.mxu0 0
      %903 = vmatpush2.bf16.msra.mxu0 0
      %904 = vmatprep.subr.bf16.mxu0 0
      %905 = vmatpush2.bf16.msra.mxu0 0
      %906 = vmatprep.subr.bf16.mxu0 0
      %907 = vmatpush2.bf16.msra.mxu0 0
      %908 = vmatprep.mubr.bf16.mxu0 0
      %909 = vmatmul.mubr.bf16.gmra.mxu0 %v874
      %v910 = vpop.f32.mrf.mxu0
      %v911 = vadd.f32 0.0, %v910
      %v912 = vpop.f32.mrf.mxu0
      %v913 = vadd.f32 0.0, %v912
      %v914 = vpop.f32.mrf.mxu0
      %v915 = vpop.f32.mrf.mxu0
      %916 = vdwg.mxu0
      %917 = vmatprep.subr.bf16.mxu0 0
      %918 = vmatpush1.bf16.msra.mxu0 0
      %919 = vmatprep.subr.bf16.mxu0 0
      %920 = vmatpush1.bf16.msra.mxu0 0
      %921 = vmatprep.subr.bf16.mxu0 0
      %922 = vmatpush1.bf16.msra.mxu0 0
      %923 = vmatprep.subr.bf16.mxu0 %v851
      %924 = vmatpush1.bf16.msra.mxu0 %v850
      %925 = vmatprep.subr.bf16.mxu0 %v847
      %926 = vmatpush1.bf16.msra.mxu0 %v846
      %927 = vmatprep.subr.bf16.mxu0 %v843
      %928 = vmatpush1.bf16.msra.mxu0 %v842
      %929 = vmatprep.subr.bf16.mxu0 %v839
      %930 = vmatpush1.bf16.msra.mxu0 %v838
      %931 = vmatprep.subr.bf16.mxu0 %v835
      %932 = vmatpush1.bf16.msra.mxu0 %v834
      %933 = vmatprep.subr.bf16.mxu0 0
      %934 = vmatpush2.bf16.msra.mxu0 0
      %935 = vmatprep.subr.bf16.mxu0 0
      %936 = vmatpush2.bf16.msra.mxu0 0
      %937 = vmatprep.subr.bf16.mxu0 0
      %938 = vmatpush2.bf16.msra.mxu0 0
      %939 = vmatprep.subr.bf16.mxu0 0
      %940 = vmatpush2.bf16.msra.mxu0 0
      %941 = vmatprep.subr.bf16.mxu0 0
      %942 = vmatpush2.bf16.msra.mxu0 0
      %943 = vmatprep.subr.bf16.mxu0 0
      %944 = vmatpush2.bf16.msra.mxu0 0
      %945 = vmatprep.subr.bf16.mxu0 0
      %946 = vmatpush2.bf16.msra.mxu0 0
      %947 = vmatprep.subr.bf16.mxu0 0
      %948 = vmatpush2.bf16.msra.mxu0 0
      %949 = vmatprep.mubr.bf16.mxu0 0
      %950 = vmatmul.mubr.bf16.gmra.mxu0 %v874
      %v951 = vpop.f32.mrf.mxu0
      %v952 = vadd.f32 0.0, %v951
      %v953 = vpop.f32.mrf.mxu0
      %v954 = vadd.f32 0.0, %v953
      %v955 = vpop.f32.mrf.mxu0
      %v956 = vpop.f32.mrf.mxu0
      %957 = vdwg.mxu0
      %v958 = vmul.f32 %v911, 0.2
      %v959 = vmul.f32 %v913, 0.2
      %v960 = vmul.f32 %v952, 0.2
      %v961 = vmul.f32 %v954, 0.2
      %v962 = vmax.f32 %v911, %v958
      %v963 = vmax.f32 %v913, %v959
      %v964 = vmax.f32 %v952, %v960
      %v965 = vmax.f32 %v954, %v961
      %966 = vrot.lane.b32.xlu0 %v962, 17
      %v967 = vpop.permute.xlu0 %966
      %968 = vrot.lane.b32.xlu0 %v963, 17
      %v969 = vpop.permute.xlu0 %968
      %970 = vrot.lane.b32.xlu0 %v964, 17
      %v971 = vpop.permute.xlu0 %970
      %972 = vrot.lane.b32.xlu0 %v965, 17
      %v973 = vpop.permute.xlu0 %972
      %v974 = vsel %vm333, %v971, %v973
      %v975 = vsel %vm333, %v969, %v971
      %v976 = vsel %vm333, %v967, %v969
      %v977 = vsel %vm333, %v973, %v967
      %v978 = vmul.f32 %v977, %v341
      %v979 = vmul.f32 %v976, %v345
      %v980 = vmul.f32 %v975, %v349
      %v981 = vmul.f32 %v974, %v353
      %v982 = vpack.c.bf16 %v978, %v978
      %v983 = vpack.c.bf16 %v979, %v979
      %v984 = vpack.c.bf16 %v980, %v980
      %v985 = vpack.c.bf16 %v981, %v981
      %v990 = vunpack.c.l.b16 %v982
      %v991 = vunpack.c.l.b16 %v983
      %v992 = vunpack.c.l.b16 %v984
      %v993 = vunpack.c.l.b16 %v985
      %v994 = vpack.c.b16 %v991, %v990
      %v995 = vpack.c.b16 %v993, %v992
      %998 = vst [vmem:[#allocation2 + $0xa0] sm:$0xff] %v994
      %999 = vst [vmem:[#allocation2 + $0xa8] sm:$0xff] %v995
      %1000 = vrot.lane.b32.xlu0 %v962, 16
      %v1001 = vpop.permute.xlu0 %1000
      %1002 = vrot.lane.b32.xlu0 %v963, 16
      %v1003 = vpop.permute.xlu0 %1002
      %1004 = vrot.lane.b32.xlu0 %v964, 16
      %v1005 = vpop.permute.xlu0 %1004
      %1006 = vrot.lane.b32.xlu0 %v965, 16
      %v1007 = vpop.permute.xlu0 %1006
      %v1008 = vsel %vm384, %v1005, %v1007
      %v1009 = vsel %vm384, %v1003, %v1005
      %v1010 = vsel %vm384, %v1001, %v1003
      %v1011 = vsel %vm384, %v1007, %v1001
      %v1012 = vmul.f32 %v1011, %v392
      %v1013 = vmul.f32 %v1010, %v396
      %v1014 = vmul.f32 %v1009, %v400
      %v1015 = vmul.f32 %v1008, %v404
      %v1016 = vpack.c.bf16 %v1012, %v1012
      %v1017 = vpack.c.bf16 %v1013, %v1013
      %v1018 = vpack.c.bf16 %v1014, %v1014
      %v1019 = vpack.c.bf16 %v1015, %v1015
      %v1024 = vunpack.c.l.b16 %v1016
      %v1025 = vunpack.c.l.b16 %v1017
      %v1026 = vunpack.c.l.b16 %v1018
      %v1027 = vunpack.c.l.b16 %v1019
      %v1028 = vpack.c.b16 %v1025, %v1024
      %v1029 = vpack.c.b16 %v1027, %v1026
      %1032 = vst [vmem:[#allocation2 + $0xb0] sm:$0xff] %v1028
      %1033 = vst [vmem:[#allocation2 + $0xb8] sm:$0xff] %v1029
      %1034 = vrot.lane.b32.xlu0 %v962, 15
      %v1035 = vpop.permute.xlu0 %1034
      %1036 = vrot.lane.b32.xlu0 %v963, 15
      %v1037 = vpop.permute.xlu0 %1036
      %1038 = vrot.lane.b32.xlu0 %v964, 15
      %v1039 = vpop.permute.xlu0 %1038
      %1040 = vrot.lane.b32.xlu0 %v965, 15
      %v1041 = vpop.permute.xlu0 %1040
      %v1042 = vsel %vm435, %v1039, %v1041
      %v1043 = vsel %vm435, %v1037, %v1039
      %v1044 = vsel %vm435, %v1035, %v1037
      %v1045 = vsel %vm435, %v1041, %v1035
      %v1046 = vmul.f32 %v1045, %v443
      %v1047 = vmul.f32 %v1044, %v447
      %v1048 = vmul.f32 %v1043, %v451
      %v1049 = vmul.f32 %v1042, %v455
      %v1050 = vpack.c.bf16 %v1046, %v1046
      %v1051 = vpack.c.bf16 %v1047, %v1047
      %v1052 = vpack.c.bf16 %v1048, %v1048
      %v1053 = vpack.c.bf16 %v1049, %v1049
      %v1058 = vunpack.c.l.b16 %v1050
      %v1059 = vunpack.c.l.b16 %v1051
      %v1060 = vunpack.c.l.b16 %v1052
      %v1061 = vunpack.c.l.b16 %v1053
      %v1062 = vpack.c.b16 %v1059, %v1058
      %v1063 = vpack.c.b16 %v1061, %v1060
      %1066 = vst [vmem:[#allocation2 + $0xc0] sm:$0xff] %v1062
      %1067 = vst [vmem:[#allocation2 + $0xc8] sm:$0xff] %v1063
      %1068 = vrot.lane.b32.xlu0 %v962, 1
      %v1069 = vpop.permute.xlu0 %1068
      %1070 = vrot.lane.b32.xlu0 %v963, 1
      %v1071 = vpop.permute.xlu0 %1070
      %1072 = vrot.lane.b32.xlu0 %v964, 1
      %v1073 = vpop.permute.xlu0 %1072
      %1074 = vrot.lane.b32.xlu0 %v965, 1
      %v1075 = vpop.permute.xlu0 %1074
      %v1076 = vsel %vm486, %v1073, %v1075
      %v1077 = vsel %vm486, %v1071, %v1073
      %v1078 = vsel %vm486, %v1069, %v1071
      %v1079 = vsel %vm486, %v1075, %v1069
      %v1080 = vmul.f32 %v1079, %v494
      %v1081 = vmul.f32 %v1078, %v498
      %v1082 = vmul.f32 %v1077, %v502
      %v1083 = vmul.f32 %v1076, %v506
      %v1084 = vpack.c.bf16 %v1080, %v1080
      %v1085 = vpack.c.bf16 %v1081, %v1081
      %v1086 = vpack.c.bf16 %v1082, %v1082
      %v1087 = vpack.c.bf16 %v1083, %v1083
      %v1092 = vunpack.c.l.b16 %v1084
      %v1093 = vunpack.c.l.b16 %v1085
      %v1094 = vunpack.c.l.b16 %v1086
      %v1095 = vunpack.c.l.b16 %v1087
      %v1096 = vpack.c.b16 %v1093, %v1092
      %v1097 = vpack.c.b16 %v1095, %v1094
      %1100 = vst [vmem:[#allocation2 + $0xd0] sm:$0xff] %v1096
      %1101 = vst [vmem:[#allocation2 + $0xd8] sm:$0xff] %v1097
      %v1102 = vpack.c.bf16 %v962, %v962
      %v1103 = vpack.c.bf16 %v963, %v963
      %v1104 = vpack.c.bf16 %v964, %v964
      %v1105 = vpack.c.bf16 %v965, %v965
      %v1110 = vunpack.c.l.b16 %v1102
      %v1111 = vunpack.c.l.b16 %v1103
      %v1112 = vunpack.c.l.b16 %v1104
      %v1113 = vunpack.c.l.b16 %v1105
      %v1114 = vpack.c.b16 %v1111, %v1110
      %v1115 = vpack.c.b16 %v1113, %v1112
      %1118 = vst [vmem:[#allocation2 + $0xe0] sm:$0xff] %v1114
      %1119 = vst [vmem:[#allocation2 + $0xe8] sm:$0xff] %v1115
      %1120 = vrot.lane.b32.xlu0 %v962, 127
      %v1121 = vpop.permute.xlu0 %1120
      %1122 = vrot.lane.b32.xlu0 %v963, 127
      %v1123 = vpop.permute.xlu0 %1122
      %1124 = vrot.lane.b32.xlu0 %v964, 127
      %v1125 = vpop.permute.xlu0 %1124
      %1126 = vrot.lane.b32.xlu0 %v965, 127
      %v1127 = vpop.permute.xlu0 %1126
      %v1128 = vsel %vm555, %v1125, %v1127
      %v1129 = vsel %vm555, %v1123, %v1125
      %v1130 = vsel %vm555, %v1121, %v1123
      %v1131 = vsel %vm555, %v1127, %v1121
      %v1132 = vmul.f32 %v1130, %v563
      %v1133 = vmul.f32 %v1129, %v567
      %v1134 = vmul.f32 %v1128, %v571
      %v1135 = vmul.f32 %v1131, %v575
      %v1136 = vpack.c.bf16 %v1132, %v1132
      %v1137 = vpack.c.bf16 %v1133, %v1133
      %v1138 = vpack.c.bf16 %v1134, %v1134
      %v1139 = vpack.c.bf16 %v1135, %v1135
      %v1144 = vunpack.c.l.b16 %v1136
      %v1145 = vunpack.c.l.b16 %v1137
      %v1146 = vunpack.c.l.b16 %v1138
      %v1147 = vunpack.c.l.b16 %v1139
      %v1148 = vpack.c.b16 %v1145, %v1144
      %v1149 = vpack.c.b16 %v1147, %v1146
      %1152 = vst [vmem:[#allocation2 + $0xf0] sm:$0xff] %v1148
      %1153 = vst [vmem:[#allocation2 + $0xf8] sm:$0xff] %v1149
      %1154 = vrot.lane.b32.xlu0 %v962, 113
      %v1155 = vpop.permute.xlu0 %1154
      %1156 = vrot.lane.b32.xlu0 %v963, 113
      %v1157 = vpop.permute.xlu0 %1156
      %1158 = vrot.lane.b32.xlu0 %v964, 113
      %v1159 = vpop.permute.xlu0 %1158
      %1160 = vrot.lane.b32.xlu0 %v965, 113
      %v1161 = vpop.permute.xlu0 %1160
      %v1162 = vsel %vm606, %v1159, %v1161
      %v1163 = vsel %vm606, %v1157, %v1159
      %v1164 = vsel %vm606, %v1155, %v1157
      %v1165 = vsel %vm606, %v1161, %v1155
      %v1166 = vmul.f32 %v1164, %v614
      %v1167 = vmul.f32 %v1163, %v618
      %v1168 = vmul.f32 %v1162, %v622
      %v1169 = vmul.f32 %v1165, %v626
      %v1170 = vpack.c.bf16 %v1166, %v1166
      %v1171 = vpack.c.bf16 %v1167, %v1167
      %v1172 = vpack.c.bf16 %v1168, %v1168
      %v1173 = vpack.c.bf16 %v1169, %v1169
      %v1178 = vunpack.c.l.b16 %v1170
      %v1179 = vunpack.c.l.b16 %v1171
      %v1180 = vunpack.c.l.b16 %v1172
      %v1181 = vunpack.c.l.b16 %v1173
      %v1182 = vpack.c.b16 %v1179, %v1178
      %v1183 = vpack.c.b16 %v1181, %v1180
      %1186 = vst [vmem:[#allocation2 + $0x100] sm:$0xff] %v1182
      %1187 = vst [vmem:[#allocation2 + $0x108] sm:$0xff] %v1183
      %1188 = vrot.lane.b32.xlu0 %v962, 112
      %v1189 = vpop.permute.xlu0 %1188
      %1190 = vrot.lane.b32.xlu0 %v963, 112
      %v1191 = vpop.permute.xlu0 %1190
      %1192 = vrot.lane.b32.xlu0 %v964, 112
      %v1193 = vpop.permute.xlu0 %1192
      %1194 = vrot.lane.b32.xlu0 %v965, 112
      %v1195 = vpop.permute.xlu0 %1194
      %v1196 = vsel %vm657, %v1193, %v1195
      %v1197 = vsel %vm657, %v1191, %v1193
      %v1198 = vsel %vm657, %v1189, %v1191
      %v1199 = vsel %vm657, %v1195, %v1189
      %v1200 = vmul.f32 %v1198, %v665
      %v1201 = vmul.f32 %v1197, %v669
      %v1202 = vmul.f32 %v1196, %v673
      %v1203 = vmul.f32 %v1199, %v677
      %v1204 = vpack.c.bf16 %v1200, %v1200
      %v1205 = vpack.c.bf16 %v1201, %v1201
      %v1206 = vpack.c.bf16 %v1202, %v1202
      %v1207 = vpack.c.bf16 %v1203, %v1203
      %v1212 = vunpack.c.l.b16 %v1204
      %v1213 = vunpack.c.l.b16 %v1205
      %v1214 = vunpack.c.l.b16 %v1206
      %v1215 = vunpack.c.l.b16 %v1207
      %v1216 = vpack.c.b16 %v1213, %v1212
      %v1217 = vpack.c.b16 %v1215, %v1214
      %1220 = vst [vmem:[#allocation2 + $0x110] sm:$0xff] %v1216
      %1221 = vst [vmem:[#allocation2 + $0x118] sm:$0xff] %v1217
      %1222 = vrot.lane.b32.xlu0 %v962, 111
      %v1223 = vpop.permute.xlu0 %1222
      %1224 = vrot.lane.b32.xlu0 %v963, 111
      %v1225 = vpop.permute.xlu0 %1224
      %1226 = vrot.lane.b32.xlu0 %v964, 111
      %v1227 = vpop.permute.xlu0 %1226
      %1228 = vrot.lane.b32.xlu0 %v965, 111
      %v1229 = vpop.permute.xlu0 %1228
      %v1230 = vsel %vm708, %v1227, %v1229
      %v1231 = vsel %vm708, %v1225, %v1227
      %v1232 = vsel %vm708, %v1223, %v1225
      %v1233 = vsel %vm708, %v1229, %v1223
      %v1234 = vmul.f32 %v1232, %v716
      %v1235 = vmul.f32 %v1231, %v720
      %v1236 = vmul.f32 %v1230, %v724
      %v1237 = vmul.f32 %v1233, %v728
      %v1238 = vpack.c.bf16 %v1234, %v1234
      %v1239 = vpack.c.bf16 %v1235, %v1235
      %v1240 = vpack.c.bf16 %v1236, %v1236
      %v1241 = vpack.c.bf16 %v1237, %v1237
      %v1246 = vunpack.c.l.b16 %v1238
      %v1247 = vunpack.c.l.b16 %v1239
      %v1248 = vunpack.c.l.b16 %v1240
      %v1249 = vunpack.c.l.b16 %v1241
      %v1250 = vpack.c.b16 %v1247, %v1246
      %v1251 = vpack.c.b16 %v1249, %v1248
      %1254 = vst [vmem:[#allocation2 + $0x120] sm:$0xff] %v1250
      %1255 = vst [vmem:[#allocation2 + $0x128] sm:$0xff] %v1251
      %v1256 = vld [vmem:[%s3] sm:$0xff]
      %v1257 = vld [vmem:[#allocation2] sm:$0xff]
      %v1258 = vld [vmem:[#allocation2 + $0x8] sm:$0xff]
      %v1259 = vld [vmem:[#allocation2 + $0x10] sm:$0xff]
      %v1260 = vld [vmem:[#allocation2 + $0x18] sm:$0xff]
      %v1261 = vld [vmem:[#allocation2 + $0x20] sm:$0xff]
      %v1262 = vld [vmem:[#allocation2 + $0x28] sm:$0xff]
      %v1263 = vld [vmem:[#allocation2 + $0x30] sm:$0xff]
      %v1264 = vld [vmem:[#allocation2 + $0x38] sm:$0xff]
      %v1265 = vld [vmem:[#allocation2 + $0x40] sm:$0xff]
      %v1266 = vld [vmem:[#allocation2 + $0x48] sm:$0xff]
      %v1267 = vld [vmem:[#allocation2 + $0x50] sm:$0xff]
      %v1268 = vld [vmem:[#allocation2 + $0x58] sm:$0xff]
      %v1269 = vld [vmem:[#allocation2 + $0x60] sm:$0xff]
      %v1270 = vld [vmem:[#allocation2 + $0x68] sm:$0xff]
      %v1271 = vld [vmem:[#allocation2 + $0x70] sm:$0xff]
      %v1272 = vld [vmem:[#allocation2 + $0x78] sm:$0xff]
      %v1273 = vld [vmem:[#allocation2 + $0x80] sm:$0xff]
      %v1274 = vld [vmem:[#allocation2 + $0x88] sm:$0xff]
      %v1275 = vld [vmem:[#allocation2 + $0x90] sm:$0xff]
      %v1276 = vld [vmem:[#allocation2 + $0x98] sm:$0xff]
      %v1277 = vld [vmem:[#allocation2 + $0xa0] sm:$0xff]
      %v1278 = vld [vmem:[#allocation2 + $0xa8] sm:$0xff]
      %v1279 = vld [vmem:[#allocation2 + $0xb0] sm:$0xff]
      %v1280 = vld [vmem:[#allocation2 + $0xb8] sm:$0xff]
      %v1281 = vld [vmem:[#allocation2 + $0xc0] sm:$0xff]
      %v1282 = vld [vmem:[#allocation2 + $0xc8] sm:$0xff]
      %v1283 = vld [vmem:[#allocation2 + $0xd0] sm:$0xff]
      %v1284 = vld [vmem:[#allocation2 + $0xd8] sm:$0xff]
      %v1285 = vld [vmem:[#allocation2 + $0xe0] sm:$0xff]
      %v1286 = vld [vmem:[#allocation2 + $0xe8] sm:$0xff]
      %v1287 = vld [vmem:[#allocation2 + $0xf0] sm:$0xff]
      %v1288 = vld [vmem:[#allocation2 + $0xf8] sm:$0xff]
      %v1289 = vld [vmem:[#allocation2 + $0x100] sm:$0xff]
      %v1290 = vld [vmem:[#allocation2 + $0x108] sm:$0xff]
      %v1291 = vld [vmem:[#allocation2 + $0x110] sm:$0xff]
      %v1292 = vld [vmem:[#allocation2 + $0x118] sm:$0xff]
      %v1293 = vld [vmem:[#allocation2 + $0x120] sm:$0xff]
      %v1294 = vld [vmem:[#allocation2 + $0x128] sm:$0xff]
      %v1296 = vunpack.c.l.b16 %v1256
      %v1297 = vunpack.c.h.b16 %v1256
      %v1298 = vpack.c.b16 %v1296, %v1296
      %v1299 = vpack.c.b16 %v1297, %v1297
      %v1339 = vunpack.c.l.b16 %v1257
      %v1340 = vunpack.c.h.b16 %v1257
      %v1341 = vunpack.c.l.b16 %v1258
      %v1342 = vunpack.c.h.b16 %v1258
      %v1343 = vunpack.c.l.b16 %v1259
      %v1344 = vunpack.c.h.b16 %v1259
      %v1345 = vunpack.c.l.b16 %v1260
      %v1346 = vunpack.c.h.b16 %v1260
      %v1347 = vunpack.c.l.b16 %v1261
      %v1348 = vunpack.c.h.b16 %v1261
      %v1349 = vunpack.c.l.b16 %v1262
      %v1350 = vunpack.c.h.b16 %v1262
      %v1351 = vunpack.c.l.b16 %v1263
      %v1352 = vunpack.c.h.b16 %v1263
      %v1353 = vunpack.c.l.b16 %v1264
      %v1354 = vunpack.c.h.b16 %v1264
      %v1355 = vunpack.c.l.b16 %v1265
      %v1356 = vunpack.c.h.b16 %v1265
      %v1357 = vunpack.c.l.b16 %v1266
      %v1358 = vunpack.c.h.b16 %v1266
      %v1359 = vunpack.c.l.b16 %v1267
      %v1360 = vunpack.c.h.b16 %v1267
      %v1361 = vunpack.c.l.b16 %v1268
      %v1362 = vunpack.c.h.b16 %v1268
      %v1363 = vunpack.c.l.b16 %v1269
      %v1364 = vunpack.c.h.b16 %v1269
      %v1365 = vunpack.c.l.b16 %v1270
      %v1366 = vunpack.c.h.b16 %v1270
      %v1367 = vunpack.c.l.b16 %v1271
      %v1368 = vunpack.c.h.b16 %v1271
      %v1369 = vunpack.c.l.b16 %v1272
      %v1370 = vunpack.c.h.b16 %v1272
      %v1371 = vunpack.c.l.b16 %v1273
      %v1372 = vunpack.c.h.b16 %v1273
      %v1373 = vunpack.c.l.b16 %v1274
      %v1374 = vunpack.c.h.b16 %v1274
      %v1375 = vunpack.c.l.b16 %v1275
      %v1376 = vunpack.c.h.b16 %v1275
      %v1377 = vunpack.c.l.b16 %v1276
      %v1378 = vunpack.c.h.b16 %v1276
      %v1379 = vunpack.c.l.b16 %v1277
      %v1380 = vunpack.c.h.b16 %v1277
      %v1381 = vunpack.c.l.b16 %v1278
      %v1382 = vunpack.c.h.b16 %v1278
      %v1383 = vunpack.c.l.b16 %v1279
      %v1384 = vunpack.c.h.b16 %v1279
      %v1385 = vunpack.c.l.b16 %v1280
      %v1386 = vunpack.c.h.b16 %v1280
      %v1387 = vunpack.c.l.b16 %v1281
      %v1388 = vunpack.c.h.b16 %v1281
      %v1389 = vunpack.c.l.b16 %v1282
      %v1390 = vunpack.c.h.b16 %v1282
      %v1391 = vunpack.c.l.b16 %v1283
      %v1392 = vunpack.c.h.b16 %v1283
      %v1393 = vunpack.c.l.b16 %v1284
      %v1394 = vunpack.c.h.b16 %v1284
      %v1395 = vunpack.c.l.b16 %v1285
      %v1396 = vunpack.c.h.b16 %v1285
      %v1397 = vunpack.c.l.b16 %v1286
      %v1398 = vunpack.c.h.b16 %v1286
      %v1399 = vunpack.c.l.b16 %v1287
      %v1400 = vunpack.c.h.b16 %v1287
      %v1401 = vunpack.c.l.b16 %v1288
      %v1402 = vunpack.c.h.b16 %v1288
      %v1403 = vunpack.c.l.b16 %v1289
      %v1404 = vunpack.c.h.b16 %v1289
      %v1405 = vunpack.c.l.b16 %v1290
      %v1406 = vunpack.c.h.b16 %v1290
      %v1407 = vunpack.c.l.b16 %v1291
      %v1408 = vunpack.c.h.b16 %v1291
      %v1409 = vunpack.c.l.b16 %v1292
      %v1410 = vunpack.c.h.b16 %v1292
      %v1411 = vunpack.c.l.b16 %v1293
      %v1412 = vunpack.c.h.b16 %v1293
      %v1413 = vunpack.c.l.b16 %v1294
      %v1414 = vunpack.c.h.b16 %v1294
      %v1415 = vpack.c.b16 %v1343, %v1339
      %v1416 = vpack.c.b16 %v1344, %v1340
      %v1417 = vpack.c.b16 %v1345, %v1341
      %v1418 = vpack.c.b16 %v1346, %v1342
      %v1419 = vpack.c.b16 %v1351, %v1347
      %v1420 = vpack.c.b16 %v1352, %v1348
      %v1421 = vpack.c.b16 %v1353, %v1349
      %v1422 = vpack.c.b16 %v1354, %v1350
      %v1423 = vpack.c.b16 %v1359, %v1355
      %v1424 = vpack.c.b16 %v1360, %v1356
      %v1425 = vpack.c.b16 %v1361, %v1357
      %v1426 = vpack.c.b16 %v1362, %v1358
      %v1427 = vpack.c.b16 %v1367, %v1363
      %v1428 = vpack.c.b16 %v1368, %v1364
      %v1429 = vpack.c.b16 %v1369, %v1365
      %v1430 = vpack.c.b16 %v1370, %v1366
      %v1431 = vpack.c.b16 %v1375, %v1371
      %v1432 = vpack.c.b16 %v1376, %v1372
      %v1433 = vpack.c.b16 %v1377, %v1373
      %v1434 = vpack.c.b16 %v1378, %v1374
      %v1435 = vpack.c.b16 %v1383, %v1379
      %v1436 = vpack.c.b16 %v1384, %v1380
      %v1437 = vpack.c.b16 %v1385, %v1381
      %v1438 = vpack.c.b16 %v1386, %v1382
      %v1439 = vpack.c.b16 %v1391, %v1387
      %v1440 = vpack.c.b16 %v1392, %v1388
      %v1441 = vpack.c.b16 %v1393, %v1389
      %v1442 = vpack.c.b16 %v1394, %v1390
      %v1443 = vpack.c.b16 %v1399, %v1395
      %v1444 = vpack.c.b16 %v1400, %v1396
      %v1445 = vpack.c.b16 %v1401, %v1397
      %v1446 = vpack.c.b16 %v1402, %v1398
      %v1447 = vpack.c.b16 %v1407, %v1403
      %v1448 = vpack.c.b16 %v1408, %v1404
      %v1449 = vpack.c.b16 %v1409, %v1405
      %v1450 = vpack.c.b16 %v1410, %v1406
      %v1451 = vpack.c.b16 %v1411, %v1411
      %v1452 = vpack.c.b16 %v1412, %v1412
      %v1453 = vpack.c.b16 %v1413, %v1413
      %v1454 = vpack.c.b16 %v1414, %v1414
      %vm1491 = vcmask 195584
      %v1493 = vsel %vm1491, %v1299, 0
      %vm1495 = vcmask 1043456
      %v1497 = vsel %vm1495, %v1451, 0
      %v1500 = vsel %vm1495, %v1452, 0
      %v1503 = vsel %vm1495, %v1453, 0
      %v1506 = vsel %vm1495, %v1454, 0
      %1508 = vmatprep.subr.bf16.mxu0 %v1444
      %1509 = vmatpush1.bf16.msra.mxu0 %v1443
      %1510 = vmatprep.subr.bf16.mxu0 %v1440
      %1511 = vmatpush1.bf16.msra.mxu0 %v1439
      %1512 = vmatprep.subr.bf16.mxu0 %v1436
      %1513 = vmatpush1.bf16.msra.mxu0 %v1435
      %1514 = vmatprep.subr.bf16.mxu0 %v1432
      %1515 = vmatpush1.bf16.msra.mxu0 %v1431
      %1516 = vmatprep.subr.bf16.mxu0 %v1428
      %1517 = vmatpush1.bf16.msra.mxu0 %v1427
      %1518 = vmatprep.subr.bf16.mxu0 %v1424
      %1519 = vmatpush1.bf16.msra.mxu0 %v1423
      %1520 = vmatprep.subr.bf16.mxu0 %v1420
      %1521 = vmatpush1.bf16.msra.mxu0 %v1419
      %1522 = vmatprep.subr.bf16.mxu0 %v1416
      %1523 = vmatpush1.bf16.msra.mxu0 %v1415
      %1524 = vmatprep.subr.bf16.mxu0 0
      %1525 = vmatpush2.bf16.msra.mxu0 0
      %1526 = vmatprep.subr.bf16.mxu0 0
      %1527 = vmatpush2.bf16.msra.mxu0 0
      %1528 = vmatprep.subr.bf16.mxu0 0
      %1529 = vmatpush2.bf16.msra.mxu0 0
      %1530 = vmatprep.subr.bf16.mxu0 0
      %1531 = vmatpush2.bf16.msra.mxu0 0
      %1532 = vmatprep.subr.bf16.mxu0 0
      %1533 = vmatpush2.bf16.msra.mxu0 0
      %1534 = vmatprep.subr.bf16.mxu0 0
      %1535 = vmatpush2.bf16.msra.mxu0 0
      %1536 = vmatprep.subr.bf16.mxu0 %v1500
      %1537 = vmatpush2.bf16.msra.mxu0 %v1497
      %1538 = vmatprep.subr.bf16.mxu0 %v1448
      %1539 = vmatpush2.bf16.msra.mxu0 %v1447
      %1540 = vmatprep.mubr.bf16.mxu0 %v1493
      %1541 = vmatmul.mubr.bf16.gmra.mxu0 %v1298
      %v1542 = vpop.f32.mrf.mxu0
      %v1543 = vadd.f32 0.0, %v1542
      %v1544 = vpop.f32.mrf.mxu0
      %v1545 = vadd.f32 0.0, %v1544
      %v1546 = vpop.f32.mrf.mxu0
      %v1547 = vpop.f32.mrf.mxu0
      %1548 = vdwg.mxu0
      %1549 = vmatprep.subr.bf16.mxu0 %v1446
      %1550 = vmatpush1.bf16.msra.mxu0 %v1445
      %1551 = vmatprep.subr.bf16.mxu0 %v1442
      %1552 = vmatpush1.bf16.msra.mxu0 %v1441
      %1553 = vmatprep.subr.bf16.mxu0 %v1438
      %1554 = vmatpush1.bf16.msra.mxu0 %v1437
      %1555 = vmatprep.subr.bf16.mxu0 %v1434
      %1556 = vmatpush1.bf16.msra.mxu0 %v1433
      %1557 = vmatprep.subr.bf16.mxu0 %v1430
      %1558 = vmatpush1.bf16.msra.mxu0 %v1429
      %1559 = vmatprep.subr.bf16.mxu0 %v1426
      %1560 = vmatpush1.bf16.msra.mxu0 %v1425
      %1561 = vmatprep.subr.bf16.mxu0 %v1422
      %1562 = vmatpush1.bf16.msra.mxu0 %v1421
      %1563 = vmatprep.subr.bf16.mxu0 %v1418
      %1564 = vmatpush1.bf16.msra.mxu0 %v1417
      %1565 = vmatprep.subr.bf16.mxu0 0
      %1566 = vmatpush2.bf16.msra.mxu0 0
      %1567 = vmatprep.subr.bf16.mxu0 0
      %1568 = vmatpush2.bf16.msra.mxu0 0
      %1569 = vmatprep.subr.bf16.mxu0 0
      %1570 = vmatpush2.bf16.msra.mxu0 0
      %1571 = vmatprep.subr.bf16.mxu0 0
      %1572 = vmatpush2.bf16.msra.mxu0 0
      %1573 = vmatprep.subr.bf16.mxu0 0
      %1574 = vmatpush2.bf16.msra.mxu0 0
      %1575 = vmatprep.subr.bf16.mxu0 0
      %1576 = vmatpush2.bf16.msra.mxu0 0
      %1577 = vmatprep.subr.bf16.mxu0 %v1506
      %1578 = vmatpush2.bf16.msra.mxu0 %v1503
      %1579 = vmatprep.subr.bf16.mxu0 %v1450
      %1580 = vmatpush2.bf16.msra.mxu0 %v1449
      %1581 = vmatprep.mubr.bf16.mxu0 %v1493
      %1582 = vmatmul.mubr.bf16.gmra.mxu0 %v1298
      %v1583 = vpop.f32.mrf.mxu0
      %v1584 = vadd.f32 0.0, %v1583
      %v1585 = vpop.f32.mrf.mxu0
      %v1586 = vadd.f32 0.0, %v1585
      %v1587 = vpop.f32.mrf.mxu0
      %v1588 = vpop.f32.mrf.mxu0
      %1589 = vdwg.mxu0
      %v1590 = vmul.f32 %v1543, 0.2
      %v1591 = vmul.f32 %v1545, 0.2
      %v1592 = vmul.f32 %v1584, 0.2
      %v1593 = vmul.f32 %v1586, 0.2
      %v1594 = vmax.f32 %v1543, %v1590
      %v1595 = vmax.f32 %v1545, %v1591
      %v1596 = vmax.f32 %v1584, %v1592
      %v1597 = vmax.f32 %v1586, %v1593
      %1598 = vrot.lane.b32.xlu0 %v1594, 17
      %v1599 = vpop.permute.xlu0 %1598
      %1600 = vrot.lane.b32.xlu0 %v1595, 17
      %v1601 = vpop.permute.xlu0 %1600
      %1602 = vrot.lane.b32.xlu0 %v1596, 17
      %v1603 = vpop.permute.xlu0 %1602
      %1604 = vrot.lane.b32.xlu0 %v1597, 17
      %v1605 = vpop.permute.xlu0 %1604
      %v1606 = vsel %vm333, %v1603, %v1605
      %v1607 = vsel %vm333, %v1601, %v1603
      %v1608 = vsel %vm333, %v1599, %v1601
      %v1609 = vsel %vm333, %v1605, %v1599
      %v1610 = vmul.f32 %v1609, %v341
      %v1611 = vmul.f32 %v1608, %v345
      %v1612 = vmul.f32 %v1607, %v349
      %v1613 = vmul.f32 %v1606, %v353
      %v1614 = vpack.c.bf16 %v1610, %v1610
      %v1615 = vpack.c.bf16 %v1611, %v1611
      %v1616 = vpack.c.bf16 %v1612, %v1612
      %v1617 = vpack.c.bf16 %v1613, %v1613
      %v1622 = vunpack.c.l.b16 %v1614
      %v1623 = vunpack.c.l.b16 %v1615
      %v1624 = vunpack.c.l.b16 %v1616
      %v1625 = vunpack.c.l.b16 %v1617
      %v1626 = vpack.c.b16 %v1623, %v1622
      %v1627 = vpack.c.b16 %v1625, %v1624
      %1630 = vst [vmem:[#allocation2 + $0x130] sm:$0xff] %v1626
      %1631 = vst [vmem:[#allocation2 + $0x138] sm:$0xff] %v1627
      %1632 = vrot.lane.b32.xlu0 %v1594, 16
      %v1633 = vpop.permute.xlu0 %1632
      %1634 = vrot.lane.b32.xlu0 %v1595, 16
      %v1635 = vpop.permute.xlu0 %1634
      %1636 = vrot.lane.b32.xlu0 %v1596, 16
      %v1637 = vpop.permute.xlu0 %1636
      %1638 = vrot.lane.b32.xlu0 %v1597, 16
      %v1639 = vpop.permute.xlu0 %1638
      %v1640 = vsel %vm384, %v1637, %v1639
      %v1641 = vsel %vm384, %v1635, %v1637
      %v1642 = vsel %vm384, %v1633, %v1635
      %v1643 = vsel %vm384, %v1639, %v1633
      %v1644 = vmul.f32 %v1643, %v392
      %v1645 = vmul.f32 %v1642, %v396
      %v1646 = vmul.f32 %v1641, %v400
      %v1647 = vmul.f32 %v1640, %v404
      %v1648 = vpack.c.bf16 %v1644, %v1644
      %v1649 = vpack.c.bf16 %v1645, %v1645
      %v1650 = vpack.c.bf16 %v1646, %v1646
      %v1651 = vpack.c.bf16 %v1647, %v1647
      %v1656 = vunpack.c.l.b16 %v1648
      %v1657 = vunpack.c.l.b16 %v1649
      %v1658 = vunpack.c.l.b16 %v1650
      %v1659 = vunpack.c.l.b16 %v1651
      %v1660 = vpack.c.b16 %v1657, %v1656
      %v1661 = vpack.c.b16 %v1659, %v1658
      %1664 = vst [vmem:[#allocation2 + $0x140] sm:$0xff] %v1660
      %1665 = vst [vmem:[#allocation2 + $0x148] sm:$0xff] %v1661
      %1666 = vrot.lane.b32.xlu0 %v1594, 15
      %v1667 = vpop.permute.xlu0 %1666
      %1668 = vrot.lane.b32.xlu0 %v1595, 15
      %v1669 = vpop.permute.xlu0 %1668
      %1670 = vrot.lane.b32.xlu0 %v1596, 15
      %v1671 = vpop.permute.xlu0 %1670
      %1672 = vrot.lane.b32.xlu0 %v1597, 15
      %v1673 = vpop.permute.xlu0 %1672
      %v1674 = vsel %vm435, %v1671, %v1673
      %v1675 = vsel %vm435, %v1669, %v1671
      %v1676 = vsel %vm435, %v1667, %v1669
      %v1677 = vsel %vm435, %v1673, %v1667
      %v1678 = vmul.f32 %v1677, %v443
      %v1679 = vmul.f32 %v1676, %v447
      %v1680 = vmul.f32 %v1675, %v451
      %v1681 = vmul.f32 %v1674, %v455
      %v1682 = vpack.c.bf16 %v1678, %v1678
      %v1683 = vpack.c.bf16 %v1679, %v1679
      %v1684 = vpack.c.bf16 %v1680, %v1680
      %v1685 = vpack.c.bf16 %v1681, %v1681
      %v1690 = vunpack.c.l.b16 %v1682
      %v1691 = vunpack.c.l.b16 %v1683
      %v1692 = vunpack.c.l.b16 %v1684
      %v1693 = vunpack.c.l.b16 %v1685
      %v1694 = vpack.c.b16 %v1691, %v1690
      %v1695 = vpack.c.b16 %v1693, %v1692
      %1698 = vst [vmem:[#allocation2 + $0x150] sm:$0xff] %v1694
      %1699 = vst [vmem:[#allocation2 + $0x158] sm:$0xff] %v1695
      %1700 = vrot.lane.b32.xlu0 %v1594, 1
      %v1701 = vpop.permute.xlu0 %1700
      %1702 = vrot.lane.b32.xlu0 %v1595, 1
      %v1703 = vpop.permute.xlu0 %1702
      %1704 = vrot.lane.b32.xlu0 %v1596, 1
      %v1705 = vpop.permute.xlu0 %1704
      %1706 = vrot.lane.b32.xlu0 %v1597, 1
      %v1707 = vpop.permute.xlu0 %1706
      %v1708 = vsel %vm486, %v1705, %v1707
      %v1709 = vsel %vm486, %v1703, %v1705
      %v1710 = vsel %vm486, %v1701, %v1703
      %v1711 = vsel %vm486, %v1707, %v1701
      %v1712 = vmul.f32 %v1711, %v494
      %v1713 = vmul.f32 %v1710, %v498
      %v1714 = vmul.f32 %v1709, %v502
      %v1715 = vmul.f32 %v1708, %v506
      %v1716 = vpack.c.bf16 %v1712, %v1712
      %v1717 = vpack.c.bf16 %v1713, %v1713
      %v1718 = vpack.c.bf16 %v1714, %v1714
      %v1719 = vpack.c.bf16 %v1715, %v1715
      %v1724 = vunpack.c.l.b16 %v1716
      %v1725 = vunpack.c.l.b16 %v1717
      %v1726 = vunpack.c.l.b16 %v1718
      %v1727 = vunpack.c.l.b16 %v1719
      %v1728 = vpack.c.b16 %v1725, %v1724
      %v1729 = vpack.c.b16 %v1727, %v1726
      %1732 = vst [vmem:[#allocation2 + $0x160] sm:$0xff] %v1728
      %1733 = vst [vmem:[#allocation2 + $0x168] sm:$0xff] %v1729
      %v1734 = vpack.c.bf16 %v1594, %v1594
      %v1735 = vpack.c.bf16 %v1595, %v1595
      %v1736 = vpack.c.bf16 %v1596, %v1596
      %v1737 = vpack.c.bf16 %v1597, %v1597
      %v1742 = vunpack.c.l.b16 %v1734
      %v1743 = vunpack.c.l.b16 %v1735
      %v1744 = vunpack.c.l.b16 %v1736
      %v1745 = vunpack.c.l.b16 %v1737
      %v1746 = vpack.c.b16 %v1743, %v1742
      %v1747 = vpack.c.b16 %v1745, %v1744
      %1750 = vst [vmem:[#allocation2 + $0x170] sm:$0xff] %v1746
      %1751 = vst [vmem:[#allocation2 + $0x178] sm:$0xff] %v1747
      %1752 = vrot.lane.b32.xlu0 %v1594, 127
      %v1753 = vpop.permute.xlu0 %1752
      %1754 = vrot.lane.b32.xlu0 %v1595, 127
      %v1755 = vpop.permute.xlu0 %1754
      %1756 = vrot.lane.b32.xlu0 %v1596, 127
      %v1757 = vpop.permute.xlu0 %1756
      %1758 = vrot.lane.b32.xlu0 %v1597, 127
      %v1759 = vpop.permute.xlu0 %1758
      %v1760 = vsel %vm555, %v1757, %v1759
      %v1761 = vsel %vm555, %v1755, %v1757
      %v1762 = vsel %vm555, %v1753, %v1755
      %v1763 = vsel %vm555, %v1759, %v1753
      %v1764 = vmul.f32 %v1762, %v563
      %v1765 = vmul.f32 %v1761, %v567
      %v1766 = vmul.f32 %v1760, %v571
      %v1767 = vmul.f32 %v1763, %v575
      %v1768 = vpack.c.bf16 %v1764, %v1764
      %v1769 = vpack.c.bf16 %v1765, %v1765
      %v1770 = vpack.c.bf16 %v1766, %v1766
      %v1771 = vpack.c.bf16 %v1767, %v1767
      %v1776 = vunpack.c.l.b16 %v1768
      %v1777 = vunpack.c.l.b16 %v1769
      %v1778 = vunpack.c.l.b16 %v1770
      %v1779 = vunpack.c.l.b16 %v1771
      %v1780 = vpack.c.b16 %v1777, %v1776
      %v1781 = vpack.c.b16 %v1779, %v1778
      %1784 = vst [vmem:[#allocation2 + $0x180] sm:$0xff] %v1780
      %1785 = vst [vmem:[#allocation2 + $0x188] sm:$0xff] %v1781
      %1786 = vrot.lane.b32.xlu0 %v1594, 113
      %v1787 = vpop.permute.xlu0 %1786
      %1788 = vrot.lane.b32.xlu0 %v1595, 113
      %v1789 = vpop.permute.xlu0 %1788
      %1790 = vrot.lane.b32.xlu0 %v1596, 113
      %v1791 = vpop.permute.xlu0 %1790
      %1792 = vrot.lane.b32.xlu0 %v1597, 113
      %v1793 = vpop.permute.xlu0 %1792
      %v1794 = vsel %vm606, %v1791, %v1793
      %v1795 = vsel %vm606, %v1789, %v1791
      %v1796 = vsel %vm606, %v1787, %v1789
      %v1797 = vsel %vm606, %v1793, %v1787
      %v1798 = vmul.f32 %v1796, %v614
      %v1799 = vmul.f32 %v1795, %v618
      %v1800 = vmul.f32 %v1794, %v622
      %v1801 = vmul.f32 %v1797, %v626
      %v1802 = vpack.c.bf16 %v1798, %v1798
      %v1803 = vpack.c.bf16 %v1799, %v1799
      %v1804 = vpack.c.bf16 %v1800, %v1800
      %v1805 = vpack.c.bf16 %v1801, %v1801
      %v1810 = vunpack.c.l.b16 %v1802
      %v1811 = vunpack.c.l.b16 %v1803
      %v1812 = vunpack.c.l.b16 %v1804
      %v1813 = vunpack.c.l.b16 %v1805
      %v1814 = vpack.c.b16 %v1811, %v1810
      %v1815 = vpack.c.b16 %v1813, %v1812
      %1818 = vst [vmem:[#allocation2 + $0x190] sm:$0xff] %v1814
      %1819 = vst [vmem:[#allocation2 + $0x198] sm:$0xff] %v1815
      %1820 = vrot.lane.b32.xlu0 %v1594, 112
      %v1821 = vpop.permute.xlu0 %1820
      %1822 = vrot.lane.b32.xlu0 %v1595, 112
      %v1823 = vpop.permute.xlu0 %1822
      %1824 = vrot.lane.b32.xlu0 %v1596, 112
      %v1825 = vpop.permute.xlu0 %1824
      %1826 = vrot.lane.b32.xlu0 %v1597, 112
      %v1827 = vpop.permute.xlu0 %1826
      %v1828 = vsel %vm657, %v1825, %v1827
      %v1829 = vsel %vm657, %v1823, %v1825
      %v1830 = vsel %vm657, %v1821, %v1823
      %v1831 = vsel %vm657, %v1827, %v1821
      %v1832 = vmul.f32 %v1830, %v665
      %v1833 = vmul.f32 %v1829, %v669
      %v1834 = vmul.f32 %v1828, %v673
      %v1835 = vmul.f32 %v1831, %v677
      %v1836 = vpack.c.bf16 %v1832, %v1832
      %v1837 = vpack.c.bf16 %v1833, %v1833
      %v1838 = vpack.c.bf16 %v1834, %v1834
      %v1839 = vpack.c.bf16 %v1835, %v1835
      %v1844 = vunpack.c.l.b16 %v1836
      %v1845 = vunpack.c.l.b16 %v1837
      %v1846 = vunpack.c.l.b16 %v1838
      %v1847 = vunpack.c.l.b16 %v1839
      %v1848 = vpack.c.b16 %v1845, %v1844
      %v1849 = vpack.c.b16 %v1847, %v1846
      %1852 = vst [vmem:[#allocation2 + $0x1a0] sm:$0xff] %v1848
      %1853 = vst [vmem:[#allocation2 + $0x1a8] sm:$0xff] %v1849
      %1854 = vrot.lane.b32.xlu0 %v1594, 111
      %v1855 = vpop.permute.xlu0 %1854
      %1856 = vrot.lane.b32.xlu0 %v1595, 111
      %v1857 = vpop.permute.xlu0 %1856
      %1858 = vrot.lane.b32.xlu0 %v1596, 111
      %v1859 = vpop.permute.xlu0 %1858
      %1860 = vrot.lane.b32.xlu0 %v1597, 111
      %v1861 = vpop.permute.xlu0 %1860
      %v1862 = vsel %vm708, %v1859, %v1861
      %v1863 = vsel %vm708, %v1857, %v1859
      %v1864 = vsel %vm708, %v1855, %v1857
      %v1865 = vsel %vm708, %v1861, %v1855
      %v1866 = vmul.f32 %v1864, %v716
      %v1867 = vmul.f32 %v1863, %v720
      %v1868 = vmul.f32 %v1862, %v724
      %v1869 = vmul.f32 %v1865, %v728
      %v1870 = vpack.c.bf16 %v1866, %v1866
      %v1871 = vpack.c.bf16 %v1867, %v1867
      %v1872 = vpack.c.bf16 %v1868, %v1868
      %v1873 = vpack.c.bf16 %v1869, %v1869
      %v1878 = vunpack.c.l.b16 %v1870
      %v1879 = vunpack.c.l.b16 %v1871
      %v1880 = vunpack.c.l.b16 %v1872
      %v1881 = vunpack.c.l.b16 %v1873
      %v1882 = vpack.c.b16 %v1879, %v1878
      %v1883 = vpack.c.b16 %v1881, %v1880
      %1886 = vst [vmem:[#allocation2 + $0x1b0] sm:$0xff] %v1882
      %1887 = vst [vmem:[#allocation2 + $0x1b8] sm:$0xff] %v1883
      %v1888 = vld [vmem:[%s4] sm:$0xff]
      %v1889 = vld [vmem:[#allocation2] sm:$0xff]
      %v1890 = vld [vmem:[#allocation2 + $0x8] sm:$0xff]
      %v1891 = vld [vmem:[#allocation2 + $0x10] sm:$0xff]
      %v1892 = vld [vmem:[#allocation2 + $0x18] sm:$0xff]
      %v1893 = vld [vmem:[#allocation2 + $0x20] sm:$0xff]
      %v1894 = vld [vmem:[#allocation2 + $0x28] sm:$0xff]
      %v1895 = vld [vmem:[#allocation2 + $0x30] sm:$0xff]
      %v1896 = vld [vmem:[#allocation2 + $0x38] sm:$0xff]
      %v1897 = vld [vmem:[#allocation2 + $0x40] sm:$0xff]
      %v1898 = vld [vmem:[#allocation2 + $0x48] sm:$0xff]
      %v1899 = vld [vmem:[#allocation2 + $0x50] sm:$0xff]
      %v1900 = vld [vmem:[#allocation2 + $0x58] sm:$0xff]
      %v1901 = vld [vmem:[#allocation2 + $0x60] sm:$0xff]
      %v1902 = vld [vmem:[#allocation2 + $0x68] sm:$0xff]
      %v1903 = vld [vmem:[#allocation2 + $0x70] sm:$0xff]
      %v1904 = vld [vmem:[#allocation2 + $0x78] sm:$0xff]
      %v1905 = vld [vmem:[#allocation2 + $0x80] sm:$0xff]
      %v1906 = vld [vmem:[#allocation2 + $0x88] sm:$0xff]
      %v1907 = vld [vmem:[#allocation2 + $0x90] sm:$0xff]
      %v1908 = vld [vmem:[#allocation2 + $0x98] sm:$0xff]
      %v1909 = vld [vmem:[#allocation2 + $0xa0] sm:$0xff]
      %v1910 = vld [vmem:[#allocation2 + $0xa8] sm:$0xff]
      %v1911 = vld [vmem:[#allocation2 + $0xb0] sm:$0xff]
      %v1912 = vld [vmem:[#allocation2 + $0xb8] sm:$0xff]
      %v1913 = vld [vmem:[#allocation2 + $0xc0] sm:$0xff]
      %v1914 = vld [vmem:[#allocation2 + $0xc8] sm:$0xff]
      %v1915 = vld [vmem:[#allocation2 + $0xd0] sm:$0xff]
      %v1916 = vld [vmem:[#allocation2 + $0xd8] sm:$0xff]
      %v1917 = vld [vmem:[#allocation2 + $0xe0] sm:$0xff]
      %v1918 = vld [vmem:[#allocation2 + $0xe8] sm:$0xff]
      %v1919 = vld [vmem:[#allocation2 + $0xf0] sm:$0xff]
      %v1920 = vld [vmem:[#allocation2 + $0xf8] sm:$0xff]
      %v1921 = vld [vmem:[#allocation2 + $0x100] sm:$0xff]
      %v1922 = vld [vmem:[#allocation2 + $0x108] sm:$0xff]
      %v1923 = vld [vmem:[#allocation2 + $0x110] sm:$0xff]
      %v1924 = vld [vmem:[#allocation2 + $0x118] sm:$0xff]
      %v1925 = vld [vmem:[#allocation2 + $0x120] sm:$0xff]
      %v1926 = vld [vmem:[#allocation2 + $0x128] sm:$0xff]
      %v1927 = vld [vmem:[#allocation2 + $0x130] sm:$0xff]
      %v1928 = vld [vmem:[#allocation2 + $0x138] sm:$0xff]
      %v1929 = vld [vmem:[#allocation2 + $0x140] sm:$0xff]
      %v1930 = vld [vmem:[#allocation2 + $0x148] sm:$0xff]
      %v1931 = vld [vmem:[#allocation2 + $0x150] sm:$0xff]
      %v1932 = vld [vmem:[#allocation2 + $0x158] sm:$0xff]
      %v1933 = vld [vmem:[#allocation2 + $0x160] sm:$0xff]
      %v1934 = vld [vmem:[#allocation2 + $0x168] sm:$0xff]
      %v1935 = vld [vmem:[#allocation2 + $0x170] sm:$0xff]
      %v1936 = vld [vmem:[#allocation2 + $0x178] sm:$0xff]
      %v1937 = vld [vmem:[#allocation2 + $0x180] sm:$0xff]
      %v1938 = vld [vmem:[#allocation2 + $0x188] sm:$0xff]
      %v1939 = vld [vmem:[#allocation2 + $0x190] sm:$0xff]
      %v1940 = vld [vmem:[#allocation2 + $0x198] sm:$0xff]
      %v1941 = vld [vmem:[#allocation2 + $0x1a0] sm:$0xff]
      %v1942 = vld [vmem:[#allocation2 + $0x1a8] sm:$0xff]
      %v1943 = vld [vmem:[#allocation2 + $0x1b0] sm:$0xff]
      %v1944 = vld [vmem:[#allocation2 + $0x1b8] sm:$0xff]
      %v1946 = vunpack.c.l.b16 %v1888
      %v1947 = vunpack.c.h.b16 %v1888
      %v1948 = vpack.c.b16 %v1946, %v1946
      %v1949 = vpack.c.b16 %v1947, %v1947
      %v2007 = vunpack.c.l.b16 %v1889
      %v2008 = vunpack.c.h.b16 %v1889
      %v2009 = vunpack.c.l.b16 %v1890
      %v2010 = vunpack.c.h.b16 %v1890
      %v2011 = vunpack.c.l.b16 %v1891
      %v2012 = vunpack.c.h.b16 %v1891
      %v2013 = vunpack.c.l.b16 %v1892
      %v2014 = vunpack.c.h.b16 %v1892
      %v2015 = vunpack.c.l.b16 %v1893
      %v2016 = vunpack.c.h.b16 %v1893
      %v2017 = vunpack.c.l.b16 %v1894
      %v2018 = vunpack.c.h.b16 %v1894
      %v2019 = vunpack.c.l.b16 %v1895
      %v2020 = vunpack.c.h.b16 %v1895
      %v2021 = vunpack.c.l.b16 %v1896
      %v2022 = vunpack.c.h.b16 %v1896
      %v2023 = vunpack.c.l.b16 %v1897
      %v2024 = vunpack.c.h.b16 %v1897
      %v2025 = vunpack.c.l.b16 %v1898
      %v2026 = vunpack.c.h.b16 %v1898
      %v2027 = vunpack.c.l.b16 %v1899
      %v2028 = vunpack.c.h.b16 %v1899
      %v2029 = vunpack.c.l.b16 %v1900
      %v2030 = vunpack.c.h.b16 %v1900
      %v2031 = vunpack.c.l.b16 %v1901
      %v2032 = vunpack.c.h.b16 %v1901
      %v2033 = vunpack.c.l.b16 %v1902
      %v2034 = vunpack.c.h.b16 %v1902
      %v2035 = vunpack.c.l.b16 %v1903
      %v2036 = vunpack.c.h.b16 %v1903
      %v2037 = vunpack.c.l.b16 %v1904
      %v2038 = vunpack.c.h.b16 %v1904
      %v2039 = vunpack.c.l.b16 %v1905
      %v2040 = vunpack.c.h.b16 %v1905
      %v2041 = vunpack.c.l.b16 %v1906
      %v2042 = vunpack.c.h.b16 %v1906
      %v2043 = vunpack.c.l.b16 %v1907
      %v2044 = vunpack.c.h.b16 %v1907
      %v2045 = vunpack.c.l.b16 %v1908
      %v2046 = vunpack.c.h.b16 %v1908
      %v2047 = vunpack.c.l.b16 %v1909
      %v2048 = vunpack.c.h.b16 %v1909
      %v2049 = vunpack.c.l.b16 %v1910
      %v2050 = vunpack.c.h.b16 %v1910
      %v2051 = vunpack.c.l.b16 %v1911
      %v2052 = vunpack.c.h.b16 %v1911
      %v2053 = vunpack.c.l.b16 %v1912
      %v2054 = vunpack.c.h.b16 %v1912
      %v2055 = vunpack.c.l.b16 %v1913
      %v2056 = vunpack.c.h.b16 %v1913
      %v2057 = vunpack.c.l.b16 %v1914
      %v2058 = vunpack.c.h.b16 %v1914
      %v2059 = vunpack.c.l.b16 %v1915
      %v2060 = vunpack.c.h.b16 %v1915
      %v2061 = vunpack.c.l.b16 %v1916
      %v2062 = vunpack.c.h.b16 %v1916
      %v2063 = vunpack.c.l.b16 %v1917
      %v2064 = vunpack.c.h.b16 %v1917
      %v2065 = vunpack.c.l.b16 %v1918
      %v2066 = vunpack.c.h.b16 %v1918
      %v2067 = vunpack.c.l.b16 %v1919
      %v2068 = vunpack.c.h.b16 %v1919
      %v2069 = vunpack.c.l.b16 %v1920
      %v2070 = vunpack.c.h.b16 %v1920
      %v2071 = vunpack.c.l.b16 %v1921
      %v2072 = vunpack.c.h.b16 %v1921
      %v2073 = vunpack.c.l.b16 %v1922
      %v2074 = vunpack.c.h.b16 %v1922
      %v2075 = vunpack.c.l.b16 %v1923
      %v2076 = vunpack.c.h.b16 %v1923
      %v2077 = vunpack.c.l.b16 %v1924
      %v2078 = vunpack.c.h.b16 %v1924
      %v2079 = vunpack.c.l.b16 %v1925
      %v2080 = vunpack.c.h.b16 %v1925
      %v2081 = vunpack.c.l.b16 %v1926
      %v2082 = vunpack.c.h.b16 %v1926
      %v2083 = vunpack.c.l.b16 %v1927
      %v2084 = vunpack.c.h.b16 %v1927
      %v2085 = vunpack.c.l.b16 %v1928
      %v2086 = vunpack.c.h.b16 %v1928
      %v2087 = vunpack.c.l.b16 %v1929
      %v2088 = vunpack.c.h.b16 %v1929
      %v2089 = vunpack.c.l.b16 %v1930
      %v2090 = vunpack.c.h.b16 %v1930
      %v2091 = vunpack.c.l.b16 %v1931
      %v2092 = vunpack.c.h.b16 %v1931
      %v2093 = vunpack.c.l.b16 %v1932
      %v2094 = vunpack.c.h.b16 %v1932
      %v2095 = vunpack.c.l.b16 %v1933
      %v2096 = vunpack.c.h.b16 %v1933
      %v2097 = vunpack.c.l.b16 %v1934
      %v2098 = vunpack.c.h.b16 %v1934
      %v2099 = vunpack.c.l.b16 %v1935
      %v2100 = vunpack.c.h.b16 %v1935
      %v2101 = vunpack.c.l.b16 %v1936
      %v2102 = vunpack.c.h.b16 %v1936
      %v2103 = vunpack.c.l.b16 %v1937
      %v2104 = vunpack.c.h.b16 %v1937
      %v2105 = vunpack.c.l.b16 %v1938
      %v2106 = vunpack.c.h.b16 %v1938
      %v2107 = vunpack.c.l.b16 %v1939
      %v2108 = vunpack.c.h.b16 %v1939
      %v2109 = vunpack.c.l.b16 %v1940
      %v2110 = vunpack.c.h.b16 %v1940
      %v2111 = vunpack.c.l.b16 %v1941
      %v2112 = vunpack.c.h.b16 %v1941
      %v2113 = vunpack.c.l.b16 %v1942
      %v2114 = vunpack.c.h.b16 %v1942
      %v2115 = vunpack.c.l.b16 %v1943
      %v2116 = vunpack.c.h.b16 %v1943
      %v2117 = vunpack.c.l.b16 %v1944
      %v2118 = vunpack.c.h.b16 %v1944
      %v2119 = vpack.c.b16 %v2011, %v2007
      %v2120 = vpack.c.b16 %v2012, %v2008
      %v2121 = vpack.c.b16 %v2013, %v2009
      %v2122 = vpack.c.b16 %v2014, %v2010
      %v2123 = vpack.c.b16 %v2019, %v2015
      %v2124 = vpack.c.b16 %v2020, %v2016
      %v2125 = vpack.c.b16 %v2021, %v2017
      %v2126 = vpack.c.b16 %v2022, %v2018
      %v2127 = vpack.c.b16 %v2027, %v2023
      %v2128 = vpack.c.b16 %v2028, %v2024
      %v2129 = vpack.c.b16 %v2029, %v2025
      %v2130 = vpack.c.b16 %v2030, %v2026
      %v2131 = vpack.c.b16 %v2035, %v2031
      %v2132 = vpack.c.b16 %v2036, %v2032
      %v2133 = vpack.c.b16 %v2037, %v2033
      %v2134 = vpack.c.b16 %v2038, %v2034
      %v2135 = vpack.c.b16 %v2043, %v2039
      %v2136 = vpack.c.b16 %v2044, %v2040
      %v2137 = vpack.c.b16 %v2045, %v2041
      %v2138 = vpack.c.b16 %v2046, %v2042
      %v2139 = vpack.c.b16 %v2051, %v2047
      %v2140 = vpack.c.b16 %v2052, %v2048
      %v2141 = vpack.c.b16 %v2053, %v2049
      %v2142 = vpack.c.b16 %v2054, %v2050
      %v2143 = vpack.c.b16 %v2059, %v2055
      %v2144 = vpack.c.b16 %v2060, %v2056
      %v2145 = vpack.c.b16 %v2061, %v2057
      %v2146 = vpack.c.b16 %v2062, %v2058
      %v2147 = vpack.c.b16 %v2067, %v2063
      %v2148 = vpack.c.b16 %v2068, %v2064
      %v2149 = vpack.c.b16 %v2069, %v2065
      %v2150 = vpack.c.b16 %v2070, %v2066
      %v2151 = vpack.c.b16 %v2075, %v2071
      %v2152 = vpack.c.b16 %v2076, %v2072
      %v2153 = vpack.c.b16 %v2077, %v2073
      %v2154 = vpack.c.b16 %v2078, %v2074
      %v2155 = vpack.c.b16 %v2083, %v2079
      %v2156 = vpack.c.b16 %v2084, %v2080
      %v2157 = vpack.c.b16 %v2085, %v2081
      %v2158 = vpack.c.b16 %v2086, %v2082
      %v2159 = vpack.c.b16 %v2091, %v2087
      %v2160 = vpack.c.b16 %v2092, %v2088
      %v2161 = vpack.c.b16 %v2093, %v2089
      %v2162 = vpack.c.b16 %v2094, %v2090
      %v2163 = vpack.c.b16 %v2099, %v2095
      %v2164 = vpack.c.b16 %v2100, %v2096
      %v2165 = vpack.c.b16 %v2101, %v2097
      %v2166 = vpack.c.b16 %v2102, %v2098
      %v2167 = vpack.c.b16 %v2107, %v2103
      %v2168 = vpack.c.b16 %v2108, %v2104
      %v2169 = vpack.c.b16 %v2109, %v2105
      %v2170 = vpack.c.b16 %v2110, %v2106
      %v2171 = vpack.c.b16 %v2115, %v2111
      %v2172 = vpack.c.b16 %v2116, %v2112
      %v2173 = vpack.c.b16 %v2117, %v2113
      %v2174 = vpack.c.b16 %v2118, %v2114
      %vm2231 = vcmask 785408
      %v2233 = vsel %vm2231, %v1949, 0
      %2235 = vmatprep.subr.bf16.mxu0 %v2148
      %2236 = vmatpush1.bf16.msra.mxu0 %v2147
      %2237 = vmatprep.subr.bf16.mxu0 %v2144
      %2238 = vmatpush1.bf16.msra.mxu0 %v2143
      %2239 = vmatprep.subr.bf16.mxu0 %v2140
      %2240 = vmatpush1.bf16.msra.mxu0 %v2139
      %2241 = vmatprep.subr.bf16.mxu0 %v2136
      %2242 = vmatpush1.bf16.msra.mxu0 %v2135
      %2243 = vmatprep.subr.bf16.mxu0 %v2132
      %2244 = vmatpush1.bf16.msra.mxu0 %v2131
      %2245 = vmatprep.subr.bf16.mxu0 %v2128
      %2246 = vmatpush1.bf16.msra.mxu0 %v2127
      %2247 = vmatprep.subr.bf16.mxu0 %v2124
      %2248 = vmatpush1.bf16.msra.mxu0 %v2123
      %2249 = vmatprep.subr.bf16.mxu0 %v2120
      %2250 = vmatpush1.bf16.msra.mxu0 %v2119
      %2251 = vmatprep.subr.bf16.mxu0 0
      %2252 = vmatpush2.bf16.msra.mxu0 0
      %2253 = vmatprep.subr.bf16.mxu0 0
      %2254 = vmatpush2.bf16.msra.mxu0 0
      %2255 = vmatprep.subr.bf16.mxu0 %v2172
      %2256 = vmatpush2.bf16.msra.mxu0 %v2171
      %2257 = vmatprep.subr.bf16.mxu0 %v2168
      %2258 = vmatpush2.bf16.msra.mxu0 %v2167
      %2259 = vmatprep.subr.bf16.mxu0 %v2164
      %2260 = vmatpush2.bf16.msra.mxu0 %v2163
      %2261 = vmatprep.subr.bf16.mxu0 %v2160
      %2262 = vmatpush2.bf16.msra.mxu0 %v2159
      %2263 = vmatprep.subr.bf16.mxu0 %v2156
      %2264 = vmatpush2.bf16.msra.mxu0 %v2155
      %2265 = vmatprep.subr.bf16.mxu0 %v2152
      %2266 = vmatpush2.bf16.msra.mxu0 %v2151
      %2267 = vmatprep.mubr.bf16.mxu0 %v2233
      %2268 = vmatmul.mubr.bf16.gmra.mxu0 %v1948
      %v2269 = vpop.f32.mrf.mxu0
      %v2270 = vadd.f32 0.0, %v2269
      %v2271 = vpop.f32.mrf.mxu0
      %v2272 = vadd.f32 0.0, %v2271
      %v2273 = vpop.f32.mrf.mxu0
      %v2274 = vpop.f32.mrf.mxu0
      %2275 = vdwg.mxu0
      %2276 = vmatprep.subr.bf16.mxu0 %v2150
      %2277 = vmatpush1.bf16.msra.mxu0 %v2149
      %2278 = vmatprep.subr.bf16.mxu0 %v2146
      %2279 = vmatpush1.bf16.msra.mxu0 %v2145
      %2280 = vmatprep.subr.bf16.mxu0 %v2142
      %2281 = vmatpush1.bf16.msra.mxu0 %v2141
      %2282 = vmatprep.subr.bf16.mxu0 %v2138
      %2283 = vmatpush1.bf16.msra.mxu0 %v2137
      %2284 = vmatprep.subr.bf16.mxu0 %v2134
      %2285 = vmatpush1.bf16.msra.mxu0 %v2133
      %2286 = vmatprep.subr.bf16.mxu0 %v2130
      %2287 = vmatpush1.bf16.msra.mxu0 %v2129
      %2288 = vmatprep.subr.bf16.mxu0 %v2126
      %2289 = vmatpush1.bf16.msra.mxu0 %v2125
      %2290 = vmatprep.subr.bf16.mxu0 %v2122
      %2291 = vmatpush1.bf16.msra.mxu0 %v2121
      %2292 = vmatprep.subr.bf16.mxu0 0
      %2293 = vmatpush2.bf16.msra.mxu0 0
      %2294 = vmatprep.subr.bf16.mxu0 0
      %2295 = vmatpush2.bf16.msra.mxu0 0
      %2296 = vmatprep.subr.bf16.mxu0 %v2174
      %2297 = vmatpush2.bf16.msra.mxu0 %v2173
      %2298 = vmatprep.subr.bf16.mxu0 %v2170
      %2299 = vmatpush2.bf16.msra.mxu0 %v2169
      %2300 = vmatprep.subr.bf16.mxu0 %v2166
      %2301 = vmatpush2.bf16.msra.mxu0 %v2165
      %2302 = vmatprep.subr.bf16.mxu0 %v2162
      %2303 = vmatpush2.bf16.msra.mxu0 %v2161
      %2304 = vmatprep.subr.bf16.mxu0 %v2158
      %2305 = vmatpush2.bf16.msra.mxu0 %v2157
      %2306 = vmatprep.subr.bf16.mxu0 %v2154
      %2307 = vmatpush2.bf16.msra.mxu0 %v2153
      %2308 = vmatprep.mubr.bf16.mxu0 %v2233
      %2309 = vmatmul.mubr.bf16.gmra.mxu0 %v1948
      %v2310 = vpop.f32.mrf.mxu0
      %v2311 = vadd.f32 0.0, %v2310
      %v2312 = vpop.f32.mrf.mxu0
      %v2313 = vadd.f32 0.0, %v2312
      %v2314 = vpop.f32.mrf.mxu0
      %v2315 = vpop.f32.mrf.mxu0
      %2316 = vdwg.mxu0
      %v2317 = vmul.f32 %v2270, 0.2
      %v2318 = vmul.f32 %v2272, 0.2
      %v2319 = vmul.f32 %v2311, 0.2
      %v2320 = vmul.f32 %v2313, 0.2
      %v2321 = vmax.f32 %v2270, %v2317
      %v2322 = vmax.f32 %v2272, %v2318
      %v2323 = vmax.f32 %v2311, %v2319
      %v2324 = vmax.f32 %v2313, %v2320
      %2325 = vrot.lane.b32.xlu0 %v2321, 17
      %v2326 = vpop.permute.xlu0 %2325
      %2327 = vrot.lane.b32.xlu0 %v2322, 17
      %v2328 = vpop.permute.xlu0 %2327
      %2329 = vrot.lane.b32.xlu0 %v2323, 17
      %v2330 = vpop.permute.xlu0 %2329
      %2331 = vrot.lane.b32.xlu0 %v2324, 17
      %v2332 = vpop.permute.xlu0 %2331
      %v2333 = vsel %vm333, %v2330, %v2332
      %v2334 = vsel %vm333, %v2328, %v2330
      %v2335 = vsel %vm333, %v2326, %v2328
      %v2336 = vsel %vm333, %v2332, %v2326
      %v2337 = vmul.f32 %v2336, %v341
      %v2338 = vmul.f32 %v2335, %v345
      %v2339 = vmul.f32 %v2334, %v349
      %v2340 = vmul.f32 %v2333, %v353
      %v2341 = vpack.c.bf16 %v2337, %v2337
      %v2342 = vpack.c.bf16 %v2338, %v2338
      %v2343 = vpack.c.bf16 %v2339, %v2339
      %v2344 = vpack.c.bf16 %v2340, %v2340
      %v2349 = vunpack.c.l.b16 %v2341
      %v2350 = vunpack.c.l.b16 %v2342
      %v2351 = vunpack.c.l.b16 %v2343
      %v2352 = vunpack.c.l.b16 %v2344
      %v2353 = vpack.c.b16 %v2350, %v2349
      %v2354 = vpack.c.b16 %v2352, %v2351
      %2357 = vst [vmem:[#allocation2 + $0x1c0] sm:$0xff] %v2353
      %2358 = vst [vmem:[#allocation2 + $0x1c8] sm:$0xff] %v2354
      %2359 = vrot.lane.b32.xlu0 %v2321, 16
      %v2360 = vpop.permute.xlu0 %2359
      %2361 = vrot.lane.b32.xlu0 %v2322, 16
      %v2362 = vpop.permute.xlu0 %2361
      %2363 = vrot.lane.b32.xlu0 %v2323, 16
      %v2364 = vpop.permute.xlu0 %2363
      %2365 = vrot.lane.b32.xlu0 %v2324, 16
      %v2366 = vpop.permute.xlu0 %2365
      %v2367 = vsel %vm384, %v2364, %v2366
      %v2368 = vsel %vm384, %v2362, %v2364
      %v2369 = vsel %vm384, %v2360, %v2362
      %v2370 = vsel %vm384, %v2366, %v2360
      %v2371 = vmul.f32 %v2370, %v392
      %v2372 = vmul.f32 %v2369, %v396
      %v2373 = vmul.f32 %v2368, %v400
      %v2374 = vmul.f32 %v2367, %v404
      %v2375 = vpack.c.bf16 %v2371, %v2371
      %v2376 = vpack.c.bf16 %v2372, %v2372
      %v2377 = vpack.c.bf16 %v2373, %v2373
      %v2378 = vpack.c.bf16 %v2374, %v2374
      %v2383 = vunpack.c.l.b16 %v2375
      %v2384 = vunpack.c.l.b16 %v2376
      %v2385 = vunpack.c.l.b16 %v2377
      %v2386 = vunpack.c.l.b16 %v2378
      %v2387 = vpack.c.b16 %v2384, %v2383
      %v2388 = vpack.c.b16 %v2386, %v2385
      %2391 = vst [vmem:[#allocation2 + $0x1d0] sm:$0xff] %v2387
      %2392 = vst [vmem:[#allocation2 + $0x1d8] sm:$0xff] %v2388
      %2393 = vrot.lane.b32.xlu0 %v2321, 15
      %v2394 = vpop.permute.xlu0 %2393
      %2395 = vrot.lane.b32.xlu0 %v2322, 15
      %v2396 = vpop.permute.xlu0 %2395
      %2397 = vrot.lane.b32.xlu0 %v2323, 15
      %v2398 = vpop.permute.xlu0 %2397
      %2399 = vrot.lane.b32.xlu0 %v2324, 15
      %v2400 = vpop.permute.xlu0 %2399
      %v2401 = vsel %vm435, %v2398, %v2400
      %v2402 = vsel %vm435, %v2396, %v2398
      %v2403 = vsel %vm435, %v2394, %v2396
      %v2404 = vsel %vm435, %v2400, %v2394
      %v2405 = vmul.f32 %v2404, %v443
      %v2406 = vmul.f32 %v2403, %v447
      %v2407 = vmul.f32 %v2402, %v451
      %v2408 = vmul.f32 %v2401, %v455
      %v2409 = vpack.c.bf16 %v2405, %v2405
      %v2410 = vpack.c.bf16 %v2406, %v2406
      %v2411 = vpack.c.bf16 %v2407, %v2407
      %v2412 = vpack.c.bf16 %v2408, %v2408
      %v2417 = vunpack.c.l.b16 %v2409
      %v2418 = vunpack.c.l.b16 %v2410
      %v2419 = vunpack.c.l.b16 %v2411
      %v2420 = vunpack.c.l.b16 %v2412
      %v2421 = vpack.c.b16 %v2418, %v2417
      %v2422 = vpack.c.b16 %v2420, %v2419
      %2425 = vst [vmem:[#allocation2 + $0x1e0] sm:$0xff] %v2421
      %2426 = vst [vmem:[#allocation2 + $0x1e8] sm:$0xff] %v2422
      %2427 = vrot.lane.b32.xlu0 %v2321, 1
      %v2428 = vpop.permute.xlu0 %2427
      %2429 = vrot.lane.b32.xlu0 %v2322, 1
      %v2430 = vpop.permute.xlu0 %2429
      %2431 = vrot.lane.b32.xlu0 %v2323, 1
      %v2432 = vpop.permute.xlu0 %2431
      %2433 = vrot.lane.b32.xlu0 %v2324, 1
      %v2434 = vpop.permute.xlu0 %2433
      %v2435 = vsel %vm486, %v2432, %v2434
      %v2436 = vsel %vm486, %v2430, %v2432
      %v2437 = vsel %vm486, %v2428, %v2430
      %v2438 = vsel %vm486, %v2434, %v2428
      %v2439 = vmul.f32 %v2438, %v494
      %v2440 = vmul.f32 %v2437, %v498
      %v2441 = vmul.f32 %v2436, %v502
      %v2442 = vmul.f32 %v2435, %v506
      %v2443 = vpack.c.bf16 %v2439, %v2439
      %v2444 = vpack.c.bf16 %v2440, %v2440
      %v2445 = vpack.c.bf16 %v2441, %v2441
      %v2446 = vpack.c.bf16 %v2442, %v2442
      %v2451 = vunpack.c.l.b16 %v2443
      %v2452 = vunpack.c.l.b16 %v2444
      %v2453 = vunpack.c.l.b16 %v2445
      %v2454 = vunpack.c.l.b16 %v2446
      %v2455 = vpack.c.b16 %v2452, %v2451
      %v2456 = vpack.c.b16 %v2454, %v2453
      %2459 = vst [vmem:[#allocation2 + $0x1f0] sm:$0xff] %v2455
      %2460 = vst [vmem:[#allocation2 + $0x1f8] sm:$0xff] %v2456
      %v2461 = vpack.c.bf16 %v2321, %v2321
      %v2462 = vpack.c.bf16 %v2322, %v2322
      %v2463 = vpack.c.bf16 %v2323, %v2323
      %v2464 = vpack.c.bf16 %v2324, %v2324
      %v2469 = vunpack.c.l.b16 %v2461
      %v2470 = vunpack.c.l.b16 %v2462
      %v2471 = vunpack.c.l.b16 %v2463
      %v2472 = vunpack.c.l.b16 %v2464
      %v2473 = vpack.c.b16 %v2470, %v2469
      %v2474 = vpack.c.b16 %v2472, %v2471
      %2477 = vst [vmem:[#allocation2 + $0x200] sm:$0xff] %v2473
      %2478 = vst [vmem:[#allocation2 + $0x208] sm:$0xff] %v2474
      %2479 = vrot.lane.b32.xlu0 %v2321, 127
      %v2480 = vpop.permute.xlu0 %2479
      %2481 = vrot.lane.b32.xlu0 %v2322, 127
      %v2482 = vpop.permute.xlu0 %2481
      %2483 = vrot.lane.b32.xlu0 %v2323, 127
      %v2484 = vpop.permute.xlu0 %2483
      %2485 = vrot.lane.b32.xlu0 %v2324, 127
      %v2486 = vpop.permute.xlu0 %2485
      %v2487 = vsel %vm555, %v2484, %v2486
      %v2488 = vsel %vm555, %v2482, %v2484
      %v2489 = vsel %vm555, %v2480, %v2482
      %v2490 = vsel %vm555, %v2486, %v2480
      %v2491 = vmul.f32 %v2489, %v563
      %v2492 = vmul.f32 %v2488, %v567
      %v2493 = vmul.f32 %v2487, %v571
      %v2494 = vmul.f32 %v2490, %v575
      %v2495 = vpack.c.bf16 %v2491, %v2491
      %v2496 = vpack.c.bf16 %v2492, %v2492
      %v2497 = vpack.c.bf16 %v2493, %v2493
      %v2498 = vpack.c.bf16 %v2494, %v2494
      %v2503 = vunpack.c.l.b16 %v2495
      %v2504 = vunpack.c.l.b16 %v2496
      %v2505 = vunpack.c.l.b16 %v2497
      %v2506 = vunpack.c.l.b16 %v2498
      %v2507 = vpack.c.b16 %v2504, %v2503
      %v2508 = vpack.c.b16 %v2506, %v2505
      %2511 = vst [vmem:[#allocation2 + $0x210] sm:$0xff] %v2507
      %2512 = vst [vmem:[#allocation2 + $0x218] sm:$0xff] %v2508
      %2513 = vrot.lane.b32.xlu0 %v2321, 113
      %v2514 = vpop.permute.xlu0 %2513
      %2515 = vrot.lane.b32.xlu0 %v2322, 113
      %v2516 = vpop.permute.xlu0 %2515
      %2517 = vrot.lane.b32.xlu0 %v2323, 113
      %v2518 = vpop.permute.xlu0 %2517
      %2519 = vrot.lane.b32.xlu0 %v2324, 113
      %v2520 = vpop.permute.xlu0 %2519
      %v2521 = vsel %vm606, %v2518, %v2520
      %v2522 = vsel %vm606, %v2516, %v2518
      %v2523 = vsel %vm606, %v2514, %v2516
      %v2524 = vsel %vm606, %v2520, %v2514
      %v2525 = vmul.f32 %v2523, %v614
      %v2526 = vmul.f32 %v2522, %v618
      %v2527 = vmul.f32 %v2521, %v622
      %v2528 = vmul.f32 %v2524, %v626
      %v2529 = vpack.c.bf16 %v2525, %v2525
      %v2530 = vpack.c.bf16 %v2526, %v2526
      %v2531 = vpack.c.bf16 %v2527, %v2527
      %v2532 = vpack.c.bf16 %v2528, %v2528
      %v2537 = vunpack.c.l.b16 %v2529
      %v2538 = vunpack.c.l.b16 %v2530
      %v2539 = vunpack.c.l.b16 %v2531
      %v2540 = vunpack.c.l.b16 %v2532
      %v2541 = vpack.c.b16 %v2538, %v2537
      %v2542 = vpack.c.b16 %v2540, %v2539
      %2545 = vst [vmem:[#allocation2 + $0x220] sm:$0xff] %v2541
      %2546 = vst [vmem:[#allocation2 + $0x228] sm:$0xff] %v2542
      %2547 = vrot.lane.b32.xlu0 %v2321, 112
      %v2548 = vpop.permute.xlu0 %2547
      %2549 = vrot.lane.b32.xlu0 %v2322, 112
      %v2550 = vpop.permute.xlu0 %2549
      %2551 = vrot.lane.b32.xlu0 %v2323, 112
      %v2552 = vpop.permute.xlu0 %2551
      %2553 = vrot.lane.b32.xlu0 %v2324, 112
      %v2554 = vpop.permute.xlu0 %2553
      %v2555 = vsel %vm657, %v2552, %v2554
      %v2556 = vsel %vm657, %v2550, %v2552
      %v2557 = vsel %vm657, %v2548, %v2550
      %v2558 = vsel %vm657, %v2554, %v2548
      %v2559 = vmul.f32 %v2557, %v665
      %v2560 = vmul.f32 %v2556, %v669
      %v2561 = vmul.f32 %v2555, %v673
      %v2562 = vmul.f32 %v2558, %v677
      %v2563 = vpack.c.bf16 %v2559, %v2559
      %v2564 = vpack.c.bf16 %v2560, %v2560
      %v2565 = vpack.c.bf16 %v2561, %v2561
      %v2566 = vpack.c.bf16 %v2562, %v2562
      %v2571 = vunpack.c.l.b16 %v2563
      %v2572 = vunpack.c.l.b16 %v2564
      %v2573 = vunpack.c.l.b16 %v2565
      %v2574 = vunpack.c.l.b16 %v2566
      %v2575 = vpack.c.b16 %v2572, %v2571
      %v2576 = vpack.c.b16 %v2574, %v2573
      %2579 = vst [vmem:[#allocation2 + $0x230] sm:$0xff] %v2575
      %2580 = vst [vmem:[#allocation2 + $0x238] sm:$0xff] %v2576
      %2581 = vrot.lane.b32.xlu0 %v2321, 111
      %v2582 = vpop.permute.xlu0 %2581
      %2583 = vrot.lane.b32.xlu0 %v2322, 111
      %v2584 = vpop.permute.xlu0 %2583
      %2585 = vrot.lane.b32.xlu0 %v2323, 111
      %v2586 = vpop.permute.xlu0 %2585
      %2587 = vrot.lane.b32.xlu0 %v2324, 111
      %v2588 = vpop.permute.xlu0 %2587
      %v2589 = vsel %vm708, %v2586, %v2588
      %v2590 = vsel %vm708, %v2584, %v2586
      %v2591 = vsel %vm708, %v2582, %v2584
      %v2592 = vsel %vm708, %v2588, %v2582
      %v2593 = vmul.f32 %v2591, %v716
      %v2594 = vmul.f32 %v2590, %v720
      %v2595 = vmul.f32 %v2589, %v724
      %v2596 = vmul.f32 %v2592, %v728
      %v2597 = vpack.c.bf16 %v2593, %v2593
      %v2598 = vpack.c.bf16 %v2594, %v2594
      %v2599 = vpack.c.bf16 %v2595, %v2595
      %v2600 = vpack.c.bf16 %v2596, %v2596
      %v2605 = vunpack.c.l.b16 %v2597
      %v2606 = vunpack.c.l.b16 %v2598
      %v2607 = vunpack.c.l.b16 %v2599
      %v2608 = vunpack.c.l.b16 %v2600
      %v2609 = vpack.c.b16 %v2606, %v2605
      %v2610 = vpack.c.b16 %v2608, %v2607
      %2613 = vst [vmem:[#allocation2 + $0x240] sm:$0xff] %v2609
      %2614 = vst [vmem:[#allocation2 + $0x248] sm:$0xff] %v2610
      %v2615 = vld [vmem:[%s5] sm:$0xff]
      %v2616 = vld [vmem:[%s5 + $0x8] sm:$0xf]
      %v2617 = vld [vmem:[#allocation2] sm:$0xff]
      %v2618 = vld [vmem:[#allocation2 + $0x8] sm:$0xff]
      %v2619 = vld [vmem:[#allocation2 + $0x10] sm:$0xff]
      %v2620 = vld [vmem:[#allocation2 + $0x18] sm:$0xff]
      %v2621 = vld [vmem:[#allocation2 + $0x20] sm:$0xff]
      %v2622 = vld [vmem:[#allocation2 + $0x28] sm:$0xff]
      %v2623 = vld [vmem:[#allocation2 + $0x30] sm:$0xff]
      %v2624 = vld [vmem:[#allocation2 + $0x38] sm:$0xff]
      %v2625 = vld [vmem:[#allocation2 + $0x40] sm:$0xff]
      %v2626 = vld [vmem:[#allocation2 + $0x48] sm:$0xff]
      %v2627 = vld [vmem:[#allocation2 + $0x50] sm:$0xff]
      %v2628 = vld [vmem:[#allocation2 + $0x58] sm:$0xff]
      %v2629 = vld [vmem:[#allocation2 + $0x60] sm:$0xff]
      %v2630 = vld [vmem:[#allocation2 + $0x68] sm:$0xff]
      %v2631 = vld [vmem:[#allocation2 + $0x70] sm:$0xff]
      %v2632 = vld [vmem:[#allocation2 + $0x78] sm:$0xff]
      %v2633 = vld [vmem:[#allocation2 + $0x80] sm:$0xff]
      %v2634 = vld [vmem:[#allocation2 + $0x88] sm:$0xff]
      %v2635 = vld [vmem:[#allocation2 + $0x90] sm:$0xff]
      %v2636 = vld [vmem:[#allocation2 + $0x98] sm:$0xff]
      %v2637 = vld [vmem:[#allocation2 + $0xa0] sm:$0xff]
      %v2638 = vld [vmem:[#allocation2 + $0xa8] sm:$0xff]
      %v2639 = vld [vmem:[#allocation2 + $0xb0] sm:$0xff]
      %v2640 = vld [vmem:[#allocation2 + $0xb8] sm:$0xff]
      %v2641 = vld [vmem:[#allocation2 + $0xc0] sm:$0xff]
      %v2642 = vld [vmem:[#allocation2 + $0xc8] sm:$0xff]
      %v2643 = vld [vmem:[#allocation2 + $0xd0] sm:$0xff]
      %v2644 = vld [vmem:[#allocation2 + $0xd8] sm:$0xff]
      %v2645 = vld [vmem:[#allocation2 + $0xe0] sm:$0xff]
      %v2646 = vld [vmem:[#allocation2 + $0xe8] sm:$0xff]
      %v2647 = vld [vmem:[#allocation2 + $0xf0] sm:$0xff]
      %v2648 = vld [vmem:[#allocation2 + $0xf8] sm:$0xff]
      %v2649 = vld [vmem:[#allocation2 + $0x100] sm:$0xff]
      %v2650 = vld [vmem:[#allocation2 + $0x108] sm:$0xff]
      %v2651 = vld [vmem:[#allocation2 + $0x110] sm:$0xff]
      %v2652 = vld [vmem:[#allocation2 + $0x118] sm:$0xff]
      %v2653 = vld [vmem:[#allocation2 + $0x120] sm:$0xff]
      %v2654 = vld [vmem:[#allocation2 + $0x128] sm:$0xff]
      %v2655 = vld [vmem:[#allocation2 + $0x130] sm:$0xff]
      %v2656 = vld [vmem:[#allocation2 + $0x138] sm:$0xff]
      %v2657 = vld [vmem:[#allocation2 + $0x140] sm:$0xff]
      %v2658 = vld [vmem:[#allocation2 + $0x148] sm:$0xff]
      %v2659 = vld [vmem:[#allocation2 + $0x150] sm:$0xff]
      %v2660 = vld [vmem:[#allocation2 + $0x158] sm:$0xff]
      %v2661 = vld [vmem:[#allocation2 + $0x160] sm:$0xff]
      %v2662 = vld [vmem:[#allocation2 + $0x168] sm:$0xff]
      %v2663 = vld [vmem:[#allocation2 + $0x170] sm:$0xff]
      %v2664 = vld [vmem:[#allocation2 + $0x178] sm:$0xff]
      %v2665 = vld [vmem:[#allocation2 + $0x180] sm:$0xff]
      %v2666 = vld [vmem:[#allocation2 + $0x188] sm:$0xff]
      %v2667 = vld [vmem:[#allocation2 + $0x190] sm:$0xff]
      %v2668 = vld [vmem:[#allocation2 + $0x198] sm:$0xff]
      %v2669 = vld [vmem:[#allocation2 + $0x1a0] sm:$0xff]
      %v2670 = vld [vmem:[#allocation2 + $0x1a8] sm:$0xff]
      %v2671 = vld [vmem:[#allocation2 + $0x1b0] sm:$0xff]
      %v2672 = vld [vmem:[#allocation2 + $0x1b8] sm:$0xff]
      %v2673 = vld [vmem:[#allocation2 + $0x1c0] sm:$0xff]
      %v2674 = vld [vmem:[#allocation2 + $0x1c8] sm:$0xff]
      %v2675 = vld [vmem:[#allocation2 + $0x1d0] sm:$0xff]
      %v2676 = vld [vmem:[#allocation2 + $0x1d8] sm:$0xff]
      %v2677 = vld [vmem:[#allocation2 + $0x1e0] sm:$0xff]
      %v2678 = vld [vmem:[#allocation2 + $0x1e8] sm:$0xff]
      %v2679 = vld [vmem:[#allocation2 + $0x1f0] sm:$0xff]
      %v2680 = vld [vmem:[#allocation2 + $0x1f8] sm:$0xff]
      %v2681 = vld [vmem:[#allocation2 + $0x200] sm:$0xff]
      %v2682 = vld [vmem:[#allocation2 + $0x208] sm:$0xff]
      %v2683 = vld [vmem:[#allocation2 + $0x210] sm:$0xff]
      %v2684 = vld [vmem:[#allocation2 + $0x218] sm:$0xff]
      %v2685 = vld [vmem:[#allocation2 + $0x220] sm:$0xff]
      %v2686 = vld [vmem:[#allocation2 + $0x228] sm:$0xff]
      %v2687 = vld [vmem:[#allocation2 + $0x230] sm:$0xff]
      %v2688 = vld [vmem:[#allocation2 + $0x238] sm:$0xff]
      %v2689 = vld [vmem:[#allocation2 + $0x240] sm:$0xff]
      %v2690 = vld [vmem:[#allocation2 + $0x248] sm:$0xff]
      %v2693 = vunpack.c.l.b16 %v2615
      %v2694 = vunpack.c.h.b16 %v2615
      %v2695 = vunpack.c.l.b16 %v2616
      %v2696 = vpack.c.b16 %v2693, %v2693
      %v2697 = vpack.c.b16 %v2694, %v2694
      %v2698 = vpack.c.b16 %v2695, %v2695
      %v2775 = vunpack.c.l.b16 %v2617
      %v2776 = vunpack.c.h.b16 %v2617
      %v2777 = vunpack.c.l.b16 %v2618
      %v2778 = vunpack.c.h.b16 %v2618
      %v2779 = vunpack.c.l.b16 %v2619
      %v2780 = vunpack.c.h.b16 %v2619
      %v2781 = vunpack.c.l.b16 %v2620
      %v2782 = vunpack.c.h.b16 %v2620
      %v2783 = vunpack.c.l.b16 %v2621
      %v2784 = vunpack.c.h.b16 %v2621
      %v2785 = vunpack.c.l.b16 %v2622
      %v2786 = vunpack.c.h.b16 %v2622
      %v2787 = vunpack.c.l.b16 %v2623
      %v2788 = vunpack.c.h.b16 %v2623
      %v2789 = vunpack.c.l.b16 %v2624
      %v2790 = vunpack.c.h.b16 %v2624
      %v2791 = vunpack.c.l.b16 %v2625
      %v2792 = vunpack.c.h.b16 %v2625
      %v2793 = vunpack.c.l.b16 %v2626
      %v2794 = vunpack.c.h.b16 %v2626
      %v2795 = vunpack.c.l.b16 %v2627
      %v2796 = vunpack.c.h.b16 %v2627
      %v2797 = vunpack.c.l.b16 %v2628
      %v2798 = vunpack.c.h.b16 %v2628
      %v2799 = vunpack.c.l.b16 %v2629
      %v2800 = vunpack.c.h.b16 %v2629
      %v2801 = vunpack.c.l.b16 %v2630
      %v2802 = vunpack.c.h.b16 %v2630
      %v2803 = vunpack.c.l.b16 %v2631
      %v2804 = vunpack.c.h.b16 %v2631
      %v2805 = vunpack.c.l.b16 %v2632
      %v2806 = vunpack.c.h.b16 %v2632
      %v2807 = vunpack.c.l.b16 %v2633
      %v2808 = vunpack.c.h.b16 %v2633
      %v2809 = vunpack.c.l.b16 %v2634
      %v2810 = vunpack.c.h.b16 %v2634
      %v2811 = vunpack.c.l.b16 %v2635
      %v2812 = vunpack.c.h.b16 %v2635
      %v2813 = vunpack.c.l.b16 %v2636
      %v2814 = vunpack.c.h.b16 %v2636
      %v2815 = vunpack.c.l.b16 %v2637
      %v2816 = vunpack.c.h.b16 %v2637
      %v2817 = vunpack.c.l.b16 %v2638
      %v2818 = vunpack.c.h.b16 %v2638
      %v2819 = vunpack.c.l.b16 %v2639
      %v2820 = vunpack.c.h.b16 %v2639
      %v2821 = vunpack.c.l.b16 %v2640
      %v2822 = vunpack.c.h.b16 %v2640
      %v2823 = vunpack.c.l.b16 %v2641
      %v2824 = vunpack.c.h.b16 %v2641
      %v2825 = vunpack.c.l.b16 %v2642
      %v2826 = vunpack.c.h.b16 %v2642
      %v2827 = vunpack.c.l.b16 %v2643
      %v2828 = vunpack.c.h.b16 %v2643
      %v2829 = vunpack.c.l.b16 %v2644
      %v2830 = vunpack.c.h.b16 %v2644
      %v2831 = vunpack.c.l.b16 %v2645
      %v2832 = vunpack.c.h.b16 %v2645
      %v2833 = vunpack.c.l.b16 %v2646
      %v2834 = vunpack.c.h.b16 %v2646
      %v2835 = vunpack.c.l.b16 %v2647
      %v2836 = vunpack.c.h.b16 %v2647
      %v2837 = vunpack.c.l.b16 %v2648
      %v2838 = vunpack.c.h.b16 %v2648
      %v2839 = vunpack.c.l.b16 %v2649
      %v2840 = vunpack.c.h.b16 %v2649
      %v2841 = vunpack.c.l.b16 %v2650
      %v2842 = vunpack.c.h.b16 %v2650
      %v2843 = vunpack.c.l.b16 %v2651
      %v2844 = vunpack.c.h.b16 %v2651
      %v2845 = vunpack.c.l.b16 %v2652
      %v2846 = vunpack.c.h.b16 %v2652
      %v2847 = vunpack.c.l.b16 %v2653
      %v2848 = vunpack.c.h.b16 %v2653
      %v2849 = vunpack.c.l.b16 %v2654
      %v2850 = vunpack.c.h.b16 %v2654
      %v2851 = vunpack.c.l.b16 %v2655
      %v2852 = vunpack.c.h.b16 %v2655
      %v2853 = vunpack.c.l.b16 %v2656
      %v2854 = vunpack.c.h.b16 %v2656
      %v2855 = vunpack.c.l.b16 %v2657
      %v2856 = vunpack.c.h.b16 %v2657
      %v2857 = vunpack.c.l.b16 %v2658
      %v2858 = vunpack.c.h.b16 %v2658
      %v2859 = vunpack.c.l.b16 %v2659
      %v2860 = vunpack.c.h.b16 %v2659
      %v2861 = vunpack.c.l.b16 %v2660
      %v2862 = vunpack.c.h.b16 %v2660
      %v2863 = vunpack.c.l.b16 %v2661
      %v2864 = vunpack.c.h.b16 %v2661
      %v2865 = vunpack.c.l.b16 %v2662
      %v2866 = vunpack.c.h.b16 %v2662
      %v2867 = vunpack.c.l.b16 %v2663
      %v2868 = vunpack.c.h.b16 %v2663
      %v2869 = vunpack.c.l.b16 %v2664
      %v2870 = vunpack.c.h.b16 %v2664
      %v2871 = vunpack.c.l.b16 %v2665
      %v2872 = vunpack.c.h.b16 %v2665
      %v2873 = vunpack.c.l.b16 %v2666
      %v2874 = vunpack.c.h.b16 %v2666
      %v2875 = vunpack.c.l.b16 %v2667
      %v2876 = vunpack.c.h.b16 %v2667
      %v2877 = vunpack.c.l.b16 %v2668
      %v2878 = vunpack.c.h.b16 %v2668
      %v2879 = vunpack.c.l.b16 %v2669
      %v2880 = vunpack.c.h.b16 %v2669
      %v2881 = vunpack.c.l.b16 %v2670
      %v2882 = vunpack.c.h.b16 %v2670
      %v2883 = vunpack.c.l.b16 %v2671
      %v2884 = vunpack.c.h.b16 %v2671
      %v2885 = vunpack.c.l.b16 %v2672
      %v2886 = vunpack.c.h.b16 %v2672
      %v2887 = vunpack.c.l.b16 %v2673
      %v2888 = vunpack.c.h.b16 %v2673
      %v2889 = vunpack.c.l.b16 %v2674
      %v2890 = vunpack.c.h.b16 %v2674
      %v2891 = vunpack.c.l.b16 %v2675
      %v2892 = vunpack.c.h.b16 %v2675
      %v2893 = vunpack.c.l.b16 %v2676
      %v2894 = vunpack.c.h.b16 %v2676
      %v2895 = vunpack.c.l.b16 %v2677
      %v2896 = vunpack.c.h.b16 %v2677
      %v2897 = vunpack.c.l.b16 %v2678
      %v2898 = vunpack.c.h.b16 %v2678
      %v2899 = vunpack.c.l.b16 %v2679
      %v2900 = vunpack.c.h.b16 %v2679
      %v2901 = vunpack.c.l.b16 %v2680
      %v2902 = vunpack.c.h.b16 %v2680
      %v2903 = vunpack.c.l.b16 %v2681
      %v2904 = vunpack.c.h.b16 %v2681
      %v2905 = vunpack.c.l.b16 %v2682
      %v2906 = vunpack.c.h.b16 %v2682
      %v2907 = vunpack.c.l.b16 %v2683
      %v2908 = vunpack.c.h.b16 %v2683
      %v2909 = vunpack.c.l.b16 %v2684
      %v2910 = vunpack.c.h.b16 %v2684
      %v2911 = vunpack.c.l.b16 %v2685
      %v2912 = vunpack.c.h.b16 %v2685
      %v2913 = vunpack.c.l.b16 %v2686
      %v2914 = vunpack.c.h.b16 %v2686
      %v2915 = vunpack.c.l.b16 %v2687
      %v2916 = vunpack.c.h.b16 %v2687
      %v2917 = vunpack.c.l.b16 %v2688
      %v2918 = vunpack.c.h.b16 %v2688
      %v2919 = vunpack.c.l.b16 %v2689
      %v2920 = vunpack.c.h.b16 %v2689
      %v2921 = vunpack.c.l.b16 %v2690
      %v2922 = vunpack.c.h.b16 %v2690
      %v2923 = vpack.c.b16 %v2779, %v2775
      %v2924 = vpack.c.b16 %v2780, %v2776
      %v2925 = vpack.c.b16 %v2781, %v2777
      %v2926 = vpack.c.b16 %v2782, %v2778
      %v2927 = vpack.c.b16 %v2787, %v2783
      %v2928 = vpack.c.b16 %v2788, %v2784
      %v2929 = vpack.c.b16 %v2789, %v2785
      %v2930 = vpack.c.b16 %v2790, %v2786
      %v2931 = vpack.c.b16 %v2795, %v2791
      %v2932 = vpack.c.b16 %v2796, %v2792
      %v2933 = vpack.c.b16 %v2797, %v2793
      %v2934 = vpack.c.b16 %v2798, %v2794
      %v2935 = vpack.c.b16 %v2803, %v2799
      %v2936 = vpack.c.b16 %v2804, %v2800
      %v2937 = vpack.c.b16 %v2805, %v2801
      %v2938 = vpack.c.b16 %v2806, %v2802
      %v2939 = vpack.c.b16 %v2811, %v2807
      %v2940 = vpack.c.b16 %v2812, %v2808
      %v2941 = vpack.c.b16 %v2813, %v2809
      %v2942 = vpack.c.b16 %v2814, %v2810
      %v2943 = vpack.c.b16 %v2819, %v2815
      %v2944 = vpack.c.b16 %v2820, %v2816
      %v2945 = vpack.c.b16 %v2821, %v2817
      %v2946 = vpack.c.b16 %v2822, %v2818
      %v2947 = vpack.c.b16 %v2827, %v2823
      %v2948 = vpack.c.b16 %v2828, %v2824
      %v2949 = vpack.c.b16 %v2829, %v2825
      %v2950 = vpack.c.b16 %v2830, %v2826
      %v2951 = vpack.c.b16 %v2835, %v2831
      %v2952 = vpack.c.b16 %v2836, %v2832
      %v2953 = vpack.c.b16 %v2837, %v2833
      %v2954 = vpack.c.b16 %v2838, %v2834
      %v2955 = vpack.c.b16 %v2843, %v2839
      %v2956 = vpack.c.b16 %v2844, %v2840
      %v2957 = vpack.c.b16 %v2845, %v2841
      %v2958 = vpack.c.b16 %v2846, %v2842
      %v2959 = vpack.c.b16 %v2851, %v2847
      %v2960 = vpack.c.b16 %v2852, %v2848
      %v2961 = vpack.c.b16 %v2853, %v2849
      %v2962 = vpack.c.b16 %v2854, %v2850
      %v2963 = vpack.c.b16 %v2859, %v2855
      %v2964 = vpack.c.b16 %v2860, %v2856
      %v2965 = vpack.c.b16 %v2861, %v2857
      %v2966 = vpack.c.b16 %v2862, %v2858
      %v2967 = vpack.c.b16 %v2867, %v2863
      %v2968 = vpack.c.b16 %v2868, %v2864
      %v2969 = vpack.c.b16 %v2869, %v2865
      %v2970 = vpack.c.b16 %v2870, %v2866
      %v2971 = vpack.c.b16 %v2875, %v2871
      %v2972 = vpack.c.b16 %v2876, %v2872
      %v2973 = vpack.c.b16 %v2877, %v2873
      %v2974 = vpack.c.b16 %v2878, %v2874
      %v2975 = vpack.c.b16 %v2883, %v2879
      %v2976 = vpack.c.b16 %v2884, %v2880
      %v2977 = vpack.c.b16 %v2885, %v2881
      %v2978 = vpack.c.b16 %v2886, %v2882
      %v2979 = vpack.c.b16 %v2891, %v2887
      %v2980 = vpack.c.b16 %v2892, %v2888
      %v2981 = vpack.c.b16 %v2893, %v2889
      %v2982 = vpack.c.b16 %v2894, %v2890
      %v2983 = vpack.c.b16 %v2899, %v2895
      %v2984 = vpack.c.b16 %v2900, %v2896
      %v2985 = vpack.c.b16 %v2901, %v2897
      %v2986 = vpack.c.b16 %v2902, %v2898
      %v2987 = vpack.c.b16 %v2907, %v2903
      %v2988 = vpack.c.b16 %v2908, %v2904
      %v2989 = vpack.c.b16 %v2909, %v2905
      %v2990 = vpack.c.b16 %v2910, %v2906
      %v2991 = vpack.c.b16 %v2915, %v2911
      %v2992 = vpack.c.b16 %v2916, %v2912
      %v2993 = vpack.c.b16 %v2917, %v2913
      %v2994 = vpack.c.b16 %v2918, %v2914
      %v2995 = vpack.c.b16 %v2919, %v2919
      %v2996 = vpack.c.b16 %v2920, %v2920
      %v2997 = vpack.c.b16 %v2921, %v2921
      %v2998 = vpack.c.b16 %v2922, %v2922
      %vm3071 = vcmask 326656
      %v3073 = vsel %vm3071, %v2698, 0
      %v3076 = vsel %vm1495, %v2995, 0
      %v3079 = vsel %vm1495, %v2996, 0
      %v3082 = vsel %vm1495, %v2997, 0
      %v3085 = vsel %vm1495, %v2998, 0
      %3087 = vmatprep.subr.bf16.mxu0 %v2952
      %3088 = vmatpush1.bf16.msra.mxu0 %v2951
      %3089 = vmatprep.subr.bf16.mxu0 %v2948
      %3090 = vmatpush1.bf16.msra.mxu0 %v2947
      %3091 = vmatprep.subr.bf16.mxu0 %v2944
      %3092 = vmatpush1.bf16.msra.mxu0 %v2943
      %3093 = vmatprep.subr.bf16.mxu0 %v2940
      %3094 = vmatpush1.bf16.msra.mxu0 %v2939
      %3095 = vmatprep.subr.bf16.mxu0 %v2936
      %3096 = vmatpush1.bf16.msra.mxu0 %v2935
      %3097 = vmatprep.subr.bf16.mxu0 %v2932
      %3098 = vmatpush1.bf16.msra.mxu0 %v2931
      %3099 = vmatprep.subr.bf16.mxu0 %v2928
      %3100 = vmatpush1.bf16.msra.mxu0 %v2927
      %3101 = vmatprep.subr.bf16.mxu0 %v2924
      %3102 = vmatpush1.bf16.msra.mxu0 %v2923
      %3103 = vmatprep.subr.bf16.mxu0 %v2984
      %3104 = vmatpush2.bf16.msra.mxu0 %v2983
      %3105 = vmatprep.subr.bf16.mxu0 %v2980
      %3106 = vmatpush2.bf16.msra.mxu0 %v2979
      %3107 = vmatprep.subr.bf16.mxu0 %v2976
      %3108 = vmatpush2.bf16.msra.mxu0 %v2975
      %3109 = vmatprep.subr.bf16.mxu0 %v2972
      %3110 = vmatpush2.bf16.msra.mxu0 %v2971
      %3111 = vmatprep.subr.bf16.mxu0 %v2968
      %3112 = vmatpush2.bf16.msra.mxu0 %v2967
      %3113 = vmatprep.subr.bf16.mxu0 %v2964
      %3114 = vmatpush2.bf16.msra.mxu0 %v2963
      %3115 = vmatprep.subr.bf16.mxu0 %v2960
      %3116 = vmatpush2.bf16.msra.mxu0 %v2959
      %3117 = vmatprep.subr.bf16.mxu0 %v2956
      %3118 = vmatpush2.bf16.msra.mxu0 %v2955
      %3119 = vmatprep.mubr.bf16.mxu0 %v2697
      %3120 = vmatmul.mubr.bf16.gmra.mxu0 %v2696
      %v3121 = vpop.f32.mrf.mxu0
      %v3122 = vadd.f32 0.0, %v3121
      %v3123 = vpop.f32.mrf.mxu0
      %v3124 = vadd.f32 0.0, %v3123
      %v3125 = vpop.f32.mrf.mxu0
      %v3126 = vpop.f32.mrf.mxu0
      %3127 = vdwg.mxu0
      %3128 = vmatprep.subr.bf16.mxu0 0
      %3129 = vmatpush1.bf16.msra.mxu0 0
      %3130 = vmatprep.subr.bf16.mxu0 0
      %3131 = vmatpush1.bf16.msra.mxu0 0
      %3132 = vmatprep.subr.bf16.mxu0 0
      %3133 = vmatpush1.bf16.msra.mxu0 0
      %3134 = vmatprep.subr.bf16.mxu0 0
      %3135 = vmatpush1.bf16.msra.mxu0 0
      %3136 = vmatprep.subr.bf16.mxu0 0
      %3137 = vmatpush1.bf16.msra.mxu0 0
      %3138 = vmatprep.subr.bf16.mxu0 %v3079
      %3139 = vmatpush1.bf16.msra.mxu0 %v3076
      %3140 = vmatprep.subr.bf16.mxu0 %v2992
      %3141 = vmatpush1.bf16.msra.mxu0 %v2991
      %3142 = vmatprep.subr.bf16.mxu0 %v2988
      %3143 = vmatpush1.bf16.msra.mxu0 %v2987
      %3144 = vmatprep.subr.bf16.mxu0 0
      %3145 = vmatpush2.bf16.msra.mxu0 0
      %3146 = vmatprep.subr.bf16.mxu0 0
      %3147 = vmatpush2.bf16.msra.mxu0 0
      %3148 = vmatprep.subr.bf16.mxu0 0
      %3149 = vmatpush2.bf16.msra.mxu0 0
      %3150 = vmatprep.subr.bf16.mxu0 0
      %3151 = vmatpush2.bf16.msra.mxu0 0
      %3152 = vmatprep.subr.bf16.mxu0 0
      %3153 = vmatpush2.bf16.msra.mxu0 0
      %3154 = vmatprep.subr.bf16.mxu0 0
      %3155 = vmatpush2.bf16.msra.mxu0 0
      %3156 = vmatprep.subr.bf16.mxu0 0
      %3157 = vmatpush2.bf16.msra.mxu0 0
      %3158 = vmatprep.subr.bf16.mxu0 0
      %3159 = vmatpush2.bf16.msra.mxu0 0
      %3160 = vmatprep.mubr.bf16.mxu0 0
      %3161 = vmatmul.mubr.bf16.gmra.mxu0 %v3073
      %v3162 = vpop.f32.mrf.mxu0
      %v3163 = vadd.f32 %v3122, %v3162
      %v3164 = vpop.f32.mrf.mxu0
      %v3165 = vadd.f32 %v3124, %v3164
      %v3166 = vpop.f32.mrf.mxu0
      %v3167 = vpop.f32.mrf.mxu0
      %3168 = vdwg.mxu0
      %3169 = vmatprep.subr.bf16.mxu0 %v2954
      %3170 = vmatpush1.bf16.msra.mxu0 %v2953
      %3171 = vmatprep.subr.bf16.mxu0 %v2950
      %3172 = vmatpush1.bf16.msra.mxu0 %v2949
      %3173 = vmatprep.subr.bf16.mxu0 %v2946
      %3174 = vmatpush1.bf16.msra.mxu0 %v2945
      %3175 = vmatprep.subr.bf16.mxu0 %v2942
      %3176 = vmatpush1.bf16.msra.mxu0 %v2941
      %3177 = vmatprep.subr.bf16.mxu0 %v2938
      %3178 = vmatpush1.bf16.msra.mxu0 %v2937
      %3179 = vmatprep.subr.bf16.mxu0 %v2934
      %3180 = vmatpush1.bf16.msra.mxu0 %v2933
      %3181 = vmatprep.subr.bf16.mxu0 %v2930
      %3182 = vmatpush1.bf16.msra.mxu0 %v2929
      %3183 = vmatprep.subr.bf16.mxu0 %v2926
      %3184 = vmatpush1.bf16.msra.mxu0 %v2925
      %3185 = vmatprep.subr.bf16.mxu0 %v2986
      %3186 = vmatpush2.bf16.msra.mxu0 %v2985
      %3187 = vmatprep.subr.bf16.mxu0 %v2982
      %3188 = vmatpush2.bf16.msra.mxu0 %v2981
      %3189 = vmatprep.subr.bf16.mxu0 %v2978
      %3190 = vmatpush2.bf16.msra.mxu0 %v2977
      %3191 = vmatprep.subr.bf16.mxu0 %v2974
      %3192 = vmatpush2.bf16.msra.mxu0 %v2973
      %3193 = vmatprep.subr.bf16.mxu0 %v2970
      %3194 = vmatpush2.bf16.msra.mxu0 %v2969
      %3195 = vmatprep.subr.bf16.mxu0 %v2966
      %3196 = vmatpush2.bf16.msra.mxu0 %v2965
      %3197 = vmatprep.subr.bf16.mxu0 %v2962
      %3198 = vmatpush2.bf16.msra.mxu0 %v2961
      %3199 = vmatprep.subr.bf16.mxu0 %v2958
      %3200 = vmatpush2.bf16.msra.mxu0 %v2957
      %3201 = vmatprep.mubr.bf16.mxu0 %v2697
      %3202 = vmatmul.mubr.bf16.gmra.mxu0 %v2696
      %v3203 = vpop.f32.mrf.mxu0
      %v3204 = vadd.f32 0.0, %v3203
      %v3205 = vpop.f32.mrf.mxu0
      %v3206 = vadd.f32 0.0, %v3205
      %v3207 = vpop.f32.mrf.mxu0
      %v3208 = vpop.f32.mrf.mxu0
      %3209 = vdwg.mxu0
      %3210 = vmatprep.subr.bf16.mxu0 0
      %3211 = vmatpush1.bf16.msra.mxu0 0
      %3212 = vmatprep.subr.bf16.mxu0 0
      %3213 = vmatpush1.bf16.msra.mxu0 0
      %3214 = vmatprep.subr.bf16.mxu0 0
      %3215 = vmatpush1.bf16.msra.mxu0 0
      %3216 = vmatprep.subr.bf16.mxu0 0
      %3217 = vmatpush1.bf16.msra.mxu0 0
      %3218 = vmatprep.subr.bf16.mxu0 0
      %3219 = vmatpush1.bf16.msra.mxu0 0
      %3220 = vmatprep.subr.bf16.mxu0 %v3085
      %3221 = vmatpush1.bf16.msra.mxu0 %v3082
      %3222 = vmatprep.subr.bf16.mxu0 %v2994
      %3223 = vmatpush1.bf16.msra.mxu0 %v2993
      %3224 = vmatprep.subr.bf16.mxu0 %v2990
      %3225 = vmatpush1.bf16.msra.mxu0 %v2989
      %3226 = vmatprep.subr.bf16.mxu0 0
      %3227 = vmatpush2.bf16.msra.mxu0 0
      %3228 = vmatprep.subr.bf16.mxu0 0
      %3229 = vmatpush2.bf16.msra.mxu0 0
      %3230 = vmatprep.subr.bf16.mxu0 0
      %3231 = vmatpush2.bf16.msra.mxu0 0
      %3232 = vmatprep.subr.bf16.mxu0 0
      %3233 = vmatpush2.bf16.msra.mxu0 0
      %3234 = vmatprep.subr.bf16.mxu0 0
      %3235 = vmatpush2.bf16.msra.mxu0 0
      %3236 = vmatprep.subr.bf16.mxu0 0
      %3237 = vmatpush2.bf16.msra.mxu0 0
      %3238 = vmatprep.subr.bf16.mxu0 0
      %3239 = vmatpush2.bf16.msra.mxu0 0
      %3240 = vmatprep.subr.bf16.mxu0 0
      %3241 = vmatpush2.bf16.msra.mxu0 0
      %3242 = vmatprep.mubr.bf16.mxu0 0
      %3243 = vmatmul.mubr.bf16.gmra.mxu0 %v3073
      %v3244 = vpop.f32.mrf.mxu0
      %v3245 = vadd.f32 %v3204, %v3244
      %v3246 = vpop.f32.mrf.mxu0
      %v3247 = vadd.f32 %v3206, %v3246
      %v3248 = vpop.f32.mrf.mxu0
      %v3249 = vpop.f32.mrf.mxu0
      %3250 = vdwg.mxu0
      %v3251 = vmul.f32 %v3163, 0.2
      %v3252 = vmul.f32 %v3165, 0.2
      %v3253 = vmul.f32 %v3245, 0.2
      %v3254 = vmul.f32 %v3247, 0.2
      %v3255 = vmax.f32 %v3163, %v3251
      %v3256 = vmax.f32 %v3165, %v3252
      %v3257 = vmax.f32 %v3245, %v3253
      %v3258 = vmax.f32 %v3247, %v3254
      %3259 = vrot.lane.b32.xlu0 %v3255, 17
      %v3260 = vpop.permute.xlu0 %3259
      %3261 = vrot.lane.b32.xlu0 %v3256, 17
      %v3262 = vpop.permute.xlu0 %3261
      %3263 = vrot.lane.b32.xlu0 %v3257, 17
      %v3264 = vpop.permute.xlu0 %3263
      %3265 = vrot.lane.b32.xlu0 %v3258, 17
      %v3266 = vpop.permute.xlu0 %3265
      %v3267 = vsel %vm333, %v3264, %v3266
      %v3268 = vsel %vm333, %v3262, %v3264
      %v3269 = vsel %vm333, %v3260, %v3262
      %v3270 = vsel %vm333, %v3266, %v3260
      %v3271 = vmul.f32 %v3270, %v341
      %v3272 = vmul.f32 %v3269, %v345
      %v3273 = vmul.f32 %v3268, %v349
      %v3274 = vmul.f32 %v3267, %v353
      %v3275 = vpack.c.bf16 %v3271, %v3271
      %v3276 = vpack.c.bf16 %v3272, %v3272
      %v3277 = vpack.c.bf16 %v3273, %v3273
      %v3278 = vpack.c.bf16 %v3274, %v3274
      %v3283 = vunpack.c.l.b16 %v3275
      %v3284 = vunpack.c.l.b16 %v3276
      %v3285 = vunpack.c.l.b16 %v3277
      %v3286 = vunpack.c.l.b16 %v3278
      %v3287 = vpack.c.b16 %v3284, %v3283
      %v3288 = vpack.c.b16 %v3286, %v3285
      %3291 = vst [vmem:[#allocation2 + $0x250] sm:$0xff] %v3287
      %3292 = vst [vmem:[#allocation2 + $0x258] sm:$0xff] %v3288
      %3293 = vrot.lane.b32.xlu0 %v3255, 16
      %v3294 = vpop.permute.xlu0 %3293
      %3295 = vrot.lane.b32.xlu0 %v3256, 16
      %v3296 = vpop.permute.xlu0 %3295
      %3297 = vrot.lane.b32.xlu0 %v3257, 16
      %v3298 = vpop.permute.xlu0 %3297
      %3299 = vrot.lane.b32.xlu0 %v3258, 16
      %v3300 = vpop.permute.xlu0 %3299
      %v3301 = vsel %vm384, %v3298, %v3300
      %v3302 = vsel %vm384, %v3296, %v3298
      %v3303 = vsel %vm384, %v3294, %v3296
      %v3304 = vsel %vm384, %v3300, %v3294
      %v3305 = vmul.f32 %v3304, %v392
      %v3306 = vmul.f32 %v3303, %v396
      %v3307 = vmul.f32 %v3302, %v400
      %v3308 = vmul.f32 %v3301, %v404
      %v3309 = vpack.c.bf16 %v3305, %v3305
      %v3310 = vpack.c.bf16 %v3306, %v3306
      %v3311 = vpack.c.bf16 %v3307, %v3307
      %v3312 = vpack.c.bf16 %v3308, %v3308
      %v3317 = vunpack.c.l.b16 %v3309
      %v3318 = vunpack.c.l.b16 %v3310
      %v3319 = vunpack.c.l.b16 %v3311
      %v3320 = vunpack.c.l.b16 %v3312
      %v3321 = vpack.c.b16 %v3318, %v3317
      %v3322 = vpack.c.b16 %v3320, %v3319
      %3325 = vst [vmem:[#allocation2 + $0x260] sm:$0xff] %v3321
      %3326 = vst [vmem:[#allocation2 + $0x268] sm:$0xff] %v3322
      %3327 = vrot.lane.b32.xlu0 %v3255, 15
      %v3328 = vpop.permute.xlu0 %3327
      %3329 = vrot.lane.b32.xlu0 %v3256, 15
      %v3330 = vpop.permute.xlu0 %3329
      %3331 = vrot.lane.b32.xlu0 %v3257, 15
      %v3332 = vpop.permute.xlu0 %3331
      %3333 = vrot.lane.b32.xlu0 %v3258, 15
      %v3334 = vpop.permute.xlu0 %3333
      %v3335 = vsel %vm435, %v3332, %v3334
      %v3336 = vsel %vm435, %v3330, %v3332
      %v3337 = vsel %vm435, %v3328, %v3330
      %v3338 = vsel %vm435, %v3334, %v3328
      %v3339 = vmul.f32 %v3338, %v443
      %v3340 = vmul.f32 %v3337, %v447
      %v3341 = vmul.f32 %v3336, %v451
      %v3342 = vmul.f32 %v3335, %v455
      %v3343 = vpack.c.bf16 %v3339, %v3339
      %v3344 = vpack.c.bf16 %v3340, %v3340
      %v3345 = vpack.c.bf16 %v3341, %v3341
      %v3346 = vpack.c.bf16 %v3342, %v3342
      %v3351 = vunpack.c.l.b16 %v3343
      %v3352 = vunpack.c.l.b16 %v3344
      %v3353 = vunpack.c.l.b16 %v3345
      %v3354 = vunpack.c.l.b16 %v3346
      %v3355 = vpack.c.b16 %v3352, %v3351
      %v3356 = vpack.c.b16 %v3354, %v3353
      %3359 = vst [vmem:[#allocation2 + $0x270] sm:$0xff] %v3355
      %3360 = vst [vmem:[#allocation2 + $0x278] sm:$0xff] %v3356
      %3361 = vrot.lane.b32.xlu0 %v3255, 1
      %v3362 = vpop.permute.xlu0 %3361
      %3363 = vrot.lane.b32.xlu0 %v3256, 1
      %v3364 = vpop.permute.xlu0 %3363
      %3365 = vrot.lane.b32.xlu0 %v3257, 1
      %v3366 = vpop.permute.xlu0 %3365
      %3367 = vrot.lane.b32.xlu0 %v3258, 1
      %v3368 = vpop.permute.xlu0 %3367
      %v3369 = vsel %vm486, %v3366, %v3368
      %v3370 = vsel %vm486, %v3364, %v3366
      %v3371 = vsel %vm486, %v3362, %v3364
      %v3372 = vsel %vm486, %v3368, %v3362
      %v3373 = vmul.f32 %v3372, %v494
      %v3374 = vmul.f32 %v3371, %v498
      %v3375 = vmul.f32 %v3370, %v502
      %v3376 = vmul.f32 %v3369, %v506
      %v3377 = vpack.c.bf16 %v3373, %v3373
      %v3378 = vpack.c.bf16 %v3374, %v3374
      %v3379 = vpack.c.bf16 %v3375, %v3375
      %v3380 = vpack.c.bf16 %v3376, %v3376
      %v3385 = vunpack.c.l.b16 %v3377
      %v3386 = vunpack.c.l.b16 %v3378
      %v3387 = vunpack.c.l.b16 %v3379
      %v3388 = vunpack.c.l.b16 %v3380
      %v3389 = vpack.c.b16 %v3386, %v3385
      %v3390 = vpack.c.b16 %v3388, %v3387
      %3393 = vst [vmem:[#allocation2 + $0x280] sm:$0xff] %v3389
      %3394 = vst [vmem:[#allocation2 + $0x288] sm:$0xff] %v3390
      %v3395 = vpack.c.bf16 %v3255, %v3255
      %v3396 = vpack.c.bf16 %v3256, %v3256
      %v3397 = vpack.c.bf16 %v3257, %v3257
      %v3398 = vpack.c.bf16 %v3258, %v3258
      %v3403 = vunpack.c.l.b16 %v3395
      %v3404 = vunpack.c.l.b16 %v3396
      %v3405 = vunpack.c.l.b16 %v3397
      %v3406 = vunpack.c.l.b16 %v3398
      %v3407 = vpack.c.b16 %v3404, %v3403
      %v3408 = vpack.c.b16 %v3406, %v3405
      %3411 = vst [vmem:[#allocation2 + $0x290] sm:$0xff] %v3407
      %3412 = vst [vmem:[#allocation2 + $0x298] sm:$0xff] %v3408
      %3413 = vrot.lane.b32.xlu0 %v3255, 127
      %v3414 = vpop.permute.xlu0 %3413
      %3415 = vrot.lane.b32.xlu0 %v3256, 127
      %v3416 = vpop.permute.xlu0 %3415
      %3417 = vrot.lane.b32.xlu0 %v3257, 127
      %v3418 = vpop.permute.xlu0 %3417
      %3419 = vrot.lane.b32.xlu0 %v3258, 127
      %v3420 = vpop.permute.xlu0 %3419
      %v3421 = vsel %vm555, %v3418, %v3420
      %v3422 = vsel %vm555, %v3416, %v3418
      %v3423 = vsel %vm555, %v3414, %v3416
      %v3424 = vsel %vm555, %v3420, %v3414
      %v3425 = vmul.f32 %v3423, %v563
      %v3426 = vmul.f32 %v3422, %v567
      %v3427 = vmul.f32 %v3421, %v571
      %v3428 = vmul.f32 %v3424, %v575
      %v3429 = vpack.c.bf16 %v3425, %v3425
      %v3430 = vpack.c.bf16 %v3426, %v3426
      %v3431 = vpack.c.bf16 %v3427, %v3427
      %v3432 = vpack.c.bf16 %v3428, %v3428
      %v3437 = vunpack.c.l.b16 %v3429
      %v3438 = vunpack.c.l.b16 %v3430
      %v3439 = vunpack.c.l.b16 %v3431
      %v3440 = vunpack.c.l.b16 %v3432
      %v3441 = vpack.c.b16 %v3438, %v3437
      %v3442 = vpack.c.b16 %v3440, %v3439
      %3445 = vst [vmem:[#allocation2 + $0x2a0] sm:$0xff] %v3441
      %3446 = vst [vmem:[#allocation2 + $0x2a8] sm:$0xff] %v3442
      %3447 = vrot.lane.b32.xlu0 %v3255, 113
      %v3448 = vpop.permute.xlu0 %3447
      %3449 = vrot.lane.b32.xlu0 %v3256, 113
      %v3450 = vpop.permute.xlu0 %3449
      %3451 = vrot.lane.b32.xlu0 %v3257, 113
      %v3452 = vpop.permute.xlu0 %3451
      %3453 = vrot.lane.b32.xlu0 %v3258, 113
      %v3454 = vpop.permute.xlu0 %3453
      %v3455 = vsel %vm606, %v3452, %v3454
      %v3456 = vsel %vm606, %v3450, %v3452
      %v3457 = vsel %vm606, %v3448, %v3450
      %v3458 = vsel %vm606, %v3454, %v3448
      %v3459 = vmul.f32 %v3457, %v614
      %v3460 = vmul.f32 %v3456, %v618
      %v3461 = vmul.f32 %v3455, %v622
      %v3462 = vmul.f32 %v3458, %v626
      %v3463 = vpack.c.bf16 %v3459, %v3459
      %v3464 = vpack.c.bf16 %v3460, %v3460
      %v3465 = vpack.c.bf16 %v3461, %v3461
      %v3466 = vpack.c.bf16 %v3462, %v3462
      %v3471 = vunpack.c.l.b16 %v3463
      %v3472 = vunpack.c.l.b16 %v3464
      %v3473 = vunpack.c.l.b16 %v3465
      %v3474 = vunpack.c.l.b16 %v3466
      %v3475 = vpack.c.b16 %v3472, %v3471
      %v3476 = vpack.c.b16 %v3474, %v3473
      %3479 = vst [vmem:[#allocation2 + $0x2b0] sm:$0xff] %v3475
      %3480 = vst [vmem:[#allocation2 + $0x2b8] sm:$0xff] %v3476
      %3481 = vrot.lane.b32.xlu0 %v3255, 112
      %v3482 = vpop.permute.xlu0 %3481
      %3483 = vrot.lane.b32.xlu0 %v3256, 112
      %v3484 = vpop.permute.xlu0 %3483
      %3485 = vrot.lane.b32.xlu0 %v3257, 112
      %v3486 = vpop.permute.xlu0 %3485
      %3487 = vrot.lane.b32.xlu0 %v3258, 112
      %v3488 = vpop.permute.xlu0 %3487
      %v3489 = vsel %vm657, %v3486, %v3488
      %v3490 = vsel %vm657, %v3484, %v3486
      %v3491 = vsel %vm657, %v3482, %v3484
      %v3492 = vsel %vm657, %v3488, %v3482
      %v3493 = vmul.f32 %v3491, %v665
      %v3494 = vmul.f32 %v3490, %v669
      %v3495 = vmul.f32 %v3489, %v673
      %v3496 = vmul.f32 %v3492, %v677
      %v3497 = vpack.c.bf16 %v3493, %v3493
      %v3498 = vpack.c.bf16 %v3494, %v3494
      %v3499 = vpack.c.bf16 %v3495, %v3495
      %v3500 = vpack.c.bf16 %v3496, %v3496
      %v3505 = vunpack.c.l.b16 %v3497
      %v3506 = vunpack.c.l.b16 %v3498
      %v3507 = vunpack.c.l.b16 %v3499
      %v3508 = vunpack.c.l.b16 %v3500
      %v3509 = vpack.c.b16 %v3506, %v3505
      %v3510 = vpack.c.b16 %v3508, %v3507
      %3513 = vst [vmem:[#allocation2 + $0x2c0] sm:$0xff] %v3509
      %3514 = vst [vmem:[#allocation2 + $0x2c8] sm:$0xff] %v3510
      %3515 = vrot.lane.b32.xlu0 %v3255, 111
      %v3516 = vpop.permute.xlu0 %3515
      %3517 = vrot.lane.b32.xlu0 %v3256, 111
      %v3518 = vpop.permute.xlu0 %3517
      %3519 = vrot.lane.b32.xlu0 %v3257, 111
      %v3520 = vpop.permute.xlu0 %3519
      %3521 = vrot.lane.b32.xlu0 %v3258, 111
      %v3522 = vpop.permute.xlu0 %3521
      %v3523 = vsel %vm708, %v3520, %v3522
      %v3524 = vsel %vm708, %v3518, %v3520
      %v3525 = vsel %vm708, %v3516, %v3518
      %v3526 = vsel %vm708, %v3522, %v3516
      %v3527 = vmul.f32 %v3525, %v716
      %v3528 = vmul.f32 %v3524, %v720
      %v3529 = vmul.f32 %v3523, %v724
      %v3530 = vmul.f32 %v3526, %v728
      %v3531 = vpack.c.bf16 %v3527, %v3527
      %v3532 = vpack.c.bf16 %v3528, %v3528
      %v3533 = vpack.c.bf16 %v3529, %v3529
      %v3534 = vpack.c.bf16 %v3530, %v3530
      %v3539 = vunpack.c.l.b16 %v3531
      %v3540 = vunpack.c.l.b16 %v3532
      %v3541 = vunpack.c.l.b16 %v3533
      %v3542 = vunpack.c.l.b16 %v3534
      %v3543 = vpack.c.b16 %v3540, %v3539
      %v3544 = vpack.c.b16 %v3542, %v3541
      %3547 = vst [vmem:[#allocation2 + $0x2d0] sm:$0xff] %v3543
      %3548 = vst [vmem:[#allocation2 + $0x2d8] sm:$0xff] %v3544
      %v3549 = vld [vmem:[%s6] sm:$0xff]
      %v3550 = vld [vmem:[%s6 + $0x8] sm:$0xf]
      %v3551 = vld [vmem:[#allocation2] sm:$0xff]
      %v3552 = vld [vmem:[#allocation2 + $0x8] sm:$0xff]
      %v3553 = vld [vmem:[#allocation2 + $0x10] sm:$0xff]
      %v3554 = vld [vmem:[#allocation2 + $0x18] sm:$0xff]
      %v3555 = vld [vmem:[#allocation2 + $0x20] sm:$0xff]
      %v3556 = vld [vmem:[#allocation2 + $0x28] sm:$0xff]
      %v3557 = vld [vmem:[#allocation2 + $0x30] sm:$0xff]
      %v3558 = vld [vmem:[#allocation2 + $0x38] sm:$0xff]
      %v3559 = vld [vmem:[#allocation2 + $0x40] sm:$0xff]
      %v3560 = vld [vmem:[#allocation2 + $0x48] sm:$0xff]
      %v3561 = vld [vmem:[#allocation2 + $0x50] sm:$0xff]
      %v3562 = vld [vmem:[#allocation2 + $0x58] sm:$0xff]
      %v3563 = vld [vmem:[#allocation2 + $0x60] sm:$0xff]
      %v3564 = vld [vmem:[#allocation2 + $0x68] sm:$0xff]
      %v3565 = vld [vmem:[#allocation2 + $0x70] sm:$0xff]
      %v3566 = vld [vmem:[#allocation2 + $0x78] sm:$0xff]
      %v3567 = vld [vmem:[#allocation2 + $0x80] sm:$0xff]
      %v3568 = vld [vmem:[#allocation2 + $0x88] sm:$0xff]
      %v3569 = vld [vmem:[#allocation2 + $0x90] sm:$0xff]
      %v3570 = vld [vmem:[#allocation2 + $0x98] sm:$0xff]
      %v3571 = vld [vmem:[#allocation2 + $0xa0] sm:$0xff]
      %v3572 = vld [vmem:[#allocation2 + $0xa8] sm:$0xff]
      %v3573 = vld [vmem:[#allocation2 + $0xb0] sm:$0xff]
      %v3574 = vld [vmem:[#allocation2 + $0xb8] sm:$0xff]
      %v3575 = vld [vmem:[#allocation2 + $0xc0] sm:$0xff]
      %v3576 = vld [vmem:[#allocation2 + $0xc8] sm:$0xff]
      %v3577 = vld [vmem:[#allocation2 + $0xd0] sm:$0xff]
      %v3578 = vld [vmem:[#allocation2 + $0xd8] sm:$0xff]
      %v3579 = vld [vmem:[#allocation2 + $0xe0] sm:$0xff]
      %v3580 = vld [vmem:[#allocation2 + $0xe8] sm:$0xff]
      %v3581 = vld [vmem:[#allocation2 + $0xf0] sm:$0xff]
      %v3582 = vld [vmem:[#allocation2 + $0xf8] sm:$0xff]
      %v3583 = vld [vmem:[#allocation2 + $0x100] sm:$0xff]
      %v3584 = vld [vmem:[#allocation2 + $0x108] sm:$0xff]
      %v3585 = vld [vmem:[#allocation2 + $0x110] sm:$0xff]
      %v3586 = vld [vmem:[#allocation2 + $0x118] sm:$0xff]
      %v3587 = vld [vmem:[#allocation2 + $0x120] sm:$0xff]
      %v3588 = vld [vmem:[#allocation2 + $0x128] sm:$0xff]
      %v3589 = vld [vmem:[#allocation2 + $0x130] sm:$0xff]
      %v3590 = vld [vmem:[#allocation2 + $0x138] sm:$0xff]
      %v3591 = vld [vmem:[#allocation2 + $0x140] sm:$0xff]
      %v3592 = vld [vmem:[#allocation2 + $0x148] sm:$0xff]
      %v3593 = vld [vmem:[#allocation2 + $0x150] sm:$0xff]
      %v3594 = vld [vmem:[#allocation2 + $0x158] sm:$0xff]
      %v3595 = vld [vmem:[#allocation2 + $0x160] sm:$0xff]
      %v3596 = vld [vmem:[#allocation2 + $0x168] sm:$0xff]
      %v3597 = vld [vmem:[#allocation2 + $0x170] sm:$0xff]
      %v3598 = vld [vmem:[#allocation2 + $0x178] sm:$0xff]
      %v3599 = vld [vmem:[#allocation2 + $0x180] sm:$0xff]
      %v3600 = vld [vmem:[#allocation2 + $0x188] sm:$0xff]
      %v3601 = vld [vmem:[#allocation2 + $0x190] sm:$0xff]
      %v3602 = vld [vmem:[#allocation2 + $0x198] sm:$0xff]
      %v3603 = vld [vmem:[#allocation2 + $0x1a0] sm:$0xff]
      %v3604 = vld [vmem:[#allocation2 + $0x1a8] sm:$0xff]
      %v3605 = vld [vmem:[#allocation2 + $0x1b0] sm:$0xff]
      %v3606 = vld [vmem:[#allocation2 + $0x1b8] sm:$0xff]
      %v3607 = vld [vmem:[#allocation2 + $0x1c0] sm:$0xff]
      %v3608 = vld [vmem:[#allocation2 + $0x1c8] sm:$0xff]
      %v3609 = vld [vmem:[#allocation2 + $0x1d0] sm:$0xff]
      %v3610 = vld [vmem:[#allocation2 + $0x1d8] sm:$0xff]
      %v3611 = vld [vmem:[#allocation2 + $0x1e0] sm:$0xff]
      %v3612 = vld [vmem:[#allocation2 + $0x1e8] sm:$0xff]
      %v3613 = vld [vmem:[#allocation2 + $0x1f0] sm:$0xff]
      %v3614 = vld [vmem:[#allocation2 + $0x1f8] sm:$0xff]
      %v3615 = vld [vmem:[#allocation2 + $0x200] sm:$0xff]
      %v3616 = vld [vmem:[#allocation2 + $0x208] sm:$0xff]
      %v3617 = vld [vmem:[#allocation2 + $0x210] sm:$0xff]
      %v3618 = vld [vmem:[#allocation2 + $0x218] sm:$0xff]
      %v3619 = vld [vmem:[#allocation2 + $0x220] sm:$0xff]
      %v3620 = vld [vmem:[#allocation2 + $0x228] sm:$0xff]
      %v3621 = vld [vmem:[#allocation2 + $0x230] sm:$0xff]
      %v3622 = vld [vmem:[#allocation2 + $0x238] sm:$0xff]
      %v3623 = vld [vmem:[#allocation2 + $0x240] sm:$0xff]
      %v3624 = vld [vmem:[#allocation2 + $0x248] sm:$0xff]
      %v3625 = vld [vmem:[#allocation2 + $0x250] sm:$0xff]
      %v3626 = vld [vmem:[#allocation2 + $0x258] sm:$0xff]
      %v3627 = vld [vmem:[#allocation2 + $0x260] sm:$0xff]
      %v3628 = vld [vmem:[#allocation2 + $0x268] sm:$0xff]
      %v3629 = vld [vmem:[#allocation2 + $0x270] sm:$0xff]
      %v3630 = vld [vmem:[#allocation2 + $0x278] sm:$0xff]
      %v3631 = vld [vmem:[#allocation2 + $0x280] sm:$0xff]
      %v3632 = vld [vmem:[#allocation2 + $0x288] sm:$0xff]
      %v3633 = vld [vmem:[#allocation2 + $0x290] sm:$0xff]
      %v3634 = vld [vmem:[#allocation2 + $0x298] sm:$0xff]
      %v3635 = vld [vmem:[#allocation2 + $0x2a0] sm:$0xff]
      %v3636 = vld [vmem:[#allocation2 + $0x2a8] sm:$0xff]
      %v3637 = vld [vmem:[#allocation2 + $0x2b0] sm:$0xff]
      %v3638 = vld [vmem:[#allocation2 + $0x2b8] sm:$0xff]
      %v3639 = vld [vmem:[#allocation2 + $0x2c0] sm:$0xff]
      %v3640 = vld [vmem:[#allocation2 + $0x2c8] sm:$0xff]
      %v3641 = vld [vmem:[#allocation2 + $0x2d0] sm:$0xff]
      %v3642 = vld [vmem:[#allocation2 + $0x2d8] sm:$0xff]
      %v3645 = vunpack.c.l.b16 %v3549
      %v3646 = vunpack.c.h.b16 %v3549
      %v3647 = vunpack.c.l.b16 %v3550
      %v3648 = vpack.c.b16 %v3645, %v3645
      %v3649 = vpack.c.b16 %v3646, %v3646
      %v3650 = vpack.c.b16 %v3647, %v3647
      %v3745 = vunpack.c.l.b16 %v3551
      %v3746 = vunpack.c.h.b16 %v3551
      %v3747 = vunpack.c.l.b16 %v3552
      %v3748 = vunpack.c.h.b16 %v3552
      %v3749 = vunpack.c.l.b16 %v3553
      %v3750 = vunpack.c.h.b16 %v3553
      %v3751 = vunpack.c.l.b16 %v3554
      %v3752 = vunpack.c.h.b16 %v3554
      %v3753 = vunpack.c.l.b16 %v3555
      %v3754 = vunpack.c.h.b16 %v3555
      %v3755 = vunpack.c.l.b16 %v3556
      %v3756 = vunpack.c.h.b16 %v3556
      %v3757 = vunpack.c.l.b16 %v3557
      %v3758 = vunpack.c.h.b16 %v3557
      %v3759 = vunpack.c.l.b16 %v3558
      %v3760 = vunpack.c.h.b16 %v3558
      %v3761 = vunpack.c.l.b16 %v3559
      %v3762 = vunpack.c.h.b16 %v3559
      %v3763 = vunpack.c.l.b16 %v3560
      %v3764 = vunpack.c.h.b16 %v3560
      %v3765 = vunpack.c.l.b16 %v3561
      %v3766 = vunpack.c.h.b16 %v3561
      %v3767 = vunpack.c.l.b16 %v3562
      %v3768 = vunpack.c.h.b16 %v3562
      %v3769 = vunpack.c.l.b16 %v3563
      %v3770 = vunpack.c.h.b16 %v3563
      %v3771 = vunpack.c.l.b16 %v3564
      %v3772 = vunpack.c.h.b16 %v3564
      %v3773 = vunpack.c.l.b16 %v3565
      %v3774 = vunpack.c.h.b16 %v3565
      %v3775 = vunpack.c.l.b16 %v3566
      %v3776 = vunpack.c.h.b16 %v3566
      %v3777 = vunpack.c.l.b16 %v3567
      %v3778 = vunpack.c.h.b16 %v3567
      %v3779 = vunpack.c.l.b16 %v3568
      %v3780 = vunpack.c.h.b16 %v3568
      %v3781 = vunpack.c.l.b16 %v3569
      %v3782 = vunpack.c.h.b16 %v3569
      %v3783 = vunpack.c.l.b16 %v3570
      %v3784 = vunpack.c.h.b16 %v3570
      %v3785 = vunpack.c.l.b16 %v3571
      %v3786 = vunpack.c.h.b16 %v3571
      %v3787 = vunpack.c.l.b16 %v3572
      %v3788 = vunpack.c.h.b16 %v3572
      %v3789 = vunpack.c.l.b16 %v3573
      %v3790 = vunpack.c.h.b16 %v3573
      %v3791 = vunpack.c.l.b16 %v3574
      %v3792 = vunpack.c.h.b16 %v3574
      %v3793 = vunpack.c.l.b16 %v3575
      %v3794 = vunpack.c.h.b16 %v3575
      %v3795 = vunpack.c.l.b16 %v3576
      %v3796 = vunpack.c.h.b16 %v3576
      %v3797 = vunpack.c.l.b16 %v3577
      %v3798 = vunpack.c.h.b16 %v3577
      %v3799 = vunpack.c.l.b16 %v3578
      %v3800 = vunpack.c.h.b16 %v3578
      %v3801 = vunpack.c.l.b16 %v3579
      %v3802 = vunpack.c.h.b16 %v3579
      %v3803 = vunpack.c.l.b16 %v3580
      %v3804 = vunpack.c.h.b16 %v3580
      %v3805 = vunpack.c.l.b16 %v3581
      %v3806 = vunpack.c.h.b16 %v3581
      %v3807 = vunpack.c.l.b16 %v3582
      %v3808 = vunpack.c.h.b16 %v3582
      %v3809 = vunpack.c.l.b16 %v3583
      %v3810 = vunpack.c.h.b16 %v3583
      %v3811 = vunpack.c.l.b16 %v3584
      %v3812 = vunpack.c.h.b16 %v3584
      %v3813 = vunpack.c.l.b16 %v3585
      %v3814 = vunpack.c.h.b16 %v3585
      %v3815 = vunpack.c.l.b16 %v3586
      %v3816 = vunpack.c.h.b16 %v3586
      %v3817 = vunpack.c.l.b16 %v3587
      %v3818 = vunpack.c.h.b16 %v3587
      %v3819 = vunpack.c.l.b16 %v3588
      %v3820 = vunpack.c.h.b16 %v3588
      %v3821 = vunpack.c.l.b16 %v3589
      %v3822 = vunpack.c.h.b16 %v3589
      %v3823 = vunpack.c.l.b16 %v3590
      %v3824 = vunpack.c.h.b16 %v3590
      %v3825 = vunpack.c.l.b16 %v3591
      %v3826 = vunpack.c.h.b16 %v3591
      %v3827 = vunpack.c.l.b16 %v3592
      %v3828 = vunpack.c.h.b16 %v3592
      %v3829 = vunpack.c.l.b16 %v3593
      %v3830 = vunpack.c.h.b16 %v3593
      %v3831 = vunpack.c.l.b16 %v3594
      %v3832 = vunpack.c.h.b16 %v3594
      %v3833 = vunpack.c.l.b16 %v3595
      %v3834 = vunpack.c.h.b16 %v3595
      %v3835 = vunpack.c.l.b16 %v3596
      %v3836 = vunpack.c.h.b16 %v3596
      %v3837 = vunpack.c.l.b16 %v3597
      %v3838 = vunpack.c.h.b16 %v3597
      %v3839 = vunpack.c.l.b16 %v3598
      %v3840 = vunpack.c.h.b16 %v3598
      %v3841 = vunpack.c.l.b16 %v3599
      %v3842 = vunpack.c.h.b16 %v3599
      %v3843 = vunpack.c.l.b16 %v3600
      %v3844 = vunpack.c.h.b16 %v3600
      %v3845 = vunpack.c.l.b16 %v3601
      %v3846 = vunpack.c.h.b16 %v3601
      %v3847 = vunpack.c.l.b16 %v3602
      %v3848 = vunpack.c.h.b16 %v3602
      %v3849 = vunpack.c.l.b16 %v3603
      %v3850 = vunpack.c.h.b16 %v3603
      %v3851 = vunpack.c.l.b16 %v3604
      %v3852 = vunpack.c.h.b16 %v3604
      %v3853 = vunpack.c.l.b16 %v3605
      %v3854 = vunpack.c.h.b16 %v3605
      %v3855 = vunpack.c.l.b16 %v3606
      %v3856 = vunpack.c.h.b16 %v3606
      %v3857 = vunpack.c.l.b16 %v3607
      %v3858 = vunpack.c.h.b16 %v3607
      %v3859 = vunpack.c.l.b16 %v3608
      %v3860 = vunpack.c.h.b16 %v3608
      %v3861 = vunpack.c.l.b16 %v3609
      %v3862 = vunpack.c.h.b16 %v3609
      %v3863 = vunpack.c.l.b16 %v3610
      %v3864 = vunpack.c.h.b16 %v3610
      %v3865 = vunpack.c.l.b16 %v3611
      %v3866 = vunpack.c.h.b16 %v3611
      %v3867 = vunpack.c.l.b16 %v3612
      %v3868 = vunpack.c.h.b16 %v3612
      %v3869 = vunpack.c.l.b16 %v3613
      %v3870 = vunpack.c.h.b16 %v3613
      %v3871 = vunpack.c.l.b16 %v3614
      %v3872 = vunpack.c.h.b16 %v3614
      %v3873 = vunpack.c.l.b16 %v3615
      %v3874 = vunpack.c.h.b16 %v3615
      %v3875 = vunpack.c.l.b16 %v3616
      %v3876 = vunpack.c.h.b16 %v3616
      %v3877 = vunpack.c.l.b16 %v3617
      %v3878 = vunpack.c.h.b16 %v3617
      %v3879 = vunpack.c.l.b16 %v3618
      %v3880 = vunpack.c.h.b16 %v3618
      %v3881 = vunpack.c.l.b16 %v3619
      %v3882 = vunpack.c.h.b16 %v3619
      %v3883 = vunpack.c.l.b16 %v3620
      %v3884 = vunpack.c.h.b16 %v3620
      %v3885 = vunpack.c.l.b16 %v3621
      %v3886 = vunpack.c.h.b16 %v3621
      %v3887 = vunpack.c.l.b16 %v3622
      %v3888 = vunpack.c.h.b16 %v3622
      %v3889 = vunpack.c.l.b16 %v3623
      %v3890 = vunpack.c.h.b16 %v3623
      %v3891 = vunpack.c.l.b16 %v3624
      %v3892 = vunpack.c.h.b16 %v3624
      %v3893 = vunpack.c.l.b16 %v3625
      %v3894 = vunpack.c.h.b16 %v3625
      %v3895 = vunpack.c.l.b16 %v3626
      %v3896 = vunpack.c.h.b16 %v3626
      %v3897 = vunpack.c.l.b16 %v3627
      %v3898 = vunpack.c.h.b16 %v3627
      %v3899 = vunpack.c.l.b16 %v3628
      %v3900 = vunpack.c.h.b16 %v3628
      %v3901 = vunpack.c.l.b16 %v3629
      %v3902 = vunpack.c.h.b16 %v3629
      %v3903 = vunpack.c.l.b16 %v3630
      %v3904 = vunpack.c.h.b16 %v3630
      %v3905 = vunpack.c.l.b16 %v3631
      %v3906 = vunpack.c.h.b16 %v3631
      %v3907 = vunpack.c.l.b16 %v3632
      %v3908 = vunpack.c.h.b16 %v3632
      %v3909 = vunpack.c.l.b16 %v3633
      %v3910 = vunpack.c.h.b16 %v3633
      %v3911 = vunpack.c.l.b16 %v3634
      %v3912 = vunpack.c.h.b16 %v3634
      %v3913 = vunpack.c.l.b16 %v3635
      %v3914 = vunpack.c.h.b16 %v3635
      %v3915 = vunpack.c.l.b16 %v3636
      %v3916 = vunpack.c.h.b16 %v3636
      %v3917 = vunpack.c.l.b16 %v3637
      %v3918 = vunpack.c.h.b16 %v3637
      %v3919 = vunpack.c.l.b16 %v3638
      %v3920 = vunpack.c.h.b16 %v3638
      %v3921 = vunpack.c.l.b16 %v3639
      %v3922 = vunpack.c.h.b16 %v3639
      %v3923 = vunpack.c.l.b16 %v3640
      %v3924 = vunpack.c.h.b16 %v3640
      %v3925 = vunpack.c.l.b16 %v3641
      %v3926 = vunpack.c.h.b16 %v3641
      %v3927 = vunpack.c.l.b16 %v3642
      %v3928 = vunpack.c.h.b16 %v3642
      %v3929 = vpack.c.b16 %v3749, %v3745
      %v3930 = vpack.c.b16 %v3750, %v3746
      %v3931 = vpack.c.b16 %v3751, %v3747
      %v3932 = vpack.c.b16 %v3752, %v3748
      %v3933 = vpack.c.b16 %v3757, %v3753
      %v3934 = vpack.c.b16 %v3758, %v3754
      %v3935 = vpack.c.b16 %v3759, %v3755
      %v3936 = vpack.c.b16 %v3760, %v3756
      %v3937 = vpack.c.b16 %v3765, %v3761
      %v3938 = vpack.c.b16 %v3766, %v3762
      %v3939 = vpack.c.b16 %v3767, %v3763
      %v3940 = vpack.c.b16 %v3768, %v3764
      %v3941 = vpack.c.b16 %v3773, %v3769
      %v3942 = vpack.c.b16 %v3774, %v3770
      %v3943 = vpack.c.b16 %v3775, %v3771
      %v3944 = vpack.c.b16 %v3776, %v3772
      %v3945 = vpack.c.b16 %v3781, %v3777
      %v3946 = vpack.c.b16 %v3782, %v3778
      %v3947 = vpack.c.b16 %v3783, %v3779
      %v3948 = vpack.c.b16 %v3784, %v3780
      %v3949 = vpack.c.b16 %v3789, %v3785
      %v3950 = vpack.c.b16 %v3790, %v3786
      %v3951 = vpack.c.b16 %v3791, %v3787
      %v3952 = vpack.c.b16 %v3792, %v3788
      %v3953 = vpack.c.b16 %v3797, %v3793
      %v3954 = vpack.c.b16 %v3798, %v3794
      %v3955 = vpack.c.b16 %v3799, %v3795
      %v3956 = vpack.c.b16 %v3800, %v3796
      %v3957 = vpack.c.b16 %v3805, %v3801
      %v3958 = vpack.c.b16 %v3806, %v3802
      %v3959 = vpack.c.b16 %v3807, %v3803
      %v3960 = vpack.c.b16 %v3808, %v3804
      %v3961 = vpack.c.b16 %v3813, %v3809
      %v3962 = vpack.c.b16 %v3814, %v3810
      %v3963 = vpack.c.b16 %v3815, %v3811
      %v3964 = vpack.c.b16 %v3816, %v3812
      %v3965 = vpack.c.b16 %v3821, %v3817
      %v3966 = vpack.c.b16 %v3822, %v3818
      %v3967 = vpack.c.b16 %v3823, %v3819
      %v3968 = vpack.c.b16 %v3824, %v3820
      %v3969 = vpack.c.b16 %v3829, %v3825
      %v3970 = vpack.c.b16 %v3830, %v3826
      %v3971 = vpack.c.b16 %v3831, %v3827
      %v3972 = vpack.c.b16 %v3832, %v3828
      %v3973 = vpack.c.b16 %v3837, %v3833
      %v3974 = vpack.c.b16 %v3838, %v3834
      %v3975 = vpack.c.b16 %v3839, %v3835
      %v3976 = vpack.c.b16 %v3840, %v3836
      %v3977 = vpack.c.b16 %v3845, %v3841
      %v3978 = vpack.c.b16 %v3846, %v3842
      %v3979 = vpack.c.b16 %v3847, %v3843
      %v3980 = vpack.c.b16 %v3848, %v3844
      %v3981 = vpack.c.b16 %v3853, %v3849
      %v3982 = vpack.c.b16 %v3854, %v3850
      %v3983 = vpack.c.b16 %v3855, %v3851
      %v3984 = vpack.c.b16 %v3856, %v3852
      %v3985 = vpack.c.b16 %v3861, %v3857
      %v3986 = vpack.c.b16 %v3862, %v3858
      %v3987 = vpack.c.b16 %v3863, %v3859
      %v3988 = vpack.c.b16 %v3864, %v3860
      %v3989 = vpack.c.b16 %v3869, %v3865
      %v3990 = vpack.c.b16 %v3870, %v3866
      %v3991 = vpack.c.b16 %v3871, %v3867
      %v3992 = vpack.c.b16 %v3872, %v3868
      %v3993 = vpack.c.b16 %v3877, %v3873
      %v3994 = vpack.c.b16 %v3878, %v3874
      %v3995 = vpack.c.b16 %v3879, %v3875
      %v3996 = vpack.c.b16 %v3880, %v3876
      %v3997 = vpack.c.b16 %v3885, %v3881
      %v3998 = vpack.c.b16 %v3886, %v3882
      %v3999 = vpack.c.b16 %v3887, %v3883
      %v4000 = vpack.c.b16 %v3888, %v3884
      %v4001 = vpack.c.b16 %v3893, %v3889
      %v4002 = vpack.c.b16 %v3894, %v3890
      %v4003 = vpack.c.b16 %v3895, %v3891
      %v4004 = vpack.c.b16 %v3896, %v3892
      %v4005 = vpack.c.b16 %v3901, %v3897
      %v4006 = vpack.c.b16 %v3902, %v3898
      %v4007 = vpack.c.b16 %v3903, %v3899
      %v4008 = vpack.c.b16 %v3904, %v3900
      %v4009 = vpack.c.b16 %v3909, %v3905
      %v4010 = vpack.c.b16 %v3910, %v3906
      %v4011 = vpack.c.b16 %v3911, %v3907
      %v4012 = vpack.c.b16 %v3912, %v3908
      %v4013 = vpack.c.b16 %v3917, %v3913
      %v4014 = vpack.c.b16 %v3918, %v3914
      %v4015 = vpack.c.b16 %v3919, %v3915
      %v4016 = vpack.c.b16 %v3920, %v3916
      %v4017 = vpack.c.b16 %v3925, %v3921
      %v4018 = vpack.c.b16 %v3926, %v3922
      %v4019 = vpack.c.b16 %v3927, %v3923
      %v4020 = vpack.c.b16 %v3928, %v3924
      %vm4113 = vcmask 916480
      %v4115 = vsel %vm4113, %v3650, 0
      %4117 = vmatprep.subr.bf16.mxu0 %v3958
      %4118 = vmatpush1.bf16.msra.mxu0 %v3957
      %4119 = vmatprep.subr.bf16.mxu0 %v3954
      %4120 = vmatpush1.bf16.msra.mxu0 %v3953
      %4121 = vmatprep.subr.bf16.mxu0 %v3950
      %4122 = vmatpush1.bf16.msra.mxu0 %v3949
      %4123 = vmatprep.subr.bf16.mxu0 %v3946
      %4124 = vmatpush1.bf16.msra.mxu0 %v3945
      %4125 = vmatprep.subr.bf16.mxu0 %v3942
      %4126 = vmatpush1.bf16.msra.mxu0 %v3941
      %4127 = vmatprep.subr.bf16.mxu0 %v3938
      %4128 = vmatpush1.bf16.msra.mxu0 %v3937
      %4129 = vmatprep.subr.bf16.mxu0 %v3934
      %4130 = vmatpush1.bf16.msra.mxu0 %v3933
      %4131 = vmatprep.subr.bf16.mxu0 %v3930
      %4132 = vmatpush1.bf16.msra.mxu0 %v3929
      %4133 = vmatprep.subr.bf16.mxu0 %v3990
      %4134 = vmatpush2.bf16.msra.mxu0 %v3989
      %4135 = vmatprep.subr.bf16.mxu0 %v3986
      %4136 = vmatpush2.bf16.msra.mxu0 %v3985
      %4137 = vmatprep.subr.bf16.mxu0 %v3982
      %4138 = vmatpush2.bf16.msra.mxu0 %v3981
      %4139 = vmatprep.subr.bf16.mxu0 %v3978
      %4140 = vmatpush2.bf16.msra.mxu0 %v3977
      %4141 = vmatprep.subr.bf16.mxu0 %v3974
      %4142 = vmatpush2.bf16.msra.mxu0 %v3973
      %4143 = vmatprep.subr.bf16.mxu0 %v3970
      %4144 = vmatpush2.bf16.msra.mxu0 %v3969
      %4145 = vmatprep.subr.bf16.mxu0 %v3966
      %4146 = vmatpush2.bf16.msra.mxu0 %v3965
      %4147 = vmatprep.subr.bf16.mxu0 %v3962
      %4148 = vmatpush2.bf16.msra.mxu0 %v3961
      %4149 = vmatprep.mubr.bf16.mxu0 %v3649
      %4150 = vmatmul.mubr.bf16.gmra.mxu0 %v3648
      %v4151 = vpop.f32.mrf.mxu0
      %v4152 = vadd.f32 0.0, %v4151
      %v4153 = vpop.f32.mrf.mxu0
      %v4154 = vadd.f32 0.0, %v4153
      %v4155 = vpop.f32.mrf.mxu0
      %v4156 = vpop.f32.mrf.mxu0
      %4157 = vdwg.mxu0
      %4158 = vmatprep.subr.bf16.mxu0 0
      %4159 = vmatpush1.bf16.msra.mxu0 0
      %4160 = vmatprep.subr.bf16.mxu0 %v4018
      %4161 = vmatpush1.bf16.msra.mxu0 %v4017
      %4162 = vmatprep.subr.bf16.mxu0 %v4014
      %4163 = vmatpush1.bf16.msra.mxu0 %v4013
      %4164 = vmatprep.subr.bf16.mxu0 %v4010
      %4165 = vmatpush1.bf16.msra.mxu0 %v4009
      %4166 = vmatprep.subr.bf16.mxu0 %v4006
      %4167 = vmatpush1.bf16.msra.mxu0 %v4005
      %4168 = vmatprep.subr.bf16.mxu0 %v4002
      %4169 = vmatpush1.bf16.msra.mxu0 %v4001
      %4170 = vmatprep.subr.bf16.mxu0 %v3998
      %4171 = vmatpush1.bf16.msra.mxu0 %v3997
      %4172 = vmatprep.subr.bf16.mxu0 %v3994
      %4173 = vmatpush1.bf16.msra.mxu0 %v3993
      %4174 = vmatprep.subr.bf16.mxu0 0
      %4175 = vmatpush2.bf16.msra.mxu0 0
      %4176 = vmatprep.subr.bf16.mxu0 0
      %4177 = vmatpush2.bf16.msra.mxu0 0
      %4178 = vmatprep.subr.bf16.mxu0 0
      %4179 = vmatpush2.bf16.msra.mxu0 0
      %4180 = vmatprep.subr.bf16.mxu0 0
      %4181 = vmatpush2.bf16.msra.mxu0 0
      %4182 = vmatprep.subr.bf16.mxu0 0
      %4183 = vmatpush2.bf16.msra.mxu0 0
      %4184 = vmatprep.subr.bf16.mxu0 0
      %4185 = vmatpush2.bf16.msra.mxu0 0
      %4186 = vmatprep.subr.bf16.mxu0 0
      %4187 = vmatpush2.bf16.msra.mxu0 0
      %4188 = vmatprep.subr.bf16.mxu0 0
      %4189 = vmatpush2.bf16.msra.mxu0 0
      %4190 = vmatprep.mubr.bf16.mxu0 0
      %4191 = vmatmul.mubr.bf16.gmra.mxu0 %v4115
      %v4192 = vpop.f32.mrf.mxu0
      %v4193 = vadd.f32 %v4152, %v4192
      %v4194 = vpop.f32.mrf.mxu0
      %v4195 = vadd.f32 %v4154, %v4194
      %v4196 = vpop.f32.mrf.mxu0
      %v4197 = vpop.f32.mrf.mxu0
      %4198 = vdwg.mxu0
      %4199 = vmatprep.subr.bf16.mxu0 %v3960
      %4200 = vmatpush1.bf16.msra.mxu0 %v3959
      %4201 = vmatprep.subr.bf16.mxu0 %v3956
      %4202 = vmatpush1.bf16.msra.mxu0 %v3955
      %4203 = vmatprep.subr.bf16.mxu0 %v3952
      %4204 = vmatpush1.bf16.msra.mxu0 %v3951
      %4205 = vmatprep.subr.bf16.mxu0 %v3948
      %4206 = vmatpush1.bf16.msra.mxu0 %v3947
      %4207 = vmatprep.subr.bf16.mxu0 %v3944
      %4208 = vmatpush1.bf16.msra.mxu0 %v3943
      %4209 = vmatprep.subr.bf16.mxu0 %v3940
      %4210 = vmatpush1.bf16.msra.mxu0 %v3939
      %4211 = vmatprep.subr.bf16.mxu0 %v3936
      %4212 = vmatpush1.bf16.msra.mxu0 %v3935
      %4213 = vmatprep.subr.bf16.mxu0 %v3932
      %4214 = vmatpush1.bf16.msra.mxu0 %v3931
      %4215 = vmatprep.subr.bf16.mxu0 %v3992
      %4216 = vmatpush2.bf16.msra.mxu0 %v3991
      %4217 = vmatprep.subr.bf16.mxu0 %v3988
      %4218 = vmatpush2.bf16.msra.mxu0 %v3987
      %4219 = vmatprep.subr.bf16.mxu0 %v3984
      %4220 = vmatpush2.bf16.msra.mxu0 %v3983
      %4221 = vmatprep.subr.bf16.mxu0 %v3980
      %4222 = vmatpush2.bf16.msra.mxu0 %v3979
      %4223 = vmatprep.subr.bf16.mxu0 %v3976
      %4224 = vmatpush2.bf16.msra.mxu0 %v3975
      %4225 = vmatprep.subr.bf16.mxu0 %v3972
      %4226 = vmatpush2.bf16.msra.mxu0 %v3971
      %4227 = vmatprep.subr.bf16.mxu0 %v3968
      %4228 = vmatpush2.bf16.msra.mxu0 %v3967
      %4229 = vmatprep.subr.bf16.mxu0 %v3964
      %4230 = vmatpush2.bf16.msra.mxu0 %v3963
      %4231 = vmatprep.mubr.bf16.mxu0 %v3649
      %4232 = vmatmul.mubr.bf16.gmra.mxu0 %v3648
      %v4233 = vpop.f32.mrf.mxu0
      %v4234 = vadd.f32 0.0, %v4233
      %v4235 = vpop.f32.mrf.mxu0
      %v4236 = vadd.f32 0.0, %v4235
      %v4237 = vpop.f32.mrf.mxu0
      %v4238 = vpop.f32.mrf.mxu0
      %4239 = vdwg.mxu0
      %4240 = vmatprep.subr.bf16.mxu0 0
      %4241 = vmatpush1.bf16.msra.mxu0 0
      %4242 = vmatprep.subr.bf16.mxu0 %v4020
      %4243 = vmatpush1.bf16.msra.mxu0 %v4019
      %4244 = vmatprep.subr.bf16.mxu0 %v4016
      %4245 = vmatpush1.bf16.msra.mxu0 %v4015
      %4246 = vmatprep.subr.bf16.mxu0 %v4012
      %4247 = vmatpush1.bf16.msra.mxu0 %v4011
      %4248 = vmatprep.subr.bf16.mxu0 %v4008
      %4249 = vmatpush1.bf16.msra.mxu0 %v4007
      %4250 = vmatprep.subr.bf16.mxu0 %v4004
      %4251 = vmatpush1.bf16.msra.mxu0 %v4003
      %4252 = vmatprep.subr.bf16.mxu0 %v4000
      %4253 = vmatpush1.bf16.msra.mxu0 %v3999
      %4254 = vmatprep.subr.bf16.mxu0 %v3996
      %4255 = vmatpush1.bf16.msra.mxu0 %v3995
      %4256 = vmatprep.subr.bf16.mxu0 0
      %4257 = vmatpush2.bf16.msra.mxu0 0
      %4258 = vmatprep.subr.bf16.mxu0 0
      %4259 = vmatpush2.bf16.msra.mxu0 0
      %4260 = vmatprep.subr.bf16.mxu0 0
      %4261 = vmatpush2.bf16.msra.mxu0 0
      %4262 = vmatprep.subr.bf16.mxu0 0
      %4263 = vmatpush2.bf16.msra.mxu0 0
      %4264 = vmatprep.subr.bf16.mxu0 0
      %4265 = vmatpush2.bf16.msra.mxu0 0
      %4266 = vmatprep.subr.bf16.mxu0 0
      %4267 = vmatpush2.bf16.msra.mxu0 0
      %4268 = vmatprep.subr.bf16.mxu0 0
      %4269 = vmatpush2.bf16.msra.mxu0 0
      %4270 = vmatprep.subr.bf16.mxu0 0
      %4271 = vmatpush2.bf16.msra.mxu0 0
      %4272 = vmatprep.mubr.bf16.mxu0 0
      %4273 = vmatmul.mubr.bf16.gmra.mxu0 %v4115
      %v4274 = vpop.f32.mrf.mxu0
      %v4275 = vadd.f32 %v4234, %v4274
      %v4276 = vpop.f32.mrf.mxu0
      %v4277 = vadd.f32 %v4236, %v4276
      %v4278 = vpop.f32.mrf.mxu0
      %v4279 = vpop.f32.mrf.mxu0
      %4280 = vdwg.mxu0
      %v4281 = vmul.f32 %v4193, 0.2
      %v4282 = vmul.f32 %v4195, 0.2
      %v4283 = vmul.f32 %v4275, 0.2
      %v4284 = vmul.f32 %v4277, 0.2
      %v4285 = vmax.f32 %v4193, %v4281
      %v4286 = vmax.f32 %v4195, %v4282
      %v4287 = vmax.f32 %v4275, %v4283
      %v4288 = vmax.f32 %v4277, %v4284
      %4289 = vrot.lane.b32.xlu0 %v4285, 17
      %v4290 = vpop.permute.xlu0 %4289
      %4291 = vrot.lane.b32.xlu0 %v4286, 17
      %v4292 = vpop.permute.xlu0 %4291
      %v4293 = vsel %vm333, %v4290, %v4292
      %v4294 = vsel %vm333, %v4292, %v4290
      %v4295 = vmul.f32 %v4294, %v341
      %v4296 = vmul.f32 %v4293, %v345
      %v4297 = vpack.c.bf16 %v4295, %v4295
      %v4298 = vpack.c.bf16 %v4296, %v4296
      %v4301 = vunpack.c.l.b16 %v4297
      %v4302 = vunpack.c.l.b16 %v4298
      %v4303 = vpack.c.b16 %v4302, %v4301
      %4305 = vst [vmem:[#allocation3 + $0x8] sm:$0xff] %v4303
      %4306 = vrot.lane.b32.xlu0 %v4285, 16
      %v4307 = vpop.permute.xlu0 %4306
      %4308 = vrot.lane.b32.xlu0 %v4286, 16
      %v4309 = vpop.permute.xlu0 %4308
      %v4310 = vsel %vm384, %v4307, %v4309
      %v4311 = vsel %vm384, %v4309, %v4307
      %v4312 = vmul.f32 %v4311, %v392
      %v4313 = vmul.f32 %v4310, %v396
      %v4314 = vpack.c.bf16 %v4312, %v4312
      %v4315 = vpack.c.bf16 %v4313, %v4313
      %v4318 = vunpack.c.l.b16 %v4314
      %v4319 = vunpack.c.l.b16 %v4315
      %v4320 = vpack.c.b16 %v4319, %v4318
      %4322 = vst [vmem:[#allocation3 + $0x10] sm:$0xff] %v4320
      %4323 = vrot.lane.b32.xlu0 %v4285, 15
      %v4324 = vpop.permute.xlu0 %4323
      %4325 = vrot.lane.b32.xlu0 %v4286, 15
      %v4326 = vpop.permute.xlu0 %4325
      %v4327 = vsel %vm435, %v4324, %v4326
      %v4328 = vsel %vm435, %v4326, %v4324
      %v4329 = vmul.f32 %v4328, %v443
      %v4330 = vmul.f32 %v4327, %v447
      %v4331 = vpack.c.bf16 %v4329, %v4329
      %v4332 = vpack.c.bf16 %v4330, %v4330
      %v4335 = vunpack.c.l.b16 %v4331
      %v4336 = vunpack.c.l.b16 %v4332
      %v4337 = vpack.c.b16 %v4336, %v4335
      %4339 = vst [vmem:[#allocation3 + $0x18] sm:$0xff] %v4337
      %4340 = vrot.lane.b32.xlu0 %v4285, 1
      %v4341 = vpop.permute.xlu0 %4340
      %4342 = vrot.lane.b32.xlu0 %v4286, 1
      %v4343 = vpop.permute.xlu0 %4342
      %v4344 = vsel %vm486, %v4341, %v4343
      %v4345 = vsel %vm486, %v4343, %v4341
      %v4346 = vmul.f32 %v4345, %v494
      %v4347 = vmul.f32 %v4344, %v498
      %v4348 = vpack.c.bf16 %v4346, %v4346
      %v4349 = vpack.c.bf16 %v4347, %v4347
      %v4352 = vunpack.c.l.b16 %v4348
      %v4353 = vunpack.c.l.b16 %v4349
      %v4354 = vpack.c.b16 %v4353, %v4352
      %4356 = vst [vmem:[#allocation3 + $0x20] sm:$0xff] %v4354
      %v4357 = vpack.c.bf16 %v4285, %v4285
      %v4358 = vpack.c.bf16 %v4286, %v4286
      %v4361 = vunpack.c.l.b16 %v4357
      %v4362 = vunpack.c.l.b16 %v4358
      %v4363 = vpack.c.b16 %v4362, %v4361
      %4365 = vst [vmem:[#allocation3 + $0x28] sm:$0xff] %v4363
      %4366 = vrot.lane.b32.xlu0 %v4285, 127
      %v4367 = vpop.permute.xlu0 %4366
      %4368 = vrot.lane.b32.xlu0 %v4286, 127
      %v4369 = vpop.permute.xlu0 %4368
      %v4370 = vsel %vm555, %v4367, %v4369
      %v4371 = vsel %vm555, %v4369, %v4367
      %v4372 = vmul.f32 %v4370, %v563
      %v4373 = vmul.f32 %v4371, %v567
      %v4374 = vpack.c.bf16 %v4372, %v4372
      %v4375 = vpack.c.bf16 %v4373, %v4373
      %v4378 = vunpack.c.l.b16 %v4374
      %v4379 = vunpack.c.l.b16 %v4375
      %v4380 = vpack.c.b16 %v4379, %v4378
      %4382 = vst [vmem:[#allocation3 + $0x30] sm:$0xff] %v4380
      %4383 = vrot.lane.b32.xlu0 %v4285, 113
      %v4384 = vpop.permute.xlu0 %4383
      %4385 = vrot.lane.b32.xlu0 %v4286, 113
      %v4386 = vpop.permute.xlu0 %4385
      %v4387 = vsel %vm606, %v4384, %v4386
      %v4388 = vsel %vm606, %v4386, %v4384
      %v4389 = vmul.f32 %v4387, %v614
      %v4390 = vmul.f32 %v4388, %v618
      %v4391 = vpack.c.bf16 %v4389, %v4389
      %v4392 = vpack.c.bf16 %v4390, %v4390
      %v4395 = vunpack.c.l.b16 %v4391
      %v4396 = vunpack.c.l.b16 %v4392
      %v4397 = vpack.c.b16 %v4396, %v4395
      %4399 = vst [vmem:[#allocation3 + $0x38] sm:$0xff] %v4397
      %4400 = vrot.lane.b32.xlu0 %v4285, 112
      %v4401 = vpop.permute.xlu0 %4400
      %4402 = vrot.lane.b32.xlu0 %v4286, 112
      %v4403 = vpop.permute.xlu0 %4402
      %v4404 = vsel %vm657, %v4401, %v4403
      %v4405 = vsel %vm657, %v4403, %v4401
      %v4406 = vmul.f32 %v4404, %v665
      %v4407 = vmul.f32 %v4405, %v669
      %v4408 = vpack.c.bf16 %v4406, %v4406
      %v4409 = vpack.c.bf16 %v4407, %v4407
      %v4412 = vunpack.c.l.b16 %v4408
      %v4413 = vunpack.c.l.b16 %v4409
      %v4414 = vpack.c.b16 %v4413, %v4412
      %4416 = vst [vmem:[#allocation3 + $0x40] sm:$0xff] %v4414
      %4417 = vrot.lane.b32.xlu0 %v4285, 111
      %v4418 = vpop.permute.xlu0 %4417
      %4419 = vrot.lane.b32.xlu0 %v4286, 111
      %v4420 = vpop.permute.xlu0 %4419
      %v4421 = vsel %vm708, %v4418, %v4420
      %v4422 = vsel %vm708, %v4420, %v4418
      %v4423 = vmul.f32 %v4421, %v716
      %v4424 = vmul.f32 %v4422, %v720
      %v4425 = vpack.c.bf16 %v4423, %v4423
      %v4426 = vpack.c.bf16 %v4424, %v4424
      %v4429 = vunpack.c.l.b16 %v4425
      %v4430 = vunpack.c.l.b16 %v4426
      %v4431 = vpack.c.b16 %v4430, %v4429
      %4433 = vst [vmem:[#allocation3 + $0x48] sm:$0xff] %v4431
      %4434 = vrot.lane.b32.xlu0 %v4287, 17
      %v4435 = vpop.permute.xlu0 %4434
      %4436 = vrot.lane.b32.xlu0 %v4288, 17
      %v4437 = vpop.permute.xlu0 %4436
      %v4438 = vsel %vm333, %v4435, %v4437
      %v4439 = vsel %vm333, %v4437, %v4435
      %v4440 = vmul.f32 %v4439, %v341
      %v4441 = vmul.f32 %v4438, %v345
      %v4442 = vpack.c.bf16 %v4440, %v4440
      %v4443 = vpack.c.bf16 %v4441, %v4441
      %v4446 = vunpack.c.l.b16 %v4442
      %v4447 = vunpack.c.l.b16 %v4443
      %v4448 = vpack.c.b16 %v4447, %v4446
      %4450 = vst [vmem:[#allocation3 + $0x50] sm:$0xff] %v4448
      %4451 = vrot.lane.b32.xlu0 %v4287, 16
      %v4452 = vpop.permute.xlu0 %4451
      %4453 = vrot.lane.b32.xlu0 %v4288, 16
      %v4454 = vpop.permute.xlu0 %4453
      %v4455 = vsel %vm384, %v4452, %v4454
      %v4456 = vsel %vm384, %v4454, %v4452
      %v4457 = vmul.f32 %v4456, %v392
      %v4458 = vmul.f32 %v4455, %v396
      %v4459 = vpack.c.bf16 %v4457, %v4457
      %v4460 = vpack.c.bf16 %v4458, %v4458
      %v4463 = vunpack.c.l.b16 %v4459
      %v4464 = vunpack.c.l.b16 %v4460
      %v4465 = vpack.c.b16 %v4464, %v4463
      %4467 = vst [vmem:[#allocation3 + $0x58] sm:$0xff] %v4465
      %4468 = vrot.lane.b32.xlu0 %v4287, 15
      %v4469 = vpop.permute.xlu0 %4468
      %4470 = vrot.lane.b32.xlu0 %v4288, 15
      %v4471 = vpop.permute.xlu0 %4470
      %v4472 = vsel %vm435, %v4469, %v4471
      %v4473 = vsel %vm435, %v4471, %v4469
      %v4474 = vmul.f32 %v4473, %v443
      %v4475 = vmul.f32 %v4472, %v447
      %v4476 = vpack.c.bf16 %v4474, %v4474
      %v4477 = vpack.c.bf16 %v4475, %v4475
      %v4480 = vunpack.c.l.b16 %v4476
      %v4481 = vunpack.c.l.b16 %v4477
      %v4482 = vpack.c.b16 %v4481, %v4480
      %4484 = vst [vmem:[#allocation3 + $0x60] sm:$0xff] %v4482
      %4485 = vrot.lane.b32.xlu0 %v4287, 1
      %v4486 = vpop.permute.xlu0 %4485
      %4487 = vrot.lane.b32.xlu0 %v4288, 1
      %v4488 = vpop.permute.xlu0 %4487
      %v4489 = vsel %vm486, %v4486, %v4488
      %v4490 = vsel %vm486, %v4488, %v4486
      %v4491 = vmul.f32 %v4490, %v494
      %v4492 = vmul.f32 %v4489, %v498
      %v4493 = vpack.c.bf16 %v4491, %v4491
      %v4494 = vpack.c.bf16 %v4492, %v4492
      %v4497 = vunpack.c.l.b16 %v4493
      %v4498 = vunpack.c.l.b16 %v4494
      %v4499 = vpack.c.b16 %v4498, %v4497
      %4501 = vst [vmem:[#allocation3 + $0x68] sm:$0xff] %v4499
      %v4502 = vpack.c.bf16 %v4287, %v4287
      %v4503 = vpack.c.bf16 %v4288, %v4288
      %v4506 = vunpack.c.l.b16 %v4502
      %v4507 = vunpack.c.l.b16 %v4503
      %v4508 = vpack.c.b16 %v4507, %v4506
      %4510 = vst [vmem:[#allocation3 + $0x70] sm:$0xff] %v4508
      %4511 = vrot.lane.b32.xlu0 %v4287, 127
      %v4512 = vpop.permute.xlu0 %4511
      %4513 = vrot.lane.b32.xlu0 %v4288, 127
      %v4514 = vpop.permute.xlu0 %4513
      %v4515 = vsel %vm555, %v4512, %v4514
      %v4516 = vsel %vm555, %v4514, %v4512
      %v4517 = vmul.f32 %v4515, %v563
      %v4518 = vmul.f32 %v4516, %v567
      %v4519 = vpack.c.bf16 %v4517, %v4517
      %v4520 = vpack.c.bf16 %v4518, %v4518
      %v4523 = vunpack.c.l.b16 %v4519
      %v4524 = vunpack.c.l.b16 %v4520
      %v4525 = vpack.c.b16 %v4524, %v4523
      %4527 = vst [vmem:[#allocation3 + $0x78] sm:$0xff] %v4525
      %4528 = vrot.lane.b32.xlu0 %v4287, 113
      %v4529 = vpop.permute.xlu0 %4528
      %4530 = vrot.lane.b32.xlu0 %v4288, 113
      %v4531 = vpop.permute.xlu0 %4530
      %v4532 = vsel %vm606, %v4529, %v4531
      %v4533 = vsel %vm606, %v4531, %v4529
      %v4534 = vmul.f32 %v4532, %v614
      %v4535 = vmul.f32 %v4533, %v618
      %v4536 = vpack.c.bf16 %v4534, %v4534
      %v4537 = vpack.c.bf16 %v4535, %v4535
      %v4540 = vunpack.c.l.b16 %v4536
      %v4541 = vunpack.c.l.b16 %v4537
      %v4542 = vpack.c.b16 %v4541, %v4540
      %4544 = vst [vmem:[#allocation3 + $0x80] sm:$0xff] %v4542
      %4545 = vrot.lane.b32.xlu0 %v4287, 112
      %v4546 = vpop.permute.xlu0 %4545
      %4547 = vrot.lane.b32.xlu0 %v4288, 112
      %v4548 = vpop.permute.xlu0 %4547
      %v4549 = vsel %vm657, %v4546, %v4548
      %v4550 = vsel %vm657, %v4548, %v4546
      %v4551 = vmul.f32 %v4549, %v665
      %v4552 = vmul.f32 %v4550, %v669
      %v4553 = vpack.c.bf16 %v4551, %v4551
      %v4554 = vpack.c.bf16 %v4552, %v4552
      %v4557 = vunpack.c.l.b16 %v4553
      %v4558 = vunpack.c.l.b16 %v4554
      %v4559 = vpack.c.b16 %v4558, %v4557
      %4561 = vst [vmem:[#allocation3 + $0x88] sm:$0xff] %v4559
      %4562 = vrot.lane.b32.xlu0 %v4287, 111
      %v4563 = vpop.permute.xlu0 %4562
      %4564 = vrot.lane.b32.xlu0 %v4288, 111
      %v4565 = vpop.permute.xlu0 %4564
      %v4566 = vsel %vm708, %v4563, %v4565
      %v4567 = vsel %vm708, %v4565, %v4563
      %v4568 = vmul.f32 %v4566, %v716
      %v4569 = vmul.f32 %v4567, %v720
      %v4570 = vpack.c.bf16 %v4568, %v4568
      %v4571 = vpack.c.bf16 %v4569, %v4569
      %v4574 = vunpack.c.l.b16 %v4570
      %v4575 = vunpack.c.l.b16 %v4571
      %v4576 = vpack.c.b16 %v4575, %v4574
      %4578 = vst [vmem:[#allocation3 + $0x90] sm:$0xff] %v4576
      %v4579 = vld [vmem:[%s7] sm:$0xff]
      %v4580 = vld [vmem:[#allocation3] sm:$0xff]
      %v4581 = vld [vmem:[#allocation3 + $0x8] sm:$0xff]
      %v4582 = vld [vmem:[#allocation3 + $0x10] sm:$0xff]
      %v4583 = vld [vmem:[#allocation3 + $0x18] sm:$0xff]
      %v4584 = vld [vmem:[#allocation3 + $0x20] sm:$0xff]
      %v4585 = vld [vmem:[#allocation3 + $0x28] sm:$0xff]
      %v4586 = vld [vmem:[#allocation3 + $0x30] sm:$0xff]
      %v4587 = vld [vmem:[#allocation3 + $0x38] sm:$0xff]
      %v4588 = vld [vmem:[#allocation3 + $0x40] sm:$0xff]
      %v4589 = vld [vmem:[#allocation3 + $0x48] sm:$0xff]
      %v4590 = vld [vmem:[#allocation3 + $0x50] sm:$0xff]
      %v4591 = vld [vmem:[#allocation3 + $0x58] sm:$0xff]
      %v4592 = vld [vmem:[#allocation3 + $0x60] sm:$0xff]
      %v4593 = vld [vmem:[#allocation3 + $0x68] sm:$0xff]
      %v4594 = vld [vmem:[#allocation3 + $0x70] sm:$0xff]
      %v4595 = vld [vmem:[#allocation3 + $0x78] sm:$0xff]
      %v4596 = vld [vmem:[#allocation3 + $0x80] sm:$0xff]
      %v4597 = vld [vmem:[#allocation3 + $0x88] sm:$0xff]
      %v4598 = vld [vmem:[#allocation3 + $0x90] sm:$0xff]
      %v4600 = vunpack.c.l.b16 %v4579
      %v4601 = vunpack.c.h.b16 %v4579
      %v4602 = vpack.c.b16 %v4600, %v4600
      %v4603 = vpack.c.b16 %v4601, %v4601
      %v4624 = vunpack.c.l.b16 %v4580
      %v4625 = vunpack.c.h.b16 %v4580
      %v4626 = vunpack.c.l.b16 %v4581
      %v4627 = vunpack.c.h.b16 %v4581
      %v4628 = vunpack.c.l.b16 %v4582
      %v4629 = vunpack.c.h.b16 %v4582
      %v4630 = vunpack.c.l.b16 %v4583
      %v4631 = vunpack.c.h.b16 %v4583
      %v4632 = vunpack.c.l.b16 %v4584
      %v4633 = vunpack.c.h.b16 %v4584
      %v4634 = vunpack.c.l.b16 %v4585
      %v4635 = vunpack.c.h.b16 %v4585
      %v4636 = vunpack.c.l.b16 %v4586
      %v4637 = vunpack.c.h.b16 %v4586
      %v4638 = vunpack.c.l.b16 %v4587
      %v4639 = vunpack.c.h.b16 %v4587
      %v4640 = vunpack.c.l.b16 %v4588
      %v4641 = vunpack.c.h.b16 %v4588
      %v4642 = vunpack.c.l.b16 %v4589
      %v4643 = vunpack.c.h.b16 %v4589
      %v4644 = vunpack.c.l.b16 %v4590
      %v4645 = vunpack.c.h.b16 %v4590
      %v4646 = vunpack.c.l.b16 %v4591
      %v4647 = vunpack.c.h.b16 %v4591
      %v4648 = vunpack.c.l.b16 %v4592
      %v4649 = vunpack.c.h.b16 %v4592
      %v4650 = vunpack.c.l.b16 %v4593
      %v4651 = vunpack.c.h.b16 %v4593
      %v4652 = vunpack.c.l.b16 %v4594
      %v4653 = vunpack.c.h.b16 %v4594
      %v4654 = vunpack.c.l.b16 %v4595
      %v4655 = vunpack.c.h.b16 %v4595
      %v4656 = vunpack.c.l.b16 %v4596
      %v4657 = vunpack.c.h.b16 %v4596
      %v4658 = vunpack.c.l.b16 %v4597
      %v4659 = vunpack.c.h.b16 %v4597
      %v4660 = vunpack.c.l.b16 %v4598
      %v4661 = vunpack.c.h.b16 %v4598
      %v4662 = vpack.c.b16 %v4626, %v4624
      %v4663 = vpack.c.b16 %v4627, %v4625
      %v4664 = vpack.c.b16 %v4630, %v4628
      %v4665 = vpack.c.b16 %v4631, %v4629
      %v4666 = vpack.c.b16 %v4634, %v4632
      %v4667 = vpack.c.b16 %v4635, %v4633
      %v4668 = vpack.c.b16 %v4638, %v4636
      %v4669 = vpack.c.b16 %v4639, %v4637
      %v4670 = vpack.c.b16 %v4642, %v4640
      %v4671 = vpack.c.b16 %v4643, %v4641
      %v4672 = vpack.c.b16 %v4646, %v4644
      %v4673 = vpack.c.b16 %v4647, %v4645
      %v4674 = vpack.c.b16 %v4650, %v4648
      %v4675 = vpack.c.b16 %v4651, %v4649
      %v4676 = vpack.c.b16 %v4654, %v4652
      %v4677 = vpack.c.b16 %v4655, %v4653
      %v4678 = vpack.c.b16 %v4658, %v4656
      %v4679 = vpack.c.b16 %v4659, %v4657
      %v4680 = vpack.c.b16 %v4660, %v4660
      %v4681 = vpack.c.b16 %v4661, %v4661
      %v4701 = vsel %vm1491, %v4603, 0
      %v4704 = vsel %vm1495, %v4680, 0
      %v4707 = vsel %vm1495, %v4681, 0
      %4709 = vmatprep.subr.bf16.mxu0 %v4677
      %4710 = vmatpush1.bf16.msra.mxu0 %v4676
      %4711 = vmatprep.subr.bf16.mxu0 %v4675
      %4712 = vmatpush1.bf16.msra.mxu0 %v4674
      %4713 = vmatprep.subr.bf16.mxu0 %v4673
      %4714 = vmatpush1.bf16.msra.mxu0 %v4672
      %4715 = vmatprep.subr.bf16.mxu0 %v4671
      %4716 = vmatpush1.bf16.msra.mxu0 %v4670
      %4717 = vmatprep.subr.bf16.mxu0 %v4669
      %4718 = vmatpush1.bf16.msra.mxu0 %v4668
      %4719 = vmatprep.subr.bf16.mxu0 %v4667
      %4720 = vmatpush1.bf16.msra.mxu0 %v4666
      %4721 = vmatprep.subr.bf16.mxu0 %v4665
      %4722 = vmatpush1.bf16.msra.mxu0 %v4664
      %4723 = vmatprep.subr.bf16.mxu0 %v4663
      %4724 = vmatpush1.bf16.msra.mxu0 %v4662
      %4725 = vmatprep.subr.bf16.mxu0 0
      %4726 = vmatpush2.bf16.msra.mxu0 0
      %4727 = vmatprep.subr.bf16.mxu0 0
      %4728 = vmatpush2.bf16.msra.mxu0 0
      %4729 = vmatprep.subr.bf16.mxu0 0
      %4730 = vmatpush2.bf16.msra.mxu0 0
      %4731 = vmatprep.subr.bf16.mxu0 0
      %4732 = vmatpush2.bf16.msra.mxu0 0
      %4733 = vmatprep.subr.bf16.mxu0 0
      %4734 = vmatpush2.bf16.msra.mxu0 0
      %4735 = vmatprep.subr.bf16.mxu0 0
      %4736 = vmatpush2.bf16.msra.mxu0 0
      %4737 = vmatprep.subr.bf16.mxu0 %v4707
      %4738 = vmatpush2.bf16.msra.mxu0 %v4704
      %4739 = vmatprep.subr.bf16.mxu0 %v4679
      %4740 = vmatpush2.bf16.msra.mxu0 %v4678
      %4741 = vmatprep.mubr.bf16.mxu0 %v4701
      %4742 = vmatmul.mubr.bf16.gmra.mxu0 %v4602
      %v4743 = vpop.f32.mrf.mxu0
      %v4744 = vadd.f32 0.0, %v4743
      %v4745 = vpop.f32.mrf.mxu0
      %v4746 = vadd.f32 0.0, %v4745
      %v4747 = vpop.f32.mrf.mxu0
      %v4748 = vpop.f32.mrf.mxu0
      %4749 = vdwg.mxu0
      %v4752 = vcombine.low %v4744, %v4746
      %4754 = vst [vmem:[%s305] sm:$0xff] %v4752
      %p4755 = scmp.lt.s32.totalorder %s19, 1
      %s4756 = scalar_select %p4755, %s19, 1
      %s4757 = smul.addr %s4756, 2
      %s4758 = smul.addr %s4757, 4
      %s4759 = scalar_lea.vmem %s8, %s4758
      // Predicated region
      $region53: #{dense_block_v2_forward.1} parent=51 // pred_check
        %p4760 = pneg %p210
      $region54: #{dense_block_v2_forward.1} parent=51 // pred_check_branch
        %4762 = sbr.rel (%p4760) target = $region56
      $region55: #{dense_block_v2_forward.1} parent=51 // pred_region
        _
      $region56: #{dense_block_v2_forward.1} parent=51 // pred_fallthru
        _
    $region52: #{dense_block_v2_forward.1} parent=5 // pred_fallthru
      _
    %p4763 = scmp.le.s32.totalorder 2, %s14
    // Predicated region
    $region57: #{dense_block_v2_forward.1} parent=5 // pred_check
      %p4764 = pneg %p4763
    $region58: #{dense_block_v2_forward.1} parent=5 // pred_check_branch
      %4766 = sbr.rel (%p4764) target = $region60
    $region59: #{dense_block_v2_forward.1} parent=5 // pred_region
      %s4767 = ssub.s32 %s14, 2
      // Predicated region
      $region61: #{dense_block_v2_forward.1} parent=59 // pred_check
        %p4768 = pneg %p216
      $region62: #{dense_block_v2_forward.1} parent=59 // pred_check_branch
        %4770 = sbr.rel (%p4768) target = $region64
      $region63: #{dense_block_v2_forward.1} parent=59 // pred_region
        %p4771 = scmp.lt.s32.totalorder %s20, 1
        %s4772 = scalar_select %p4771, %s20, 1
        %s4773 = smul.addr %s4772, 2
        %s4774 = smul.addr %s4773, 4
        %s4775 = scalar_lea.vmem %s8, %s4774
      $region64: #{dense_block_v2_forward.1} parent=59 // pred_fallthru
        _
    $region60: #{dense_block_v2_forward.1} parent=5 // pred_fallthru
      _
  $region6: #{dense_block_v2_forward.1} parent=0 // loop_footer
    %s18 = sadd.s32 1, %s14
  $region7: #{dense_block_v2_forward.1} parent=0 // loop_footer_branch
    %13 = sbr.rel target = $region3
  $region8: #{dense_block_v2_forward.1} parent=0 // loop_exit
    _

</llo_original>
